<compile_context>
chip_gen: v5e
topology: v5e:2x2
jax: 0.10.0
libtpu: 0.0.40
codegen_flags: <defaults>
</compile_context>

<pallas_src>
import functools
import numpy as np
import jax
import jax.numpy as jnp
from jax.experimental import pallas as pl
from jax.experimental.pallas import tpu as pltpu


_TAPS = tuple((dy, dx) for dy in (-1, 0, 1) for dx in (-1, 0, 1))


# ---------------------------------------------------------------------------
# Static helper tables (numpy, built once per shape)
# ---------------------------------------------------------------------------
def _bilinear_matrix(in_size, out_size):
    """Row-resize matrix matching F.interpolate(mode='bilinear', align_corners=False)."""
    if in_size == out_size:
        return np.eye(out_size, dtype=np.float32)   # adaptive_cat skips resize when equal
    scale = in_size / out_size
    M = np.zeros((out_size, in_size), np.float32)
    for o in range(out_size):
        src = max((o + 0.5) * scale - 0.5, 0.0)
        i0 = min(int(np.floor(src)), in_size - 1)
        i1 = min(i0 + 1, in_size - 1)
        lam = src - i0
        M[o, i0] += 1.0 - lam
        M[o, i1] += lam
    return M


def _conv_masks(H, W):
    """(9, H*W) f32 validity masks for the 9 taps of a zero-padded 3x3 conv."""
    S = H * W
    r = np.arange(S) // W
    c = np.arange(S) % W
    ms = []
    for dy, dx in _TAPS:
        valid = (r + dy >= 0) & (r + dy < H) & (c + dx >= 0) & (c + dx < W)
        ms.append(valid.astype(np.float32))
    return np.stack(ms)                                       # (9, S)


def _pack_taps(w):
    """(9, Cout, Cin) tap weights -> (Cout, 9*Cin); column index = t*Cin + c."""
    t, co, ci = w.shape
    return jnp.transpose(w, (1, 0, 2)).reshape(co, t * ci)


def _taps_to_oihw(w):
    """(9, Cout, Cin) tap weights -> (Cout, Cin, 3, 3) OIHW (for the XLA reference)."""
    _, co, ci = w.shape
    return jnp.transpose(w.reshape(3, 3, co, ci), (2, 3, 0, 1))


# ---------------------------------------------------------------------------
# Fused TSE kernel: one grid step == one batch element, everything in VMEM
# ---------------------------------------------------------------------------
def _tse_kernel(ft_ref, sc_ref, mask_ref,
                wr1_ref, br1_ref, wr2_ref, br2_ref,
                wt1_ref, bt1_ref, wt2_ref, bt2_ref, wt3_ref, bt3_ref,
                out_ref, pool_ref, patch_ref, *, H, W, taps):
    S = H * W
    f32 = jnp.float32
    bf16 = jnp.bfloat16

    def conv3x3(x, w_ref, b_ref):
        # Fused zero-padded 3x3 conv:
        #   stage the 9 rolled+masked taps of x (Cin,S) into the (9*Cin,S) VMEM
        #   scratch, then a single (Cout, 9*Cin) @ (9*Cin, S) MXU matmul.
        cin = x.shape[0]
        for t in range(9):
            dy, dx = taps[t]
            off = dy * W + dx
            if off == 0:
                xs = x                                             # center tap: always valid
            else:
                m = mask_ref[pl.ds(t, 1), :]                       # (1, S) validity mask
                xs = pltpu.roll(x, shift=(-off) % S, axis=1) * m   # XLU roll + one VPU mask
            patch_ref[pl.ds(t * cin, cin), :] = xs
        patch = patch_ref[pl.ds(0, 9 * cin), :].astype(bf16)
        return jnp.dot(w_ref[...], patch, preferred_element_type=f32) + b_ref[...]

    # ---- reduce: 1x1 conv -> relu -> 1x1 conv (bf16 MXU, f32 accumulate) ----
    ft = ft_ref[0]                                                         # (fc, S) bf16
    h1 = jnp.dot(wr1_ref[...], ft, preferred_element_type=f32) + br1_ref[...]
    h1 = jnp.maximum(h1, 0.0)
    h = jnp.dot(wr2_ref[...], h1.astype(bf16),
                preferred_element_type=f32) + br2_ref[...]                 # (oc, S) f32

    # ---- hpool = adaptive_avg_pool2d(h, (1,1)) ------------------------------
    pool_ref[0] = (jnp.sum(h, axis=1, keepdims=True) * (1.0 / S)).astype(pool_ref.dtype)

    # ---- adaptive_cat: channel concat with the (pre-resized) score ----------
    x1 = jnp.concatenate([h, sc_ref[0]], axis=0)                           # (nc, S) f32

    # ---- transform: 3 x (fused 3x3 conv + relu) ------------------------------
    y = jnp.maximum(conv3x3(x1, wt1_ref, bt1_ref), 0.0)                    # (nc, S)
    y = jnp.maximum(conv3x3(y, wt2_ref, bt2_ref), 0.0)                     # (nc, S)
    y = jnp.maximum(conv3x3(y, wt3_ref, bt3_ref), 0.0)                     # (oc, S)

    out_ref[0] = y.astype(out_ref.dtype)


# ---------------------------------------------------------------------------
# Module wrapper (same forward semantics as the PyTorch TSE)
# ---------------------------------------------------------------------------
class TSEPallas:
    def __init__(self, fc, ic, oc, key=None):
        if key is None:
            key = jax.random.PRNGKey(0)
        self.fc, self.ic, self.oc = fc, ic, oc
        self.nc = nc = ic + oc
        ks = jax.random.split(key, 10)

        def u(k, shape, fan_in):
            b = 1.0 / np.sqrt(float(fan_in))
            return jax.random.uniform(k, shape, jnp.float32, -b, b)

        # reduce: conv1x1(fc->oc), relu, conv1x1(oc->oc)   (channel-major weights)
        self.wr1 = u(ks[0], (oc, fc), fc)
        self.br1 = u(ks[1], (oc, 1), fc)
        self.wr2 = u(ks[2], (oc, oc), oc)
        self.br2 = u(ks[3], (oc, 1), oc)
        # transform: conv3x3(nc->nc), conv3x3(nc->nc), conv3x3(nc->oc)
        # input-channel order of conv1 = [h (0:oc), score (oc:nc)] (== torch cat order)
        self.wt1 = u(ks[4], (9, nc, nc), nc * 9)
        self.bt1 = u(ks[5], (nc, 1), nc * 9)
        self.wt2 = u(ks[6], (9, nc, nc), nc * 9)
        self.bt2 = u(ks[7], (nc, 1), nc * 9)
        self.wt3 = u(ks[8], (9, oc, nc), nc * 9)
        self.bt3 = u(ks[9], (oc, 1), nc * 9)

        # Pre-packed / pre-cast bf16 copies for the MXU (f32 originals kept for
        # the XLA reference).  Packing order matches the in-kernel tap scratch.
        self.wr1_b = self.wr1.astype(jnp.bfloat16)
        self.wr2_b = self.wr2.astype(jnp.bfloat16)
        self.wt1_p = _pack_taps(self.wt1).astype(jnp.bfloat16)   # (nc, 9*nc)
        self.wt2_p = _pack_taps(self.wt2).astype(jnp.bfloat16)   # (nc, 9*nc)
        self.wt3_p = _pack_taps(self.wt3).astype(jnp.bfloat16)   # (oc, 9*nc)

    # -- fused Pallas forward ------------------------------------------------
    def __call__(self, ft, score, x=None):
        # ft: (N, fc, H, W); score: (N, ic, Hs, Ws) in NCHW, like PyTorch.
        N, fc, H, W = ft.shape
        _, ic, Hs, Ws = score.shape
        oc, nc = self.oc, self.nc
        S = H * W

        # adaptive_cat's bilinear resize of `score` (align_corners=False): a tiny
        # XLA einsum outside the kernel (removes the (Hs*Ws, S) kron matrix).
        if (Hs, Ws) != (H, W):
            Rh = jnp.asarray(_bilinear_matrix(Hs, H))            # (H, Hs)
            Rw = jnp.asarray(_bilinear_matrix(Ws, W))            # (W, Ws)
            sc = jnp.einsum("hi,ncij,wj->nchw", Rh, score, Rw)
        else:
            sc = score
        sc_f = sc.reshape(N, ic, S).astype(jnp.float32)          # (N, ic, S)

        masks = jnp.asarray(_conv_masks(H, W))                   # (9, S)
        ft_f = ft.reshape(N, fc, S).astype(jnp.bfloat16)         # lane-dense, bf16 MXU feed

        kernel = functools.partial(_tse_kernel, H=H, W=W, taps=_TAPS)
        out, pool = pl.pallas_call(
            kernel,
            out_shape=(jax.ShapeDtypeStruct((N, oc, S), jnp.float32),
                       jax.ShapeDtypeStruct((N, oc, 1), jnp.float32)),
            grid=(N,),
            in_specs=[
                pl.BlockSpec((1, fc, S), lambda n: (n, 0, 0)),
                pl.BlockSpec((1, ic, S), lambda n: (n, 0, 0)),
                pl.BlockSpec((9, S), lambda n: (0, 0)),
                pl.BlockSpec((oc, fc), lambda n: (0, 0)),
                pl.BlockSpec((oc, 1), lambda n: (0, 0)),
                pl.BlockSpec((oc, oc), lambda n: (0, 0)),
                pl.BlockSpec((oc, 1), lambda n: (0, 0)),
                pl.BlockSpec((nc, 9 * nc), lambda n: (0, 0)),
                pl.BlockSpec((nc, 1), lambda n: (0, 0)),
                pl.BlockSpec((nc, 9 * nc), lambda n: (0, 0)),
                pl.BlockSpec((nc, 1), lambda n: (0, 0)),
                pl.BlockSpec((oc, 9 * nc), lambda n: (0, 0)),
                pl.BlockSpec((oc, 1), lambda n: (0, 0)),
            ],
            out_specs=(pl.BlockSpec((1, oc, S), lambda n: (n, 0, 0)),
                       pl.BlockSpec((1, oc, 1), lambda n: (n, 0, 0))),
            scratch_shapes=[pltpu.VMEM((9 * nc, S), jnp.float32)],   # tap-stacked patches
            compiler_params=pltpu.CompilerParams(
                dimension_semantics=("parallel",)),
        )(ft_f, sc_f, masks,
          self.wr1_b, self.br1, self.wr2_b, self.br2,
          self.wt1_p, self.bt1, self.wt2_p, self.bt2, self.wt3_p, self.bt3)

        h = out.reshape(N, oc, H, W)                             # NCHW directly, no transpose
        hpool = pool.reshape(N, oc, 1, 1) if x is None else x
        return h, hpool

    # -- pure-XLA reference (same math in f32, for the in-script check) -------
    def reference(self, ft, score, x=None):
        def conv(z, w_oihw, b, pad):
            o = jax.lax.conv_general_dilated(
                z, w_oihw, (1, 1), [(pad, pad), (pad, pad)],
                dimension_numbers=("NCHW", "OIHW", "NCHW"))
            return o + b.reshape(1, -1, 1, 1)

        oc, fc = self.oc, self.fc
        h = jax.nn.relu(conv(ft, self.wr1.reshape(oc, fc, 1, 1), self.br1, 0))
        h = conv(h, self.wr2.reshape(oc, oc, 1, 1), self.br2, 0)
        hpool = jnp.mean(h, axis=(2, 3), keepdims=True) if x is None else x

        H, W = ft.shape[-2:]
        Rh = jnp.asarray(_bilinear_matrix(score.shape[-2], H))
        Rw = jnp.asarray(_bilinear_matrix(score.shape[-1], W))
        sc = jnp.einsum("hi,ncij,wj->nchw", Rh, score, Rw)

        z = jnp.concatenate([h, sc], axis=1)                     # adaptive_cat((h, score), dim=1)
        z = jax.nn.relu(conv(z, _taps_to_oihw(self.wt1), self.bt1, 1))
        z = jax.nn.relu(conv(z, _taps_to_oihw(self.wt2), self.bt2, 1))
        z = jax.nn.relu(conv(z, _taps_to_oihw(self.wt3), self.bt3, 1))
        return z, hpool


if __name__ == "__main__":
    key = jax.random.PRNGKey(0)
    k_ft, k_sc, k_p = jax.random.split(key, 3)
    N, fc, ic, oc = 2, 64, 4, 32
    H = W = 16
    Hs = Ws = 32
    ft = jax.random.normal(k_ft, (N, fc, H, W), jnp.float32)
    score = jax.random.normal(k_sc, (N, ic, Hs, Ws), jnp.float32)

    model = TSEPallas(fc, ic, oc, key=k_p)
    h, hpool = model(ft, score)
    h, hpool = jax.block_until_ready((h, hpool))

    assert h.shape == (N, oc, H, W), h.shape
    assert hpool.shape == (N, oc, 1, 1), hpool.shape
    assert bool(jnp.all(jnp.isfinite(h))) and bool(jnp.all(jnp.isfinite(hpool)))

    # Correctness vs. a pure-XLA f32 implementation of the same module.
    # 3e-2 tolerance accounts for the bf16 MXU operands (f32 accumulation).
    h_ref, hpool_ref = model.reference(ft, score)
    np.testing.assert_allclose(np.asarray(h), np.asarray(h_ref), rtol=3e-2, atol=3e-2)
    np.testing.assert_allclose(np.asarray(hpool), np.asarray(hpool_ref), rtol=3e-2, atol=3e-2)

    print("KERNEL_OK")
</pallas_src>

<mosaic_0001>
module attributes {stable_mosaic.version = 11 : i64} {
  func.func @_tse_kernel(%arg0: i32, %arg1: memref<1x64x256xbf16, #tpu.memory_space<vmem>>, %arg2: memref<1x4x256xf32, #tpu.memory_space<vmem>>, %arg3: memref<9x256xf32, #tpu.memory_space<vmem>>, %arg4: memref<32x64xbf16, #tpu.memory_space<vmem>>, %arg5: memref<32x1xf32, #tpu.memory_space<vmem>>, %arg6: memref<32x32xbf16, #tpu.memory_space<vmem>>, %arg7: memref<32x1xf32, #tpu.memory_space<vmem>>, %arg8: memref<36x324xbf16, #tpu.memory_space<vmem>>, %arg9: memref<36x1xf32, #tpu.memory_space<vmem>>, %arg10: memref<36x324xbf16, #tpu.memory_space<vmem>>, %arg11: memref<36x1xf32, #tpu.memory_space<vmem>>, %arg12: memref<32x324xbf16, #tpu.memory_space<vmem>>, %arg13: memref<32x1xf32, #tpu.memory_space<vmem>>, %arg14: memref<1x32x256xf32, #tpu.memory_space<vmem>>, %arg15: memref<1x32x1xf32, #tpu.memory_space<vmem>>, %arg16: memref<324x256xf32, #tpu.memory_space<vmem>>) attributes {dimension_semantics = [#tpu.dimension_semantics<parallel>], iteration_bounds = array<i64: 2>, scalar_prefetch = 0 : i64, scratch_operands = 1 : i64, tpu.core_type = #tpu.core_type<tc>, window_params = [{transform_indices = @transform_0, window_bounds = array<i64: 1, 64, 256>}, {transform_indices = @transform_1, window_bounds = array<i64: 1, 4, 256>}, {pipeline_mode = #tpu.pipeline_mode<synchronous>, transform_indices = @transform_2, window_bounds = array<i64: 9, 256>}, {pipeline_mode = #tpu.pipeline_mode<synchronous>, transform_indices = @transform_3, window_bounds = array<i64: 32, 64>}, {pipeline_mode = #tpu.pipeline_mode<synchronous>, transform_indices = @transform_4, window_bounds = array<i64: 32, 1>}, {pipeline_mode = #tpu.pipeline_mode<synchronous>, transform_indices = @transform_5, window_bounds = array<i64: 32, 32>}, {pipeline_mode = #tpu.pipeline_mode<synchronous>, transform_indices = @transform_6, window_bounds = array<i64: 32, 1>}, {pipeline_mode = #tpu.pipeline_mode<synchronous>, transform_indices = @transform_7, window_bounds = array<i64: 36, 324>}, {pipeline_mode = #tpu.pipeline_mode<synchronous>, transform_indices = @transform_8, window_bounds = array<i64: 36, 1>}, {pipeline_mode = #tpu.pipeline_mode<synchronous>, transform_indices = @transform_9, window_bounds = array<i64: 36, 324>}, {pipeline_mode = #tpu.pipeline_mode<synchronous>, transform_indices = @transform_10, window_bounds = array<i64: 36, 1>}, {pipeline_mode = #tpu.pipeline_mode<synchronous>, transform_indices = @transform_11, window_bounds = array<i64: 32, 324>}, {pipeline_mode = #tpu.pipeline_mode<synchronous>, transform_indices = @transform_12, window_bounds = array<i64: 32, 1>}, {transform_indices = @transform_13, window_bounds = array<i64: 1, 32, 256>}, {transform_indices = @transform_14, window_bounds = array<i64: 1, 32, 1>}]} {
    %c0 = arith.constant 0 : index
    %c0_0 = arith.constant 0 : index
    %c0_1 = arith.constant 0 : index
    %0 = vector.load %arg1[%c0, %c0_0, %c0_1] : memref<1x64x256xbf16, #tpu.memory_space<vmem>>, vector<1x64x256xbf16>
    %1 = vector.shape_cast %0 : vector<1x64x256xbf16> to vector<64x256xbf16>
    %c0_2 = arith.constant 0 : index
    %c0_3 = arith.constant 0 : index
    %2 = vector.load %arg4[%c0_2, %c0_3] : memref<32x64xbf16, #tpu.memory_space<vmem>>, vector<32x64xbf16>
    %cst = arith.constant dense<0.000000e+00> : vector<32x256xf32>
    %3 = tpu.matmul %2, %1, %cst {dimension_numbers = #tpu.dot_dimension_numbers<[1], [0], [0], [1], [0, 0, 1, 1], [], []>} : vector<32x64xbf16>, vector<64x256xbf16>, vector<32x256xf32> -> vector<32x256xf32>
    %c0_4 = arith.constant 0 : index
    %c0_5 = arith.constant 0 : index
    %4 = vector.load %arg5[%c0_4, %c0_5] : memref<32x1xf32, #tpu.memory_space<vmem>>, vector<32x1xf32>
    %5 = vector.broadcast %4 : vector<32x1xf32> to vector<32x256xf32>
    %6 = arith.addf %3, %5 : vector<32x256xf32>
    %cst_6 = arith.constant 0.000000e+00 : f32
    %7 = vector.broadcast %cst_6 : f32 to vector<32x256xf32>
    %8 = arith.maximumf %6, %7 : vector<32x256xf32>
    %c0_7 = arith.constant 0 : index
    %c0_8 = arith.constant 0 : index
    %9 = vector.load %arg6[%c0_7, %c0_8] : memref<32x32xbf16, #tpu.memory_space<vmem>>, vector<32x32xbf16>
    %10 = arith.truncf %8 : vector<32x256xf32> to vector<32x256xbf16>
    %cst_9 = arith.constant dense<0.000000e+00> : vector<32x256xf32>
    %11 = tpu.matmul %9, %10, %cst_9 {dimension_numbers = #tpu.dot_dimension_numbers<[1], [0], [0], [1], [0, 0, 1, 1], [], []>} : vector<32x32xbf16>, vector<32x256xbf16>, vector<32x256xf32> -> vector<32x256xf32>
    %c0_10 = arith.constant 0 : index
    %c0_11 = arith.constant 0 : index
    %12 = vector.load %arg7[%c0_10, %c0_11] : memref<32x1xf32, #tpu.memory_space<vmem>>, vector<32x1xf32>
    %13 = vector.broadcast %12 : vector<32x1xf32> to vector<32x256xf32>
    %14 = arith.addf %11, %13 : vector<32x256xf32>
    %cst_12 = arith.constant dense<0.000000e+00> : vector<32xf32>
    %15 = vector.multi_reduction <add>, %14, %cst_12 [1] : vector<32x256xf32> to vector<32xf32>
    %16 = vector.shape_cast %15 : vector<32xf32> to vector<32x1xf32>
    %cst_13 = arith.constant 3.906250e-03 : f32
    %17 = vector.broadcast %cst_13 : f32 to vector<32x1xf32>
    %18 = arith.mulf %16, %17 : vector<32x1xf32>
    %c0_14 = arith.constant 0 : index
    %c0_15 = arith.constant 0 : index
    %c0_16 = arith.constant 0 : index
    %19 = vector.load %arg15[%c0_14, %c0_15, %c0_16] : memref<1x32x1xf32, #tpu.memory_space<vmem>>, vector<1x32x1xf32>
    %20 = vector.shape_cast %19 : vector<1x32x1xf32> to vector<32x1xf32>
    %21 = vector.shape_cast %18 : vector<32x1xf32> to vector<1x32x1xf32>
    tpu.vector_store %arg15[%c0_14, %c0_15, %c0_16], %21 {strides = array<i32>} : memref<1x32x1xf32, #tpu.memory_space<vmem>>, vector<1x32x1xf32>,
    %c0_17 = arith.constant 0 : index
    %c0_18 = arith.constant 0 : index
    %c0_19 = arith.constant 0 : index
    %22 = vector.load %arg2[%c0_17, %c0_18, %c0_19] : memref<1x4x256xf32, #tpu.memory_space<vmem>>, vector<1x4x256xf32>
    %23 = vector.shape_cast %22 : vector<1x4x256xf32> to vector<4x256xf32>
    %24 = tpu.concatenate %14, %23 in 0 : vector<32x256xf32>, vector<4x256xf32> -> vector<36x256xf32>
    %c0_20 = arith.constant 0 : index
    %c0_21 = arith.constant 0 : index
    %25 = vector.load %arg3[%c0_20, %c0_21] : memref<9x256xf32, #tpu.memory_space<vmem>>, vector<1x256xf32>
    %c17_i32 = arith.constant 17 : i32
    %26 = tpu.dynamic_rotate %24 by %c17_i32 dim 1 : vector<36x256xf32>, i32 -> vector<36x256xf32>
    %27 = vector.broadcast %25 : vector<1x256xf32> to vector<36x256xf32>
    %28 = arith.mulf %26, %27 : vector<36x256xf32>
    %c0_22 = arith.constant 0 : index
    %c0_23 = arith.constant 0 : index
    %29 = vector.load %arg16[%c0_22, %c0_23] : memref<324x256xf32, #tpu.memory_space<vmem>>, vector<36x256xf32>
    tpu.vector_store %arg16[%c0_22, %c0_23], %28 {strides = array<i32>} : memref<324x256xf32, #tpu.memory_space<vmem>>, vector<36x256xf32>,
    %c1 = arith.constant 1 : index
    %c0_24 = arith.constant 0 : index
    %30 = vector.load %arg3[%c1, %c0_24] : memref<9x256xf32, #tpu.memory_space<vmem>>, vector<1x256xf32>
    %c16_i32 = arith.constant 16 : i32
    %31 = tpu.dynamic_rotate %24 by %c16_i32 dim 1 : vector<36x256xf32>, i32 -> vector<36x256xf32>
    %32 = vector.broadcast %30 : vector<1x256xf32> to vector<36x256xf32>
    %33 = arith.mulf %31, %32 : vector<36x256xf32>
    %c36 = arith.constant 36 : index
    %c0_25 = arith.constant 0 : index
    %34 = vector.load %arg16[%c36, %c0_25] : memref<324x256xf32, #tpu.memory_space<vmem>>, vector<36x256xf32>
    tpu.vector_store %arg16[%c36, %c0_25], %33 {strides = array<i32>} : memref<324x256xf32, #tpu.memory_space<vmem>>, vector<36x256xf32>,
    %c2 = arith.constant 2 : index
    %c0_26 = arith.constant 0 : index
    %35 = vector.load %arg3[%c2, %c0_26] : memref<9x256xf32, #tpu.memory_space<vmem>>, vector<1x256xf32>
    %c15_i32 = arith.constant 15 : i32
    %36 = tpu.dynamic_rotate %24 by %c15_i32 dim 1 : vector<36x256xf32>, i32 -> vector<36x256xf32>
    %37 = vector.broadcast %35 : vector<1x256xf32> to vector<36x256xf32>
    %38 = arith.mulf %36, %37 : vector<36x256xf32>
    %c72 = arith.constant 72 : index
    %c0_27 = arith.constant 0 : index
    %39 = vector.load %arg16[%c72, %c0_27] : memref<324x256xf32, #tpu.memory_space<vmem>>, vector<36x256xf32>
    tpu.vector_store %arg16[%c72, %c0_27], %38 {strides = array<i32>} : memref<324x256xf32, #tpu.memory_space<vmem>>, vector<36x256xf32>,
    %c3 = arith.constant 3 : index
    %c0_28 = arith.constant 0 : index
    %40 = vector.load %arg3[%c3, %c0_28] : memref<9x256xf32, #tpu.memory_space<vmem>>, vector<1x256xf32>
    %c1_i32 = arith.constant 1 : i32
    %41 = tpu.dynamic_rotate %24 by %c1_i32 dim 1 : vector<36x256xf32>, i32 -> vector<36x256xf32>
    %42 = vector.broadcast %40 : vector<1x256xf32> to vector<36x256xf32>
    %43 = arith.mulf %41, %42 : vector<36x256xf32>
    %c108 = arith.constant 108 : index
    %c0_29 = arith.constant 0 : index
    %44 = vector.load %arg16[%c108, %c0_29] : memref<324x256xf32, #tpu.memory_space<vmem>>, vector<36x256xf32>
    tpu.vector_store %arg16[%c108, %c0_29], %43 {strides = array<i32>} : memref<324x256xf32, #tpu.memory_space<vmem>>, vector<36x256xf32>,
    %c144 = arith.constant 144 : index
    %c0_30 = arith.constant 0 : index
    %45 = vector.load %arg16[%c144, %c0_30] : memref<324x256xf32, #tpu.memory_space<vmem>>, vector<36x256xf32>
    tpu.vector_store %arg16[%c144, %c0_30], %24 {strides = array<i32>} : memref<324x256xf32, #tpu.memory_space<vmem>>, vector<36x256xf32>,
    %c5 = arith.constant 5 : index
    %c0_31 = arith.constant 0 : index
    %46 = vector.load %arg3[%c5, %c0_31] : memref<9x256xf32, #tpu.memory_space<vmem>>, vector<1x256xf32>
    %c255_i32 = arith.constant 255 : i32
    %47 = tpu.dynamic_rotate %24 by %c255_i32 dim 1 : vector<36x256xf32>, i32 -> vector<36x256xf32>
    %48 = vector.broadcast %46 : vector<1x256xf32> to vector<36x256xf32>
    %49 = arith.mulf %47, %48 : vector<36x256xf32>
    %c180 = arith.constant 180 : index
    %c0_32 = arith.constant 0 : index
    %50 = vector.load %arg16[%c180, %c0_32] : memref<324x256xf32, #tpu.memory_space<vmem>>, vector<36x256xf32>
    tpu.vector_store %arg16[%c180, %c0_32], %49 {strides = array<i32>} : memref<324x256xf32, #tpu.memory_space<vmem>>, vector<36x256xf32>,
    %c6 = arith.constant 6 : index
    %c0_33 = arith.constant 0 : index
    %51 = vector.load %arg3[%c6, %c0_33] : memref<9x256xf32, #tpu.memory_space<vmem>>, vector<1x256xf32>
    %c241_i32 = arith.constant 241 : i32
    %52 = tpu.dynamic_rotate %24 by %c241_i32 dim 1 : vector<36x256xf32>, i32 -> vector<36x256xf32>
    %53 = vector.broadcast %51 : vector<1x256xf32> to vector<36x256xf32>
    %54 = arith.mulf %52, %53 : vector<36x256xf32>
    %c216 = arith.constant 216 : index
    %c0_34 = arith.constant 0 : index
    %55 = vector.load %arg16[%c216, %c0_34] : memref<324x256xf32, #tpu.memory_space<vmem>>, vector<36x256xf32>
    tpu.vector_store %arg16[%c216, %c0_34], %54 {strides = array<i32>} : memref<324x256xf32, #tpu.memory_space<vmem>>, vector<36x256xf32>,
    %c7 = arith.constant 7 : index
    %c0_35 = arith.constant 0 : index
    %56 = vector.load %arg3[%c7, %c0_35] : memref<9x256xf32, #tpu.memory_space<vmem>>, vector<1x256xf32>
    %c240_i32 = arith.constant 240 : i32
    %57 = tpu.dynamic_rotate %24 by %c240_i32 dim 1 : vector<36x256xf32>, i32 -> vector<36x256xf32>
    %58 = vector.broadcast %56 : vector<1x256xf32> to vector<36x256xf32>
    %59 = arith.mulf %57, %58 : vector<36x256xf32>
    %c252 = arith.constant 252 : index
    %c0_36 = arith.constant 0 : index
    %60 = vector.load %arg16[%c252, %c0_36] : memref<324x256xf32, #tpu.memory_space<vmem>>, vector<36x256xf32>
    tpu.vector_store %arg16[%c252, %c0_36], %59 {strides = array<i32>} : memref<324x256xf32, #tpu.memory_space<vmem>>, vector<36x256xf32>,
    %c8 = arith.constant 8 : index
    %c0_37 = arith.constant 0 : index
    %61 = vector.load %arg3[%c8, %c0_37] : memref<9x256xf32, #tpu.memory_space<vmem>>, vector<1x256xf32>
    %c239_i32 = arith.constant 239 : i32
    %62 = tpu.dynamic_rotate %24 by %c239_i32 dim 1 : vector<36x256xf32>, i32 -> vector<36x256xf32>
    %63 = vector.broadcast %61 : vector<1x256xf32> to vector<36x256xf32>
    %64 = arith.mulf %62, %63 : vector<36x256xf32>
    %c288 = arith.constant 288 : index
    %c0_38 = arith.constant 0 : index
    %65 = vector.load %arg16[%c288, %c0_38] : memref<324x256xf32, #tpu.memory_space<vmem>>, vector<36x256xf32>
    tpu.vector_store %arg16[%c288, %c0_38], %64 {strides = array<i32>} : memref<324x256xf32, #tpu.memory_space<vmem>>, vector<36x256xf32>,
    %c0_39 = arith.constant 0 : index
    %c0_40 = arith.constant 0 : index
    %66 = vector.load %arg16[%c0_39, %c0_40] : memref<324x256xf32, #tpu.memory_space<vmem>>, vector<324x256xf32>
    %67 = arith.truncf %66 : vector<324x256xf32> to vector<324x256xbf16>
    %c0_41 = arith.constant 0 : index
    %c0_42 = arith.constant 0 : index
    %68 = vector.load %arg8[%c0_41, %c0_42] : memref<36x324xbf16, #tpu.memory_space<vmem>>, vector<36x324xbf16>
    %cst_43 = arith.constant dense<0.000000e+00> : vector<36x256xf32>
    %69 = tpu.matmul %68, %67, %cst_43 {dimension_numbers = #tpu.dot_dimension_numbers<[1], [0], [0], [1], [0, 0, 1, 1], [], []>} : vector<36x324xbf16>, vector<324x256xbf16>, vector<36x256xf32> -> vector<36x256xf32>
    %c0_44 = arith.constant 0 : index
    %c0_45 = arith.constant 0 : index
    %70 = vector.load %arg9[%c0_44, %c0_45] : memref<36x1xf32, #tpu.memory_space<vmem>>, vector<36x1xf32>
    %71 = vector.broadcast %70 : vector<36x1xf32> to vector<36x256xf32>
    %72 = arith.addf %69, %71 : vector<36x256xf32>
    %cst_46 = arith.constant 0.000000e+00 : f32
    %73 = vector.broadcast %cst_46 : f32 to vector<36x256xf32>
    %74 = arith.maximumf %72, %73 : vector<36x256xf32>
    %c0_47 = arith.constant 0 : index
    %c0_48 = arith.constant 0 : index
    %75 = vector.load %arg3[%c0_47, %c0_48] : memref<9x256xf32, #tpu.memory_space<vmem>>, vector<1x256xf32>
    %c17_i32_49 = arith.constant 17 : i32
    %76 = tpu.dynamic_rotate %74 by %c17_i32_49 dim 1 : vector<36x256xf32>, i32 -> vector<36x256xf32>
    %77 = vector.broadcast %75 : vector<1x256xf32> to vector<36x256xf32>
    %78 = arith.mulf %76, %77 : vector<36x256xf32>
    %c0_50 = arith.constant 0 : index
    %c0_51 = arith.constant 0 : index
    %79 = vector.load %arg16[%c0_50, %c0_51] : memref<324x256xf32, #tpu.memory_space<vmem>>, vector<36x256xf32>
    tpu.vector_store %arg16[%c0_50, %c0_51], %78 {strides = array<i32>} : memref<324x256xf32, #tpu.memory_space<vmem>>, vector<36x256xf32>,
    %c1_52 = arith.constant 1 : index
    %c0_53 = arith.constant 0 : index
    %80 = vector.load %arg3[%c1_52, %c0_53] : memref<9x256xf32, #tpu.memory_space<vmem>>, vector<1x256xf32>
    %c16_i32_54 = arith.constant 16 : i32
    %81 = tpu.dynamic_rotate %74 by %c16_i32_54 dim 1 : vector<36x256xf32>, i32 -> vector<36x256xf32>
    %82 = vector.broadcast %80 : vector<1x256xf32> to vector<36x256xf32>
    %83 = arith.mulf %81, %82 : vector<36x256xf32>
    %c36_55 = arith.constant 36 : index
    %c0_56 = arith.constant 0 : index
    %84 = vector.load %arg16[%c36_55, %c0_56] : memref<324x256xf32, #tpu.memory_space<vmem>>, vector<36x256xf32>
    tpu.vector_store %arg16[%c36_55, %c0_56], %83 {strides = array<i32>} : memref<324x256xf32, #tpu.memory_space<vmem>>, vector<36x256xf32>,
    %c2_57 = arith.constant 2 : index
    %c0_58 = arith.constant 0 : index
    %85 = vector.load %arg3[%c2_57, %c0_58] : memref<9x256xf32, #tpu.memory_space<vmem>>, vector<1x256xf32>
    %c15_i32_59 = arith.constant 15 : i32
    %86 = tpu.dynamic_rotate %74 by %c15_i32_59 dim 1 : vector<36x256xf32>, i32 -> vector<36x256xf32>
    %87 = vector.broadcast %85 : vector<1x256xf32> to vector<36x256xf32>
    %88 = arith.mulf %86, %87 : vector<36x256xf32>
    %c72_60 = arith.constant 72 : index
    %c0_61 = arith.constant 0 : index
    %89 = vector.load %arg16[%c72_60, %c0_61] : memref<324x256xf32, #tpu.memory_space<vmem>>, vector<36x256xf32>
    tpu.vector_store %arg16[%c72_60, %c0_61], %88 {strides = array<i32>} : memref<324x256xf32, #tpu.memory_space<vmem>>, vector<36x256xf32>,
    %c3_62 = arith.constant 3 : index
    %c0_63 = arith.constant 0 : index
    %90 = vector.load %arg3[%c3_62, %c0_63] : memref<9x256xf32, #tpu.memory_space<vmem>>, vector<1x256xf32>
    %c1_i32_64 = arith.constant 1 : i32
    %91 = tpu.dynamic_rotate %74 by %c1_i32_64 dim 1 : vector<36x256xf32>, i32 -> vector<36x256xf32>
    %92 = vector.broadcast %90 : vector<1x256xf32> to vector<36x256xf32>
    %93 = arith.mulf %91, %92 : vector<36x256xf32>
    %c108_65 = arith.constant 108 : index
    %c0_66 = arith.constant 0 : index
    %94 = vector.load %arg16[%c108_65, %c0_66] : memref<324x256xf32, #tpu.memory_space<vmem>>, vector<36x256xf32>
    tpu.vector_store %arg16[%c108_65, %c0_66], %93 {strides = array<i32>} : memref<324x256xf32, #tpu.memory_space<vmem>>, vector<36x256xf32>,
    %c144_67 = arith.constant 144 : index
    %c0_68 = arith.constant 0 : index
    %95 = vector.load %arg16[%c144_67, %c0_68] : memref<324x256xf32, #tpu.memory_space<vmem>>, vector<36x256xf32>
    tpu.vector_store %arg16[%c144_67, %c0_68], %74 {strides = array<i32>} : memref<324x256xf32, #tpu.memory_space<vmem>>, vector<36x256xf32>,
    %c5_69 = arith.constant 5 : index
    %c0_70 = arith.constant 0 : index
    %96 = vector.load %arg3[%c5_69, %c0_70] : memref<9x256xf32, #tpu.memory_space<vmem>>, vector<1x256xf32>
    %c255_i32_71 = arith.constant 255 : i32
    %97 = tpu.dynamic_rotate %74 by %c255_i32_71 dim 1 : vector<36x256xf32>, i32 -> vector<36x256xf32>
    %98 = vector.broadcast %96 : vector<1x256xf32> to vector<36x256xf32>
    %99 = arith.mulf %97, %98 : vector<36x256xf32>
    %c180_72 = arith.constant 180 : index
    %c0_73 = arith.constant 0 : index
    %100 = vector.load %arg16[%c180_72, %c0_73] : memref<324x256xf32, #tpu.memory_space<vmem>>, vector<36x256xf32>
    tpu.vector_store %arg16[%c180_72, %c0_73], %99 {strides = array<i32>} : memref<324x256xf32, #tpu.memory_space<vmem>>, vector<36x256xf32>,
    %c6_74 = arith.constant 6 : index
    %c0_75 = arith.constant 0 : index
    %101 = vector.load %arg3[%c6_74, %c0_75] : memref<9x256xf32, #tpu.memory_space<vmem>>, vector<1x256xf32>
    %c241_i32_76 = arith.constant 241 : i32
    %102 = tpu.dynamic_rotate %74 by %c241_i32_76 dim 1 : vector<36x256xf32>, i32 -> vector<36x256xf32>
    %103 = vector.broadcast %101 : vector<1x256xf32> to vector<36x256xf32>
    %104 = arith.mulf %102, %103 : vector<36x256xf32>
    %c216_77 = arith.constant 216 : index
    %c0_78 = arith.constant 0 : index
    %105 = vector.load %arg16[%c216_77, %c0_78] : memref<324x256xf32, #tpu.memory_space<vmem>>, vector<36x256xf32>
    tpu.vector_store %arg16[%c216_77, %c0_78], %104 {strides = array<i32>} : memref<324x256xf32, #tpu.memory_space<vmem>>, vector<36x256xf32>,
    %c7_79 = arith.constant 7 : index
    %c0_80 = arith.constant 0 : index
    %106 = vector.load %arg3[%c7_79, %c0_80] : memref<9x256xf32, #tpu.memory_space<vmem>>, vector<1x256xf32>
    %c240_i32_81 = arith.constant 240 : i32
    %107 = tpu.dynamic_rotate %74 by %c240_i32_81 dim 1 : vector<36x256xf32>, i32 -> vector<36x256xf32>
    %108 = vector.broadcast %106 : vector<1x256xf32> to vector<36x256xf32>
    %109 = arith.mulf %107, %108 : vector<36x256xf32>
    %c252_82 = arith.constant 252 : index
    %c0_83 = arith.constant 0 : index
    %110 = vector.load %arg16[%c252_82, %c0_83] : memref<324x256xf32, #tpu.memory_space<vmem>>, vector<36x256xf32>
    tpu.vector_store %arg16[%c252_82, %c0_83], %109 {strides = array<i32>} : memref<324x256xf32, #tpu.memory_space<vmem>>, vector<36x256xf32>,
    %c8_84 = arith.constant 8 : index
    %c0_85 = arith.constant 0 : index
    %111 = vector.load %arg3[%c8_84, %c0_85] : memref<9x256xf32, #tpu.memory_space<vmem>>, vector<1x256xf32>
    %c239_i32_86 = arith.constant 239 : i32
    %112 = tpu.dynamic_rotate %74 by %c239_i32_86 dim 1 : vector<36x256xf32>, i32 -> vector<36x256xf32>
    %113 = vector.broadcast %111 : vector<1x256xf32> to vector<36x256xf32>
    %114 = arith.mulf %112, %113 : vector<36x256xf32>
    %c288_87 = arith.constant 288 : index
    %c0_88 = arith.constant 0 : index
    %115 = vector.load %arg16[%c288_87, %c0_88] : memref<324x256xf32, #tpu.memory_space<vmem>>, vector<36x256xf32>
    tpu.vector_store %arg16[%c288_87, %c0_88], %114 {strides = array<i32>} : memref<324x256xf32, #tpu.memory_space<vmem>>, vector<36x256xf32>,
    %c0_89 = arith.constant 0 : index
    %c0_90 = arith.constant 0 : index
    %116 = vector.load %arg16[%c0_89, %c0_90] : memref<324x256xf32, #tpu.memory_space<vmem>>, vector<324x256xf32>
    %117 = arith.truncf %116 : vector<324x256xf32> to vector<324x256xbf16>
    %c0_91 = arith.constant 0 : index
    %c0_92 = arith.constant 0 : index
    %118 = vector.load %arg10[%c0_91, %c0_92] : memref<36x324xbf16, #tpu.memory_space<vmem>>, vector<36x324xbf16>
    %cst_93 = arith.constant dense<0.000000e+00> : vector<36x256xf32>
    %119 = tpu.matmul %118, %117, %cst_93 {dimension_numbers = #tpu.dot_dimension_numbers<[1], [0], [0], [1], [0, 0, 1, 1], [], []>} : vector<36x324xbf16>, vector<324x256xbf16>, vector<36x256xf32> -> vector<36x256xf32>
    %c0_94 = arith.constant 0 : index
    %c0_95 = arith.constant 0 : index
    %120 = vector.load %arg11[%c0_94, %c0_95] : memref<36x1xf32, #tpu.memory_space<vmem>>, vector<36x1xf32>
    %121 = vector.broadcast %120 : vector<36x1xf32> to vector<36x256xf32>
    %122 = arith.addf %119, %121 : vector<36x256xf32>
    %cst_96 = arith.constant 0.000000e+00 : f32
    %123 = vector.broadcast %cst_96 : f32 to vector<36x256xf32>
    %124 = arith.maximumf %122, %123 : vector<36x256xf32>
    %c0_97 = arith.constant 0 : index
    %c0_98 = arith.constant 0 : index
    %125 = vector.load %arg3[%c0_97, %c0_98] : memref<9x256xf32, #tpu.memory_space<vmem>>, vector<1x256xf32>
    %c17_i32_99 = arith.constant 17 : i32
    %126 = tpu.dynamic_rotate %124 by %c17_i32_99 dim 1 : vector<36x256xf32>, i32 -> vector<36x256xf32>
    %127 = vector.broadcast %125 : vector<1x256xf32> to vector<36x256xf32>
    %128 = arith.mulf %126, %127 : vector<36x256xf32>
    %c0_100 = arith.constant 0 : index
    %c0_101 = arith.constant 0 : index
    %129 = vector.load %arg16[%c0_100, %c0_101] : memref<324x256xf32, #tpu.memory_space<vmem>>, vector<36x256xf32>
    tpu.vector_store %arg16[%c0_100, %c0_101], %128 {strides = array<i32>} : memref<324x256xf32, #tpu.memory_space<vmem>>, vector<36x256xf32>,
    %c1_102 = arith.constant 1 : index
    %c0_103 = arith.constant 0 : index
    %130 = vector.load %arg3[%c1_102, %c0_103] : memref<9x256xf32, #tpu.memory_space<vmem>>, vector<1x256xf32>
    %c16_i32_104 = arith.constant 16 : i32
    %131 = tpu.dynamic_rotate %124 by %c16_i32_104 dim 1 : vector<36x256xf32>, i32 -> vector<36x256xf32>
    %132 = vector.broadcast %130 : vector<1x256xf32> to vector<36x256xf32>
    %133 = arith.mulf %131, %132 : vector<36x256xf32>
    %c36_105 = arith.constant 36 : index
    %c0_106 = arith.constant 0 : index
    %134 = vector.load %arg16[%c36_105, %c0_106] : memref<324x256xf32, #tpu.memory_space<vmem>>, vector<36x256xf32>
    tpu.vector_store %arg16[%c36_105, %c0_106], %133 {strides = array<i32>} : memref<324x256xf32, #tpu.memory_space<vmem>>, vector<36x256xf32>,
    %c2_107 = arith.constant 2 : index
    %c0_108 = arith.constant 0 : index
    %135 = vector.load %arg3[%c2_107, %c0_108] : memref<9x256xf32, #tpu.memory_space<vmem>>, vector<1x256xf32>
    %c15_i32_109 = arith.constant 15 : i32
    %136 = tpu.dynamic_rotate %124 by %c15_i32_109 dim 1 : vector<36x256xf32>, i32 -> vector<36x256xf32>
    %137 = vector.broadcast %135 : vector<1x256xf32> to vector<36x256xf32>
    %138 = arith.mulf %136, %137 : vector<36x256xf32>
    %c72_110 = arith.constant 72 : index
    %c0_111 = arith.constant 0 : index
    %139 = vector.load %arg16[%c72_110, %c0_111] : memref<324x256xf32, #tpu.memory_space<vmem>>, vector<36x256xf32>
    tpu.vector_store %arg16[%c72_110, %c0_111], %138 {strides = array<i32>} : memref<324x256xf32, #tpu.memory_space<vmem>>, vector<36x256xf32>,
    %c3_112 = arith.constant 3 : index
    %c0_113 = arith.constant 0 : index
    %140 = vector.load %arg3[%c3_112, %c0_113] : memref<9x256xf32, #tpu.memory_space<vmem>>, vector<1x256xf32>
    %c1_i32_114 = arith.constant 1 : i32
    %141 = tpu.dynamic_rotate %124 by %c1_i32_114 dim 1 : vector<36x256xf32>, i32 -> vector<36x256xf32>
    %142 = vector.broadcast %140 : vector<1x256xf32> to vector<36x256xf32>
    %143 = arith.mulf %141, %142 : vector<36x256xf32>
    %c108_115 = arith.constant 108 : index
    %c0_116 = arith.constant 0 : index
    %144 = vector.load %arg16[%c108_115, %c0_116] : memref<324x256xf32, #tpu.memory_space<vmem>>, vector<36x256xf32>
    tpu.vector_store %arg16[%c108_115, %c0_116], %143 {strides = array<i32>} : memref<324x256xf32, #tpu.memory_space<vmem>>, vector<36x256xf32>,
    %c144_117 = arith.constant 144 : index
    %c0_118 = arith.constant 0 : index
    %145 = vector.load %arg16[%c144_117, %c0_118] : memref<324x256xf32, #tpu.memory_space<vmem>>, vector<36x256xf32>
    tpu.vector_store %arg16[%c144_117, %c0_118], %124 {strides = array<i32>} : memref<324x256xf32, #tpu.memory_space<vmem>>, vector<36x256xf32>,
    %c5_119 = arith.constant 5 : index
    %c0_120 = arith.constant 0 : index
    %146 = vector.load %arg3[%c5_119, %c0_120] : memref<9x256xf32, #tpu.memory_space<vmem>>, vector<1x256xf32>
    %c255_i32_121 = arith.constant 255 : i32
    %147 = tpu.dynamic_rotate %124 by %c255_i32_121 dim 1 : vector<36x256xf32>, i32 -> vector<36x256xf32>
    %148 = vector.broadcast %146 : vector<1x256xf32> to vector<36x256xf32>
    %149 = arith.mulf %147, %148 : vector<36x256xf32>
    %c180_122 = arith.constant 180 : index
    %c0_123 = arith.constant 0 : index
    %150 = vector.load %arg16[%c180_122, %c0_123] : memref<324x256xf32, #tpu.memory_space<vmem>>, vector<36x256xf32>
    tpu.vector_store %arg16[%c180_122, %c0_123], %149 {strides = array<i32>} : memref<324x256xf32, #tpu.memory_space<vmem>>, vector<36x256xf32>,
    %c6_124 = arith.constant 6 : index
    %c0_125 = arith.constant 0 : index
    %151 = vector.load %arg3[%c6_124, %c0_125] : memref<9x256xf32, #tpu.memory_space<vmem>>, vector<1x256xf32>
    %c241_i32_126 = arith.constant 241 : i32
    %152 = tpu.dynamic_rotate %124 by %c241_i32_126 dim 1 : vector<36x256xf32>, i32 -> vector<36x256xf32>
    %153 = vector.broadcast %151 : vector<1x256xf32> to vector<36x256xf32>
    %154 = arith.mulf %152, %153 : vector<36x256xf32>
    %c216_127 = arith.constant 216 : index
    %c0_128 = arith.constant 0 : index
    %155 = vector.load %arg16[%c216_127, %c0_128] : memref<324x256xf32, #tpu.memory_space<vmem>>, vector<36x256xf32>
    tpu.vector_store %arg16[%c216_127, %c0_128], %154 {strides = array<i32>} : memref<324x256xf32, #tpu.memory_space<vmem>>, vector<36x256xf32>,
    %c7_129 = arith.constant 7 : index
    %c0_130 = arith.constant 0 : index
    %156 = vector.load %arg3[%c7_129, %c0_130] : memref<9x256xf32, #tpu.memory_space<vmem>>, vector<1x256xf32>
    %c240_i32_131 = arith.constant 240 : i32
    %157 = tpu.dynamic_rotate %124 by %c240_i32_131 dim 1 : vector<36x256xf32>, i32 -> vector<36x256xf32>
    %158 = vector.broadcast %156 : vector<1x256xf32> to vector<36x256xf32>
    %159 = arith.mulf %157, %158 : vector<36x256xf32>
    %c252_132 = arith.constant 252 : index
    %c0_133 = arith.constant 0 : index
    %160 = vector.load %arg16[%c252_132, %c0_133] : memref<324x256xf32, #tpu.memory_space<vmem>>, vector<36x256xf32>
    tpu.vector_store %arg16[%c252_132, %c0_133], %159 {strides = array<i32>} : memref<324x256xf32, #tpu.memory_space<vmem>>, vector<36x256xf32>,
    %c8_134 = arith.constant 8 : index
    %c0_135 = arith.constant 0 : index
    %161 = vector.load %arg3[%c8_134, %c0_135] : memref<9x256xf32, #tpu.memory_space<vmem>>, vector<1x256xf32>
    %c239_i32_136 = arith.constant 239 : i32
    %162 = tpu.dynamic_rotate %124 by %c239_i32_136 dim 1 : vector<36x256xf32>, i32 -> vector<36x256xf32>
    %163 = vector.broadcast %161 : vector<1x256xf32> to vector<36x256xf32>
    %164 = arith.mulf %162, %163 : vector<36x256xf32>
    %c288_137 = arith.constant 288 : index
    %c0_138 = arith.constant 0 : index
    %165 = vector.load %arg16[%c288_137, %c0_138] : memref<324x256xf32, #tpu.memory_space<vmem>>, vector<36x256xf32>
    tpu.vector_store %arg16[%c288_137, %c0_138], %164 {strides = array<i32>} : memref<324x256xf32, #tpu.memory_space<vmem>>, vector<36x256xf32>,
    %c0_139 = arith.constant 0 : index
    %c0_140 = arith.constant 0 : index
    %166 = vector.load %arg16[%c0_139, %c0_140] : memref<324x256xf32, #tpu.memory_space<vmem>>, vector<324x256xf32>
    %167 = arith.truncf %166 : vector<324x256xf32> to vector<324x256xbf16>
    %c0_141 = arith.constant 0 : index
    %c0_142 = arith.constant 0 : index
    %168 = vector.load %arg12[%c0_141, %c0_142] : memref<32x324xbf16, #tpu.memory_space<vmem>>, vector<32x324xbf16>
    %cst_143 = arith.constant dense<0.000000e+00> : vector<32x256xf32>
    %169 = tpu.matmul %168, %167, %cst_143 {dimension_numbers = #tpu.dot_dimension_numbers<[1], [0], [0], [1], [0, 0, 1, 1], [], []>} : vector<32x324xbf16>, vector<324x256xbf16>, vector<32x256xf32> -> vector<32x256xf32>
    %c0_144 = arith.constant 0 : index
    %c0_145 = arith.constant 0 : index
    %170 = vector.load %arg13[%c0_144, %c0_145] : memref<32x1xf32, #tpu.memory_space<vmem>>, vector<32x1xf32>
    %171 = vector.broadcast %170 : vector<32x1xf32> to vector<32x256xf32>
    %172 = arith.addf %169, %171 : vector<32x256xf32>
    %cst_146 = arith.constant 0.000000e+00 : f32
    %173 = vector.broadcast %cst_146 : f32 to vector<32x256xf32>
    %174 = arith.maximumf %172, %173 : vector<32x256xf32>
    %c0_147 = arith.constant 0 : index
    %c0_148 = arith.constant 0 : index
    %c0_149 = arith.constant 0 : index
    %175 = vector.load %arg14[%c0_147, %c0_148, %c0_149] : memref<1x32x256xf32, #tpu.memory_space<vmem>>, vector<1x32x256xf32>
    %176 = vector.shape_cast %175 : vector<1x32x256xf32> to vector<32x256xf32>
    %177 = vector.shape_cast %174 : vector<32x256xf32> to vector<1x32x256xf32>
    tpu.vector_store %arg14[%c0_147, %c0_148, %c0_149], %177 {strides = array<i32>} : memref<1x32x256xf32, #tpu.memory_space<vmem>>, vector<1x32x256xf32>,
    return
  }
  func.func @transform_0(%arg0: i32) -> (i32, i32, i32) {
    %c0_i32 = arith.constant 0 : i32
    %c0_i32_0 = arith.constant 0 : i32
    %c0_i32_1 = arith.constant 0 : i32
    return %arg0, %c0_i32, %c0_i32_0 : i32, i32, i32
  }
  func.func @transform_1(%arg0: i32) -> (i32, i32, i32) {
    %c0_i32 = arith.constant 0 : i32
    %c0_i32_0 = arith.constant 0 : i32
    %c0_i32_1 = arith.constant 0 : i32
    return %arg0, %c0_i32, %c0_i32_0 : i32, i32, i32
  }
  func.func @transform_2(%arg0: i32) -> (i32, i32) {
    %c0_i32 = arith.constant 0 : i32
    %c0_i32_0 = arith.constant 0 : i32
    %c0_i32_1 = arith.constant 0 : i32
    return %c0_i32, %c0_i32_0 : i32, i32
  }
  func.func @transform_3(%arg0: i32) -> (i32, i32) {
    %c0_i32 = arith.constant 0 : i32
    %c0_i32_0 = arith.constant 0 : i32
    %c0_i32_1 = arith.constant 0 : i32
    return %c0_i32, %c0_i32_0 : i32, i32
  }
  func.func @transform_4(%arg0: i32) -> (i32, i32) {
    %c0_i32 = arith.constant 0 : i32
    %c0_i32_0 = arith.constant 0 : i32
    %c0_i32_1 = arith.constant 0 : i32
    return %c0_i32, %c0_i32_0 : i32, i32
  }
  func.func @transform_5(%arg0: i32) -> (i32, i32) {
    %c0_i32 = arith.constant 0 : i32
    %c0_i32_0 = arith.constant 0 : i32
    %c0_i32_1 = arith.constant 0 : i32
    return %c0_i32, %c0_i32_0 : i32, i32
  }
  func.func @transform_6(%arg0: i32) -> (i32, i32) {
    %c0_i32 = arith.constant 0 : i32
    %c0_i32_0 = arith.constant 0 : i32
    %c0_i32_1 = arith.constant 0 : i32
    return %c0_i32, %c0_i32_0 : i32, i32
  }
  func.func @transform_7(%arg0: i32) -> (i32, i32) {
    %c0_i32 = arith.constant 0 : i32
    %c0_i32_0 = arith.constant 0 : i32
    %c0_i32_1 = arith.constant 0 : i32
    return %c0_i32, %c0_i32_0 : i32, i32
  }
  func.func @transform_8(%arg0: i32) -> (i32, i32) {
    %c0_i32 = arith.constant 0 : i32
    %c0_i32_0 = arith.constant 0 : i32
    %c0_i32_1 = arith.constant 0 : i32
    return %c0_i32, %c0_i32_0 : i32, i32
  }
  func.func @transform_9(%arg0: i32) -> (i32, i32) {
    %c0_i32 = arith.constant 0 : i32
    %c0_i32_0 = arith.constant 0 : i32
    %c0_i32_1 = arith.constant 0 : i32
    return %c0_i32, %c0_i32_0 : i32, i32
  }
  func.func @transform_10(%arg0: i32) -> (i32, i32) {
    %c0_i32 = arith.constant 0 : i32
    %c0_i32_0 = arith.constant 0 : i32
    %c0_i32_1 = arith.constant 0 : i32
    return %c0_i32, %c0_i32_0 : i32, i32
  }
  func.func @transform_11(%arg0: i32) -> (i32, i32) {
    %c0_i32 = arith.constant 0 : i32
    %c0_i32_0 = arith.constant 0 : i32
    %c0_i32_1 = arith.constant 0 : i32
    return %c0_i32, %c0_i32_0 : i32, i32
  }
  func.func @transform_12(%arg0: i32) -> (i32, i32) {
    %c0_i32 = arith.constant 0 : i32
    %c0_i32_0 = arith.constant 0 : i32
    %c0_i32_1 = arith.constant 0 : i32
    return %c0_i32, %c0_i32_0 : i32, i32
  }
  func.func @transform_13(%arg0: i32) -> (i32, i32, i32) {
    %c0_i32 = arith.constant 0 : i32
    %c0_i32_0 = arith.constant 0 : i32
    %c0_i32_1 = arith.constant 0 : i32
    return %arg0, %c0_i32, %c0_i32_0 : i32, i32, i32
  }
  func.func @transform_14(%arg0: i32) -> (i32, i32, i32) {
    %c0_i32 = arith.constant 0 : i32
    %c0_i32_0 = arith.constant 0 : i32
    %c0_i32_1 = arith.constant 0 : i32
    return %arg0, %c0_i32, %c0_i32_0 : i32, i32, i32
  }
}

</mosaic_0001>

<llo_original>
// kernel: tpu_custom_call.1
$region0: #{tpu_custom_call.1}
  #allocation0 [shape = 'u32[]', space=smem, size = 0x4, offset = 0x4, fixed_abs, tag = 'smem constant byte address 0x4 - core index']
  #allocation1 [shape = 'u32[72,128]{1,0:T(1,128)}', space=vmem, size = 0x9000, scoped, tag = 'internal scratch']
  #allocation2 [shape = 'f32[324,256]{1,0:T(8,128)}', space=vmem, size = 0x52000, scoped, tag = 'scratch operand']
  %s0 = inlined_call_operand.hbm [shape: bf16[2,64,256], index: 0, kind: input, shape index: {}]
  %s1 = inlined_call_operand.hbm [shape: f32[2,4,256], index: 1, kind: input, shape index: {}]
  %s2 = inlined_call_operand.hbm [shape: f32[9,256], index: 2, kind: input, shape index: {}]
  %s3 = inlined_call_operand.hbm [shape: bf16[32,64], index: 3, kind: input, shape index: {}]
  %s4 = inlined_call_operand.vmem [shape: f32[32,1], index: 4, kind: input, shape index: {}]
  %s5 = inlined_call_operand.hbm [shape: bf16[32,32], index: 5, kind: input, shape index: {}]
  %s6 = inlined_call_operand.vmem [shape: f32[32,1], index: 6, kind: input, shape index: {}]
  %s7 = inlined_call_operand.vmem [shape: bf16[36,324], index: 7, kind: input, shape index: {}]
  %s8 = inlined_call_operand.vmem [shape: f32[36,1], index: 8, kind: input, shape index: {}]
  %s9 = inlined_call_operand.vmem [shape: bf16[36,324], index: 9, kind: input, shape index: {}]
  %s10 = inlined_call_operand.vmem [shape: f32[36,1], index: 10, kind: input, shape index: {}]
  %s11 = inlined_call_operand.vmem [shape: bf16[32,324], index: 11, kind: input, shape index: {}]
  %s12 = inlined_call_operand.vmem [shape: f32[32,1], index: 12, kind: input, shape index: {}]
  %s13 = inlined_call_operand.hbm [shape: f32[2,32,256], index: 13, kind: output, shape index: {0}]
  %s14 = inlined_call_operand.vmem [shape: f32[2,32,1], index: 14, kind: output, shape index: {1}]
  %15 = xla_tuple %s13, %s14
  %s16 = sld [smem:[#allocation0]]
  $region113: #{tpu_custom_call.1} parent=0
    _
  %s18 = ssub.s32 1, %s16
  %s19 = scalar_select 0, %s18, %s16
  $region1: #{tpu_custom_call.1} parent=0
    #allocation3 [shape = 'u8[65536]{0}', space=vmem, size = 0x10000, scoped, tag = 'input window, operand 0']
    #allocation4 [shape = 's32[2]{0}', space=sflag, size = 0x8, scoped, tag = 'scoped memory for tpu_custom_call.1']
    #allocation5 [shape = 's32[2]{0}', space=sflag, size = 0x8, scoped, tag = 'scoped memory for tpu_custom_call.1']
    #allocation6 [shape = 'u8[8192]{0}', space=vmem, size = 0x2000, scoped, tag = 'input window, operand 1']
    #allocation7 [shape = 's32[2]{0}', space=sflag, size = 0x8, scoped, tag = 'scoped memory for tpu_custom_call.1']
    #allocation8 [shape = 'u8[16384]{0}', space=vmem, size = 0x4000, scoped, tag = 'input window, operand 2, single buffered']
    #allocation9 [shape = 'u8[8192]{0}', space=vmem, size = 0x2000, scoped, tag = 'input window, operand 3, single buffered']
    #allocation10 [shape = 's32[1]{0}', space=sflag, size = 0x4, scoped, tag = 'scoped memory for tpu_custom_call.1']
    #allocation11 [shape = 'u8[8192]{0}', space=vmem, size = 0x2000, scoped, tag = 'input window, operand 5, single buffered']
    #allocation12 [shape = 'u8[65536]{0}', space=vmem, size = 0x10000, scoped, tag = 'output window, operand 0']
    %20 = vsyncpa [#allocation4], 0
    %s21 = scalar_lea.sflag [#allocation4], 1
    %22 = vsyncpa %s21, 0
    %23 = vsyncpa [#allocation7], 0
    %s24 = scalar_lea.sflag [#allocation7], 1
    %25 = vsyncpa %s24, 0
    %26 = vsyncpa [#allocation10], 0
    %27 = vsyncpa [#allocation5], 0
    %s28 = scalar_lea.sflag [#allocation5], 1
    %29 = vsyncpa %s28, 0
    loop: start=0, step=1, limit=4
    $region2: #{tpu_custom_call.1} parent=1 // loop_pre_header
      _
    $region3: #{tpu_custom_call.1} parent=1 // loop_header
      %s31 = sphi 0, %s35
      %p32 = scmp.ge.s32.totalorder %s31, 4
      %s41 = sphi 0, %s43
      %s44 = sphi 0, %s41
      %s45 = sphi 0, %s44
      %s61 = sphi 0, %s45
      %s67 = sphi 0, %s69
      %s70 = sphi 0, %s67
      %s71 = sphi 0, %s70
      %s87 = sphi 0, %s71
      %s91 = sphi 0, %s91
      %s93 = sphi 0, %s91
      %s94 = sphi 0, %s93
      %s108 = sphi 0, %s94
      %s112 = sphi 0, %s112
      %s114 = sphi 0, %s112
      %s115 = sphi 0, %s114
      %s129 = sphi 0, %s115
      %s133 = sphi 0, %s133
      %s135 = sphi 0, %s133
      %s136 = sphi 0, %s135
      %s150 = sphi 0, %s136
      %s154 = sphi 0, %s154
      %s156 = sphi 0, %s154
      %s157 = sphi 0, %s156
      %s171 = sphi 0, %s157
      %s175 = sphi 0, %s175
      %s177 = sphi 0, %s175
      %s178 = sphi 0, %s177
      %s192 = sphi 0, %s178
      %s196 = sphi 0, %s196
      %s198 = sphi 0, %s196
      %s199 = sphi 0, %s198
      %s213 = sphi 0, %s199
      %s217 = sphi 0, %s217
      %s219 = sphi 0, %s217
      %s220 = sphi 0, %s219
      %s234 = sphi 0, %s220
      %s238 = sphi 0, %s238
      %s240 = sphi 0, %s238
      %s241 = sphi 0, %s240
      %s255 = sphi 0, %s241
      %s259 = sphi 0, %s259
      %s261 = sphi 0, %s259
      %s262 = sphi 0, %s261
      %s276 = sphi 0, %s262
      %s280 = sphi 0, %s280
      %s282 = sphi 0, %s280
      %s283 = sphi 0, %s282
      %s297 = sphi 0, %s283
      %s301 = sphi 0, %s301
      %s303 = sphi 0, %s301
      %s304 = sphi 0, %s303
      %s318 = sphi 0, %s304
      %s324 = sphi 0, %s326
      %s327 = sphi 0, %s324
      %s328 = sphi 0, %s327
      %s344 = sphi 0, %s328
      %s350 = sphi 0, %s352
      %s353 = sphi 0, %s350
      %s354 = sphi 0, %s353
      %s370 = sphi 0, %s354
    $region4: #{tpu_custom_call.1} parent=1 // loop_header_branch
      %34 = sbr.rel (%p32) target = $region8
    $region5: #{tpu_custom_call.1} parent=1 // loop_body
      %s36 = ssub.s32 %s31, 1
      %s37 = ssub.s32 %s31, 2
      %s38 = sadd.s32 %s31, 1
      %s39 = ssub.s32 %s31, %s38
      %p40 = scmp.eq.s32.totalorder %s39, 0
      %s42 = sadd.s32 %s41, 1
      %s43 = scalar_select %p40, %s41, %s42
      %p46 = pneg %p40
      %p47 = scmp.eq.s32.totalorder %s31, 1
      %p48 = por %p46, %p47
      %p49 = scmp.ne.s32.totalorder %s41, %s44
      %p50 = scmp.eq.s32.totalorder %s31, 0
      %p51 = por %p49, %p50
      %p52 = scmp.ne.s32.totalorder %s41, %s44
      %p53 = scmp.eq.s32.totalorder %s36, 1
      %p54 = por %p52, %p53
      %p55 = scmp.ne.s32.totalorder %s44, %s45
      %p56 = scmp.eq.s32.totalorder %s36, 0
      %p57 = por %p55, %p56
      %p58 = scmp.ne.s32.totalorder %s44, %s45
      %p59 = scmp.eq.s32.totalorder %s37, 1
      %p60 = por %p58, %p59
      %p62 = scmp.ne.s32.totalorder %s45, %s61
      %p63 = scmp.eq.s32.totalorder %s37, 0
      %p64 = por %p62, %p63
      %s65 = ssub.s32 %s31, %s38
      %p66 = scmp.eq.s32.totalorder %s65, 0
      %s68 = sadd.s32 %s67, 1
      %s69 = scalar_select %p66, %s67, %s68
      %p72 = pneg %p66
      %p73 = scmp.eq.s32.totalorder %s31, 1
      %p74 = por %p72, %p73
      %p75 = scmp.ne.s32.totalorder %s67, %s70
      %p76 = scmp.eq.s32.totalorder %s31, 0
      %p77 = por %p75, %p76
      %p78 = scmp.ne.s32.totalorder %s67, %s70
      %p79 = scmp.eq.s32.totalorder %s36, 1
      %p80 = por %p78, %p79
      %p81 = scmp.ne.s32.totalorder %s70, %s71
      %p82 = scmp.eq.s32.totalorder %s36, 0
      %p83 = por %p81, %p82
      %p84 = scmp.ne.s32.totalorder %s70, %s71
      %p85 = scmp.eq.s32.totalorder %s37, 1
      %p86 = por %p84, %p85
      %p88 = scmp.ne.s32.totalorder %s71, %s87
      %p89 = scmp.eq.s32.totalorder %s37, 0
      %p90 = por %p88, %p89
      %s92 = sadd.s32 %s91, 1
      %p95 = scmp.eq.s32.totalorder %s31, 1
      %p96 = scmp.ne.s32.totalorder %s91, %s93
      %p97 = scmp.eq.s32.totalorder %s31, 0
      %p98 = por %p96, %p97
      %p99 = scmp.ne.s32.totalorder %s91, %s93
      %p100 = scmp.eq.s32.totalorder %s36, 1
      %p101 = por %p99, %p100
      %p102 = scmp.ne.s32.totalorder %s93, %s94
      %p103 = scmp.eq.s32.totalorder %s36, 0
      %p104 = por %p102, %p103
      %p105 = scmp.ne.s32.totalorder %s93, %s94
      %p106 = scmp.eq.s32.totalorder %s37, 1
      %p107 = por %p105, %p106
      %p109 = scmp.ne.s32.totalorder %s94, %s108
      %p110 = scmp.eq.s32.totalorder %s37, 0
      %p111 = por %p109, %p110
      %s113 = sadd.s32 %s112, 1
      %p116 = scmp.eq.s32.totalorder %s31, 1
      %p117 = scmp.ne.s32.totalorder %s112, %s114
      %p118 = scmp.eq.s32.totalorder %s31, 0
      %p119 = por %p117, %p118
      %p120 = scmp.ne.s32.totalorder %s112, %s114
      %p121 = scmp.eq.s32.totalorder %s36, 1
      %p122 = por %p120, %p121
      %p123 = scmp.ne.s32.totalorder %s114, %s115
      %p124 = scmp.eq.s32.totalorder %s36, 0
      %p125 = por %p123, %p124
      %p126 = scmp.ne.s32.totalorder %s114, %s115
      %p127 = scmp.eq.s32.totalorder %s37, 1
      %p128 = por %p126, %p127
      %p130 = scmp.ne.s32.totalorder %s115, %s129
      %p131 = scmp.eq.s32.totalorder %s37, 0
      %p132 = por %p130, %p131
      %s134 = sadd.s32 %s133, 1
      %p137 = scmp.eq.s32.totalorder %s31, 1
      %p138 = scmp.ne.s32.totalorder %s133, %s135
      %p139 = scmp.eq.s32.totalorder %s31, 0
      %p140 = por %p138, %p139
      %p141 = scmp.ne.s32.totalorder %s133, %s135
      %p142 = scmp.eq.s32.totalorder %s36, 1
      %p143 = por %p141, %p142
      %p144 = scmp.ne.s32.totalorder %s135, %s136
      %p145 = scmp.eq.s32.totalorder %s36, 0
      %p146 = por %p144, %p145
      %p147 = scmp.ne.s32.totalorder %s135, %s136
      %p148 = scmp.eq.s32.totalorder %s37, 1
      %p149 = por %p147, %p148
      %p151 = scmp.ne.s32.totalorder %s136, %s150
      %p152 = scmp.eq.s32.totalorder %s37, 0
      %p153 = por %p151, %p152
      %s155 = sadd.s32 %s154, 1
      %p158 = scmp.eq.s32.totalorder %s31, 1
      %p159 = scmp.ne.s32.totalorder %s154, %s156
      %p160 = scmp.eq.s32.totalorder %s31, 0
      %p161 = por %p159, %p160
      %p162 = scmp.ne.s32.totalorder %s154, %s156
      %p163 = scmp.eq.s32.totalorder %s36, 1
      %p164 = por %p162, %p163
      %p165 = scmp.ne.s32.totalorder %s156, %s157
      %p166 = scmp.eq.s32.totalorder %s36, 0
      %p167 = por %p165, %p166
      %p168 = scmp.ne.s32.totalorder %s156, %s157
      %p169 = scmp.eq.s32.totalorder %s37, 1
      %p170 = por %p168, %p169
      %p172 = scmp.ne.s32.totalorder %s157, %s171
      %p173 = scmp.eq.s32.totalorder %s37, 0
      %p174 = por %p172, %p173
      %s176 = sadd.s32 %s175, 1
      %p179 = scmp.eq.s32.totalorder %s31, 1
      %p180 = scmp.ne.s32.totalorder %s175, %s177
      %p181 = scmp.eq.s32.totalorder %s31, 0
      %p182 = por %p180, %p181
      %p183 = scmp.ne.s32.totalorder %s175, %s177
      %p184 = scmp.eq.s32.totalorder %s36, 1
      %p185 = por %p183, %p184
      %p186 = scmp.ne.s32.totalorder %s177, %s178
      %p187 = scmp.eq.s32.totalorder %s36, 0
      %p188 = por %p186, %p187
      %p189 = scmp.ne.s32.totalorder %s177, %s178
      %p190 = scmp.eq.s32.totalorder %s37, 1
      %p191 = por %p189, %p190
      %p193 = scmp.ne.s32.totalorder %s178, %s192
      %p194 = scmp.eq.s32.totalorder %s37, 0
      %p195 = por %p193, %p194
      %s197 = sadd.s32 %s196, 1
      %p200 = scmp.eq.s32.totalorder %s31, 1
      %p201 = scmp.ne.s32.totalorder %s196, %s198
      %p202 = scmp.eq.s32.totalorder %s31, 0
      %p203 = por %p201, %p202
      %p204 = scmp.ne.s32.totalorder %s196, %s198
      %p205 = scmp.eq.s32.totalorder %s36, 1
      %p206 = por %p204, %p205
      %p207 = scmp.ne.s32.totalorder %s198, %s199
      %p208 = scmp.eq.s32.totalorder %s36, 0
      %p209 = por %p207, %p208
      %p210 = scmp.ne.s32.totalorder %s198, %s199
      %p211 = scmp.eq.s32.totalorder %s37, 1
      %p212 = por %p210, %p211
      %p214 = scmp.ne.s32.totalorder %s199, %s213
      %p215 = scmp.eq.s32.totalorder %s37, 0
      %p216 = por %p214, %p215
      %s218 = sadd.s32 %s217, 1
      %p221 = scmp.eq.s32.totalorder %s31, 1
      %p222 = scmp.ne.s32.totalorder %s217, %s219
      %p223 = scmp.eq.s32.totalorder %s31, 0
      %p224 = por %p222, %p223
      %p225 = scmp.ne.s32.totalorder %s217, %s219
      %p226 = scmp.eq.s32.totalorder %s36, 1
      %p227 = por %p225, %p226
      %p228 = scmp.ne.s32.totalorder %s219, %s220
      %p229 = scmp.eq.s32.totalorder %s36, 0
      %p230 = por %p228, %p229
      %p231 = scmp.ne.s32.totalorder %s219, %s220
      %p232 = scmp.eq.s32.totalorder %s37, 1
      %p233 = por %p231, %p232
      %p235 = scmp.ne.s32.totalorder %s220, %s234
      %p236 = scmp.eq.s32.totalorder %s37, 0
      %p237 = por %p235, %p236
      %s239 = sadd.s32 %s238, 1
      %p242 = scmp.eq.s32.totalorder %s31, 1
      %p243 = scmp.ne.s32.totalorder %s238, %s240
      %p244 = scmp.eq.s32.totalorder %s31, 0
      %p245 = por %p243, %p244
      %p246 = scmp.ne.s32.totalorder %s238, %s240
      %p247 = scmp.eq.s32.totalorder %s36, 1
      %p248 = por %p246, %p247
      %p249 = scmp.ne.s32.totalorder %s240, %s241
      %p250 = scmp.eq.s32.totalorder %s36, 0
      %p251 = por %p249, %p250
      %p252 = scmp.ne.s32.totalorder %s240, %s241
      %p253 = scmp.eq.s32.totalorder %s37, 1
      %p254 = por %p252, %p253
      %p256 = scmp.ne.s32.totalorder %s241, %s255
      %p257 = scmp.eq.s32.totalorder %s37, 0
      %p258 = por %p256, %p257
      %s260 = sadd.s32 %s259, 1
      %p263 = scmp.eq.s32.totalorder %s31, 1
      %p264 = scmp.ne.s32.totalorder %s259, %s261
      %p265 = scmp.eq.s32.totalorder %s31, 0
      %p266 = por %p264, %p265
      %p267 = scmp.ne.s32.totalorder %s259, %s261
      %p268 = scmp.eq.s32.totalorder %s36, 1
      %p269 = por %p267, %p268
      %p270 = scmp.ne.s32.totalorder %s261, %s262
      %p271 = scmp.eq.s32.totalorder %s36, 0
      %p272 = por %p270, %p271
      %p273 = scmp.ne.s32.totalorder %s261, %s262
      %p274 = scmp.eq.s32.totalorder %s37, 1
      %p275 = por %p273, %p274
      %p277 = scmp.ne.s32.totalorder %s262, %s276
      %p278 = scmp.eq.s32.totalorder %s37, 0
      %p279 = por %p277, %p278
      %s281 = sadd.s32 %s280, 1
      %p284 = scmp.eq.s32.totalorder %s31, 1
      %p285 = scmp.ne.s32.totalorder %s280, %s282
      %p286 = scmp.eq.s32.totalorder %s31, 0
      %p287 = por %p285, %p286
      %p288 = scmp.ne.s32.totalorder %s280, %s282
      %p289 = scmp.eq.s32.totalorder %s36, 1
      %p290 = por %p288, %p289
      %p291 = scmp.ne.s32.totalorder %s282, %s283
      %p292 = scmp.eq.s32.totalorder %s36, 0
      %p293 = por %p291, %p292
      %p294 = scmp.ne.s32.totalorder %s282, %s283
      %p295 = scmp.eq.s32.totalorder %s37, 1
      %p296 = por %p294, %p295
      %p298 = scmp.ne.s32.totalorder %s283, %s297
      %p299 = scmp.eq.s32.totalorder %s37, 0
      %p300 = por %p298, %p299
      %s302 = sadd.s32 %s301, 1
      %p305 = scmp.eq.s32.totalorder %s31, 1
      %p306 = scmp.ne.s32.totalorder %s301, %s303
      %p307 = scmp.eq.s32.totalorder %s31, 0
      %p308 = por %p306, %p307
      %p309 = scmp.ne.s32.totalorder %s301, %s303
      %p310 = scmp.eq.s32.totalorder %s36, 1
      %p311 = por %p309, %p310
      %p312 = scmp.ne.s32.totalorder %s303, %s304
      %p313 = scmp.eq.s32.totalorder %s36, 0
      %p314 = por %p312, %p313
      %p315 = scmp.ne.s32.totalorder %s303, %s304
      %p316 = scmp.eq.s32.totalorder %s37, 1
      %p317 = por %p315, %p316
      %p319 = scmp.ne.s32.totalorder %s304, %s318
      %p320 = scmp.eq.s32.totalorder %s37, 0
      %p321 = por %p319, %p320
      %s322 = ssub.s32 %s31, %s38
      %p323 = scmp.eq.s32.totalorder %s322, 0
      %s325 = sadd.s32 %s324, 1
      %s326 = scalar_select %p323, %s324, %s325
      %p329 = pneg %p323
      %p330 = scmp.eq.s32.totalorder %s31, 1
      %p331 = por %p329, %p330
      %p332 = scmp.ne.s32.totalorder %s324, %s327
      %p333 = scmp.eq.s32.totalorder %s31, 0
      %p334 = por %p332, %p333
      %p335 = scmp.ne.s32.totalorder %s324, %s327
      %p336 = scmp.eq.s32.totalorder %s36, 1
      %p337 = por %p335, %p336
      %p338 = scmp.ne.s32.totalorder %s327, %s328
      %p339 = scmp.eq.s32.totalorder %s36, 0
      %p340 = por %p338, %p339
      %p341 = scmp.ne.s32.totalorder %s327, %s328
      %p342 = scmp.eq.s32.totalorder %s37, 1
      %p343 = por %p341, %p342
      %p345 = scmp.ne.s32.totalorder %s328, %s344
      %p346 = scmp.eq.s32.totalorder %s37, 0
      %p347 = por %p345, %p346
      %s348 = ssub.s32 %s31, %s38
      %p349 = scmp.eq.s32.totalorder %s348, 0
      %s351 = sadd.s32 %s350, 1
      %s352 = scalar_select %p349, %s350, %s351
      %p355 = pneg %p349
      %p356 = scmp.eq.s32.totalorder %s31, 1
      %p357 = por %p355, %p356
      %p358 = scmp.ne.s32.totalorder %s350, %s353
      %p359 = scmp.eq.s32.totalorder %s31, 0
      %p360 = por %p358, %p359
      %p361 = scmp.ne.s32.totalorder %s350, %s353
      %p362 = scmp.eq.s32.totalorder %s36, 1
      %p363 = por %p361, %p362
      %p364 = scmp.ne.s32.totalorder %s353, %s354
      %p365 = scmp.eq.s32.totalorder %s36, 0
      %p366 = por %p364, %p365
      %p367 = scmp.ne.s32.totalorder %s353, %s354
      %p368 = scmp.eq.s32.totalorder %s37, 1
      %p369 = por %p367, %p368
      %p371 = scmp.ne.s32.totalorder %s354, %s370
      %p372 = scmp.eq.s32.totalorder %s37, 0
      %p373 = por %p371, %p372
      %p374 = scmp.le.s32.totalorder 1, %s31
      %p375 = scmp.lt.s32.totalorder %s31, 3
      %p376 = pnand %p374, %p375
      %p377 = pneg %p376
      // Predicated region
      $region9: #{tpu_custom_call.1} parent=5 // pred_check
        _
      $region10: #{tpu_custom_call.1} parent=5 // pred_check_branch
        %379 = sbr.rel (%p376) target = $region12
      $region11: #{tpu_custom_call.1} parent=5 // pred_region
        %s380 = ssub.s32 %s31, 1
        // Predicated region
        $region13: #{tpu_custom_call.1} parent=11 // pred_check
          %p381 = pneg %p104
        $region14: #{tpu_custom_call.1} parent=11 // pred_check_branch
          %383 = sbr.rel (%p381) target = $region16
        $region15: #{tpu_custom_call.1} parent=11 // pred_region
          %385 = vsyncadd [#allocation7], 0
          %s386 = sshll.u32 %s2, 4
          %s387 = int_to_ptr.hbm [resolvable:$true] %s386
          %s388 = sshll.u32 [#allocation8], 4
          %s389 = int_to_ptr.vmem [resolvable:$true] %s388
          %394 = dma.hbm_to_vmem [thread:$0]  %s387, 512, %s389, [#allocation7], 256, 256, 16
        $region16: #{tpu_custom_call.1} parent=11 // pred_fallthru
          _
        // Predicated region
        $region17: #{tpu_custom_call.1} parent=11 // pred_check
          %p395 = pneg %p125
        $region18: #{tpu_custom_call.1} parent=11 // pred_check_branch
          %397 = sbr.rel (%p395) target = $region20
        $region19: #{tpu_custom_call.1} parent=11 // pred_region
          %399 = vsyncadd [#allocation10], 0
          %s400 = sshll.u32 %s3, 4
          %s401 = int_to_ptr.hbm [resolvable:$true] %s400
          %s402 = sshll.u32 [#allocation9], 4
          %s403 = int_to_ptr.vmem [resolvable:$true] %s402
          %408 = dma.hbm_to_vmem [thread:$0]  %s401, 256, %s403, [#allocation10], 64, 64, 4
        $region20: #{tpu_custom_call.1} parent=11 // pred_fallthru
          _
        // Predicated region
        $region21: #{tpu_custom_call.1} parent=11 // pred_check
          %p409 = pneg %p146
        $region22: #{tpu_custom_call.1} parent=11 // pred_check_branch
          %411 = sbr.rel (%p409) target = $region24
        $region23: #{tpu_custom_call.1} parent=11 // pred_region
          _
        $region24: #{tpu_custom_call.1} parent=11 // pred_fallthru
          _
        // Predicated region
        $region25: #{tpu_custom_call.1} parent=11 // pred_check
          %p412 = pneg %p167
        $region26: #{tpu_custom_call.1} parent=11 // pred_check_branch
          %414 = sbr.rel (%p412) target = $region28
        $region27: #{tpu_custom_call.1} parent=11 // pred_region
          %416 = vsyncadd [#allocation10], 0
          %s417 = sshll.u32 %s5, 4
          %s418 = int_to_ptr.hbm [resolvable:$true] %s417
          %s419 = sshll.u32 [#allocation11], 4
          %s420 = int_to_ptr.vmem [resolvable:$true] %s419
          %425 = dma.hbm_to_vmem [thread:$0]  %s418, 256, %s420, [#allocation10], 64, 64, 4
        $region28: #{tpu_custom_call.1} parent=11 // pred_fallthru
          _
        // Predicated region
        $region29: #{tpu_custom_call.1} parent=11 // pred_check
          %p426 = pneg %p188
        $region30: #{tpu_custom_call.1} parent=11 // pred_check_branch
          %428 = sbr.rel (%p426) target = $region32
        $region31: #{tpu_custom_call.1} parent=11 // pred_region
          _
        $region32: #{tpu_custom_call.1} parent=11 // pred_fallthru
          _
        // Predicated region
        $region33: #{tpu_custom_call.1} parent=11 // pred_check
          %p429 = pneg %p209
        $region34: #{tpu_custom_call.1} parent=11 // pred_check_branch
          %431 = sbr.rel (%p429) target = $region36
        $region35: #{tpu_custom_call.1} parent=11 // pred_region
          _
        $region36: #{tpu_custom_call.1} parent=11 // pred_fallthru
          _
        // Predicated region
        $region37: #{tpu_custom_call.1} parent=11 // pred_check
          %p432 = pneg %p230
        $region38: #{tpu_custom_call.1} parent=11 // pred_check_branch
          %434 = sbr.rel (%p432) target = $region40
        $region39: #{tpu_custom_call.1} parent=11 // pred_region
          _
        $region40: #{tpu_custom_call.1} parent=11 // pred_fallthru
          _
        // Predicated region
        $region41: #{tpu_custom_call.1} parent=11 // pred_check
          %p435 = pneg %p251
        $region42: #{tpu_custom_call.1} parent=11 // pred_check_branch
          %437 = sbr.rel (%p435) target = $region44
        $region43: #{tpu_custom_call.1} parent=11 // pred_region
          _
        $region44: #{tpu_custom_call.1} parent=11 // pred_fallthru
          _
        // Predicated region
        $region45: #{tpu_custom_call.1} parent=11 // pred_check
          %p438 = pneg %p272
        $region46: #{tpu_custom_call.1} parent=11 // pred_check_branch
          %440 = sbr.rel (%p438) target = $region48
        $region47: #{tpu_custom_call.1} parent=11 // pred_region
          _
        $region48: #{tpu_custom_call.1} parent=11 // pred_fallthru
          _
        // Predicated region
        $region49: #{tpu_custom_call.1} parent=11 // pred_check
          %p441 = pneg %p293
        $region50: #{tpu_custom_call.1} parent=11 // pred_check_branch
          %443 = sbr.rel (%p441) target = $region52
        $region51: #{tpu_custom_call.1} parent=11 // pred_region
          _
        $region52: #{tpu_custom_call.1} parent=11 // pred_fallthru
          _
        // Predicated region
        $region53: #{tpu_custom_call.1} parent=11 // pred_check
          %p444 = pneg %p314
        $region54: #{tpu_custom_call.1} parent=11 // pred_check_branch
          %446 = sbr.rel (%p444) target = $region56
        $region55: #{tpu_custom_call.1} parent=11 // pred_region
          _
        $region56: #{tpu_custom_call.1} parent=11 // pred_fallthru
          _
      $region12: #{tpu_custom_call.1} parent=5 // pred_fallthru
        _
      %p447 = scmp.lt.s32.totalorder %s31, 2
      // Predicated region
      $region57: #{tpu_custom_call.1} parent=5 // pred_check
        %p448 = pneg %p447
      $region58: #{tpu_custom_call.1} parent=5 // pred_check_branch
        %450 = sbr.rel (%p448) target = $region60
      $region59: #{tpu_custom_call.1} parent=5 // pred_region
        // Predicated region
        $region61: #{tpu_custom_call.1} parent=59 // pred_check
          %p451 = pneg %p51
        $region62: #{tpu_custom_call.1} parent=59 // pred_check_branch
          %453 = sbr.rel (%p451) target = $region64
        $region63: #{tpu_custom_call.1} parent=59 // pred_region
          %s454 = sand.u32 %s41, 1
          %s455 = scalar_lea.sflag [#allocation4], %s454
          %s456 = sand.u32 %s41, 1
          %s457 = smul.addr %s456, 64
          %s458 = scalar_lea.vmem [#allocation3], %s457
          %460 = vsyncadd %s455, 0
          %s461 = smul.addr %s31, 16
          %s462 = smul.addr %s461, 4
          %s463 = scalar_lea.hbm %s0, %s462
          %s464 = sshll.u32 %s463, 4
          %s465 = int_to_ptr.hbm [resolvable:$true] %s464
          %s466 = sshll.u32 %s458, 4
          %s467 = int_to_ptr.vmem [resolvable:$true] %s466
          %472 = dma.hbm_to_vmem [thread:$0]  %s465, 1024, %s467, %s455, 128, 128, 8
        $region64: #{tpu_custom_call.1} parent=59 // pred_fallthru
          _
        // Predicated region
        $region65: #{tpu_custom_call.1} parent=59 // pred_check
          %p473 = pneg %p77
        $region66: #{tpu_custom_call.1} parent=59 // pred_check_branch
          %475 = sbr.rel (%p473) target = $region68
        $region67: #{tpu_custom_call.1} parent=59 // pred_region
          %s476 = sand.u32 %s31, 1
          %s477 = scalar_lea.sflag [#allocation7], %s476
          %s478 = sand.u32 %s67, 1
          %s479 = smul.addr %s478, 8
          %s480 = scalar_lea.vmem [#allocation6], %s479
          %482 = vsyncadd %s477, 0
          %s483 = smul.addr %s31, 2
          %s484 = smul.addr %s483, 4
          %s485 = scalar_lea.hbm %s1, %s484
          %s487 = sshll.u32 %s485, 4
          %s488 = int_to_ptr.hbm [resolvable:$true] %s487
          %s489 = sshll.u32 %s480, 4
          %s490 = int_to_ptr.vmem [resolvable:$true] %s489
          %492 = dma.hbm_to_vmem [thread:$0]  %s488, 128, %s490, %s477
        $region68: #{tpu_custom_call.1} parent=59 // pred_fallthru
          _
      $region60: #{tpu_custom_call.1} parent=5 // pred_fallthru
        _
      %p493 = scmp.le.s32.totalorder 1, %s31
      %p494 = scmp.lt.s32.totalorder %s31, 3
      %p495 = pnand %p493, %p494
      %p496 = pneg %p495
      // Predicated region
      $region69: #{tpu_custom_call.1} parent=5 // pred_check
        _
      $region70: #{tpu_custom_call.1} parent=5 // pred_check_branch
        %498 = sbr.rel (%p495) target = $region72
      $region71: #{tpu_custom_call.1} parent=5 // pred_region
        %s499 = ssub.s32 %s31, 1
        %s500 = sand.u32 %s44, 1
        %s501 = scalar_lea.sflag [#allocation4], %s500
        %s502 = sand.u32 %s44, 1
        %s503 = smul.addr %s502, 64
        %s504 = scalar_lea.vmem [#allocation3], %s503
        // Predicated region
        $region73: #{tpu_custom_call.1} parent=71 // pred_check
          %p505 = pneg %p57
        $region74: #{tpu_custom_call.1} parent=71 // pred_check_branch
          %507 = sbr.rel (%p505) target = $region76
        $region75: #{tpu_custom_call.1} parent=71 // pred_region
          %509 = dma.done %s501, 1024
        $region76: #{tpu_custom_call.1} parent=71 // pred_fallthru
          _
        %s510 = sand.u32 %s36, 1
        %s511 = scalar_lea.sflag [#allocation7], %s510
        %s512 = sand.u32 %s70, 1
        %s513 = smul.addr %s512, 8
        %s514 = scalar_lea.vmem [#allocation6], %s513
        // Predicated region
        $region77: #{tpu_custom_call.1} parent=71 // pred_check
          %p515 = pneg %p83
        $region78: #{tpu_custom_call.1} parent=71 // pred_check_branch
          %517 = sbr.rel (%p515) target = $region80
        $region79: #{tpu_custom_call.1} parent=71 // pred_region
          %519 = dma.done %s511, 128
        $region80: #{tpu_custom_call.1} parent=71 // pred_fallthru
          _
        // Predicated region
        $region81: #{tpu_custom_call.1} parent=71 // pred_check
          %p520 = pneg %p104
        $region82: #{tpu_custom_call.1} parent=71 // pred_check_branch
          %522 = sbr.rel (%p520) target = $region84
        $region83: #{tpu_custom_call.1} parent=71 // pred_region
          %524 = dma.done [#allocation7], 512
        $region84: #{tpu_custom_call.1} parent=71 // pred_fallthru
          _
        // Predicated region
        $region85: #{tpu_custom_call.1} parent=71 // pred_check
          %p525 = pneg %p125
        $region86: #{tpu_custom_call.1} parent=71 // pred_check_branch
          %527 = sbr.rel (%p525) target = $region88
        $region87: #{tpu_custom_call.1} parent=71 // pred_region
          %529 = dma.done [#allocation10], 256
        $region88: #{tpu_custom_call.1} parent=71 // pred_fallthru
          _
        // Predicated region
        $region89: #{tpu_custom_call.1} parent=71 // pred_check
          %p530 = pneg %p167
        $region90: #{tpu_custom_call.1} parent=71 // pred_check_branch
          %532 = sbr.rel (%p530) target = $region92
        $region91: #{tpu_custom_call.1} parent=71 // pred_region
          %534 = dma.done [#allocation10], 256
        $region92: #{tpu_custom_call.1} parent=71 // pred_fallthru
          _
        %s535 = sand.u32 %s44, 1
        %s536 = scalar_lea.sflag [#allocation4], %s535
        %s537 = sand.u32 %s44, 1
        %s538 = smul.addr %s537, 64
        %s539 = scalar_lea.vmem [#allocation3], %s538
        %p540 = pneg %p57
        %p541 = pneg %p54
        %s542 = sand.u32 %s36, 1
        %s543 = scalar_lea.sflag [#allocation7], %s542
        %s544 = sand.u32 %s70, 1
        %s545 = smul.addr %s544, 8
        %s546 = scalar_lea.vmem [#allocation6], %s545
        %p547 = pneg %p83
        %p548 = pneg %p80
        %p549 = pneg %p104
        %p550 = pneg %p101
        %p551 = pneg %p125
        %p552 = pneg %p122
        %p553 = pneg %p146
        %p554 = pneg %p143
        %p555 = pneg %p167
        %p556 = pneg %p164
        %p557 = pneg %p188
        %p558 = pneg %p185
        %p559 = pneg %p209
        %p560 = pneg %p206
        %p561 = pneg %p230
        %p562 = pneg %p227
        %p563 = pneg %p251
        %p564 = pneg %p248
        %p565 = pneg %p272
        %p566 = pneg %p269
        %p567 = pneg %p293
        %p568 = pneg %p290
        %p569 = pneg %p314
        %p570 = pneg %p311
        %p571 = pneg %p340
        %p572 = pneg %p337
        %s573 = sand.u32 %s327, 1
        %s574 = scalar_lea.sflag [#allocation5], %s573
        %s575 = sand.u32 %s327, 1
        %s576 = smul.addr %s575, 64
        %s577 = scalar_lea.vmem [#allocation12], %s576
        %p578 = pneg %p366
        %p579 = pneg %p363
        %p580 = scmp.lt.s32.totalorder %s36, 1
        %s581 = scalar_select %p580, %s36, 1
        %s582 = smul.addr %s581, 4
        %s583 = smul.addr %s582, 8
        %s584 = scalar_lea.vmem %s14, %s583
        %p585 = scmp.lt.s32.totalorder %s36, 1
        %s586 = scalar_select %p585, %s36, 1
        %s587 = smul.addr %s586, 4
        %s588 = smul.addr %s587, 8
        %s589 = scalar_lea.vmem %s14, %s588
        %v591 = vld [vmem:[%s504] sm:$0xff]
        %v592 = vld [vmem:[%s504 + $0x8] sm:$0xff]
        %v593 = vld [vmem:[%s504 + $0x10] sm:$0xff]
        %v594 = vld [vmem:[%s504 + $0x18] sm:$0xff]
        %v595 = vld [vmem:[%s504 + $0x20] sm:$0xff]
        %v596 = vld [vmem:[%s504 + $0x28] sm:$0xff]
        %v597 = vld [vmem:[%s504 + $0x30] sm:$0xff]
        %v598 = vld [vmem:[%s504 + $0x38] sm:$0xff]
        %v599 = vld [vmem:[#allocation9] sm:$0xf]
        %v600 = vld [vmem:[#allocation9 + $0x4] sm:$0xf]
        %v601 = vld [vmem:[#allocation9 + $0x8] sm:$0xf]
        %v602 = vld [vmem:[#allocation9 + $0xc] sm:$0xf]
        %v603 = vld [vmem:[%s4] sm:$0xff]
        %v604 = vld [vmem:[%s4 + $0x8] sm:$0xff]
        %v605 = vld [vmem:[%s4 + $0x10] sm:$0xff]
        %v606 = vld [vmem:[%s4 + $0x18] sm:$0xff]
        %608 = vset.pattern.permute.xlu0 0
        %609 = vperm.xlu0 %608, %v603
        %v610 = vpop.permute.xlu0 %609
        %613 = vset.pattern.permute.xlu0 0
        %614 = vperm.xlu0 %613, %v604
        %v615 = vpop.permute.xlu0 %614
        %618 = vset.pattern.permute.xlu0 0
        %619 = vperm.xlu0 %618, %v605
        %v620 = vpop.permute.xlu0 %619
        %623 = vset.pattern.permute.xlu0 0
        %624 = vperm.xlu0 %623, %v606
        %v625 = vpop.permute.xlu0 %624
        %v631 = vunpack.c.l.b16 %v599
        %v632 = vunpack.c.l.b16 %v600
        %v633 = vunpack.c.l.b16 %v601
        %v634 = vunpack.c.l.b16 %v602
        %v635 = vpack.c.b16 %v632, %v631
        %v636 = vpack.c.b16 %v634, %v633
        %v645 = vunpack.c.l.b16 %v591
        %v646 = vunpack.c.h.b16 %v591
        %v647 = vunpack.c.l.b16 %v592
        %v648 = vunpack.c.h.b16 %v592
        %v649 = vunpack.c.l.b16 %v593
        %v650 = vunpack.c.h.b16 %v593
        %v651 = vunpack.c.l.b16 %v594
        %v652 = vunpack.c.h.b16 %v594
        %v653 = vunpack.c.l.b16 %v595
        %v654 = vunpack.c.h.b16 %v595
        %v655 = vunpack.c.l.b16 %v596
        %v656 = vunpack.c.h.b16 %v596
        %v657 = vunpack.c.l.b16 %v597
        %v658 = vunpack.c.h.b16 %v597
        %v659 = vunpack.c.l.b16 %v598
        %v660 = vunpack.c.h.b16 %v598
        %v661 = vpack.c.b16 %v647, %v645
        %v662 = vpack.c.b16 %v648, %v646
        %v663 = vpack.c.b16 %v651, %v649
        %v664 = vpack.c.b16 %v652, %v650
        %v665 = vpack.c.b16 %v655, %v653
        %v666 = vpack.c.b16 %v656, %v654
        %v667 = vpack.c.b16 %v659, %v657
        %v668 = vpack.c.b16 %v660, %v658
        %vm677 = vcmask 523264
        %v679 = vsel %vm677, %v635, 0
        %v682 = vsel %vm677, %v636, 0
        %684 = vmatpush.bf16.msra.mxu0 0
        %685 = vmatpush.bf16.msra.mxu0 0
        %686 = vmatpush.bf16.msra.mxu0 0
        %687 = vmatpush.bf16.msra.mxu0 0
        %688 = vmatpush.bf16.msra.mxu0 %v667
        %689 = vmatpush.bf16.msra.mxu0 %v665
        %690 = vmatpush.bf16.msra.mxu0 %v663
        %691 = vmatpush.bf16.msra.mxu0 %v661
        %692 = vmatmul.bf16.gmra.mxu0 %v679
        %v693 = vpop.f32.mrf.mxu0
        %v694 = vadd.f32 %v610, %v693
        %v695 = vpop.f32.mrf.mxu0
        %v696 = vadd.f32 %v615, %v695
        %697 = vmatmul.bf16.gmra.mxu0 %v682
        %v698 = vpop.f32.mrf.mxu0
        %v699 = vadd.f32 %v620, %v698
        %v700 = vpop.f32.mrf.mxu0
        %v701 = vadd.f32 %v625, %v700
        %702 = vdwg.mxu0
        %703 = vmatpush.bf16.msra.mxu0 0
        %704 = vmatpush.bf16.msra.mxu0 0
        %705 = vmatpush.bf16.msra.mxu0 0
        %706 = vmatpush.bf16.msra.mxu0 0
        %707 = vmatpush.bf16.msra.mxu0 %v668
        %708 = vmatpush.bf16.msra.mxu0 %v666
        %709 = vmatpush.bf16.msra.mxu0 %v664
        %710 = vmatpush.bf16.msra.mxu0 %v662
        %711 = vmatmul.bf16.gmra.mxu0 %v679
        %v712 = vpop.f32.mrf.mxu0
        %v713 = vadd.f32 %v610, %v712
        %v714 = vpop.f32.mrf.mxu0
        %v715 = vadd.f32 %v615, %v714
        %716 = vmatmul.bf16.gmra.mxu0 %v682
        %v717 = vpop.f32.mrf.mxu0
        %v718 = vadd.f32 %v620, %v717
        %v719 = vpop.f32.mrf.mxu0
        %v720 = vadd.f32 %v625, %v719
        %721 = vdwg.mxu0
        %v722 = vmax.f32 %v694, 0.0
        %v723 = vmax.f32 %v713, 0.0
        %v724 = vmax.f32 %v696, 0.0
        %v725 = vmax.f32 %v715, 0.0
        %v726 = vmax.f32 %v699, 0.0
        %v727 = vmax.f32 %v718, 0.0
        %v728 = vmax.f32 %v701, 0.0
        %v729 = vmax.f32 %v720, 0.0
        %v730 = vld [vmem:[#allocation11] sm:$0xf]
        %v731 = vld [vmem:[#allocation11 + $0x4] sm:$0xf]
        %v732 = vld [vmem:[#allocation11 + $0x8] sm:$0xf]
        %v733 = vld [vmem:[#allocation11 + $0xc] sm:$0xf]
        %v734 = vpack.c.bf16 %v724, %v722
        %v735 = vpack.c.bf16 %v725, %v723
        %v736 = vpack.c.bf16 %v728, %v726
        %v737 = vpack.c.bf16 %v729, %v727
        %v738 = vld [vmem:[%s6] sm:$0xff]
        %v739 = vld [vmem:[%s6 + $0x8] sm:$0xff]
        %v740 = vld [vmem:[%s6 + $0x10] sm:$0xff]
        %v741 = vld [vmem:[%s6 + $0x18] sm:$0xff]
        %743 = vset.pattern.permute.xlu0 0
        %744 = vperm.xlu0 %743, %v738
        %v745 = vpop.permute.xlu0 %744
        %748 = vset.pattern.permute.xlu0 0
        %749 = vperm.xlu0 %748, %v739
        %v750 = vpop.permute.xlu0 %749
        %753 = vset.pattern.permute.xlu0 0
        %754 = vperm.xlu0 %753, %v740
        %v755 = vpop.permute.xlu0 %754
        %758 = vset.pattern.permute.xlu0 0
        %759 = vperm.xlu0 %758, %v741
        %v760 = vpop.permute.xlu0 %759
        %v766 = vunpack.c.l.b16 %v730
        %v767 = vunpack.c.l.b16 %v731
        %v768 = vunpack.c.l.b16 %v732
        %v769 = vunpack.c.l.b16 %v733
        %v770 = vpack.c.b16 %v767, %v766
        %v771 = vpack.c.b16 %v769, %v768
        %vm772 = vcmask 261120
        %v774 = vsel %vm772, %v770, 0
        %v777 = vsel %vm772, %v771, 0
        %779 = vmatpush.bf16.msra.mxu0 0
        %780 = vmatpush.bf16.msra.mxu0 0
        %781 = vmatpush.bf16.msra.mxu0 0
        %782 = vmatpush.bf16.msra.mxu0 0
        %783 = vmatpush.bf16.msra.mxu0 0
        %784 = vmatpush.bf16.msra.mxu0 0
        %785 = vmatpush.bf16.msra.mxu0 %v736
        %786 = vmatpush.bf16.msra.mxu0 %v734
        %787 = vmatmul.bf16.gmra.mxu0 %v774
        %v788 = vpop.f32.mrf.mxu0
        %v789 = vadd.f32 %v745, %v788
        %v790 = vpop.f32.mrf.mxu0
        %v791 = vadd.f32 %v750, %v790
        %792 = vmatmul.bf16.gmra.mxu0 %v777
        %v793 = vpop.f32.mrf.mxu0
        %v794 = vadd.f32 %v755, %v793
        %v795 = vpop.f32.mrf.mxu0
        %v796 = vadd.f32 %v760, %v795
        %797 = vdwg.mxu0
        %798 = vmatpush.bf16.msra.mxu0 0
        %799 = vmatpush.bf16.msra.mxu0 0
        %800 = vmatpush.bf16.msra.mxu0 0
        %801 = vmatpush.bf16.msra.mxu0 0
        %802 = vmatpush.bf16.msra.mxu0 0
        %803 = vmatpush.bf16.msra.mxu0 0
        %804 = vmatpush.bf16.msra.mxu0 %v737
        %805 = vmatpush.bf16.msra.mxu0 %v735
        %806 = vmatmul.bf16.gmra.mxu0 %v774
        %v807 = vpop.f32.mrf.mxu0
        %v808 = vadd.f32 %v745, %v807
        %v809 = vpop.f32.mrf.mxu0
        %v810 = vadd.f32 %v750, %v809
        %811 = vmatmul.bf16.gmra.mxu0 %v777
        %v812 = vpop.f32.mrf.mxu0
        %v813 = vadd.f32 %v755, %v812
        %v814 = vpop.f32.mrf.mxu0
        %v815 = vadd.f32 %v760, %v814
        %816 = vdwg.mxu0
        %v817 = vadd.f32 %v789, %v808
        %818 = vadd.xlane.f32.xlu0 %v817
        %v819 = vpop.xlane.xlu0 %818
        %v820 = vadd.f32 %v791, %v810
        %821 = vadd.xlane.f32.xlu0 %v820
        %v822 = vpop.xlane.xlu0 %821
        %v823 = vadd.f32 %v794, %v813
        %824 = vadd.xlane.f32.xlu0 %v823
        %v825 = vpop.xlane.xlu0 %824
        %v826 = vadd.f32 %v796, %v815
        %827 = vadd.xlane.f32.xlu0 %v826
        %v828 = vpop.xlane.xlu0 %827
        %v829 = vmul.f32 %v819, 0.00390625
        %v830 = vmul.f32 %v822, 0.00390625
        %v831 = vmul.f32 %v825, 0.00390625
        %v832 = vmul.f32 %v828, 0.00390625
        %vm833 = vcmask 7168
        %834 = vst.msk [vmem:[%s589] sm:$0xff] %vm833, %v829
        %835 = vst.msk [vmem:[%s589 + $0x8] sm:$0xff] %vm833, %v830
        %836 = vst.msk [vmem:[%s589 + $0x10] sm:$0xff] %vm833, %v831
        %837 = vst.msk [vmem:[%s589 + $0x18] sm:$0xff] %vm833, %v832
        %v838 = vld [vmem:[%s514] sm:$0xff]
        %840 = vst [vmem:[#allocation1] ss:$2 sm:$0xff] %v838
        %v841 = vld.sshfl [vmem:[#allocation1] sm:$0xff pattern:$0x75316420]
        %v842 = vld.sshfl [vmem:[#allocation1 + $0x8] sm:$0xff pattern:$0x75316420]
        %v845 = vld [vmem:[#allocation8] ss:$8 sm:$0x3]
        %846 = vrot.lane.b32.xlu0 %v789, 17
        %v847 = vpop.permute.xlu0 %846
        %848 = vrot.lane.b32.xlu0 %v791, 17
        %v849 = vpop.permute.xlu0 %848
        %850 = vrot.lane.b32.xlu0 %v794, 17
        %v851 = vpop.permute.xlu0 %850
        %852 = vrot.lane.b32.xlu0 %v796, 17
        %v853 = vpop.permute.xlu0 %852
        %854 = vrot.lane.b32.xlu0 %v841, 17
        %v855 = vpop.permute.xlu0 %854
        %856 = vrot.lane.b32.xlu0 %v808, 17
        %v857 = vpop.permute.xlu0 %856
        %858 = vrot.lane.b32.xlu0 %v810, 17
        %v859 = vpop.permute.xlu0 %858
        %860 = vrot.lane.b32.xlu0 %v813, 17
        %v861 = vpop.permute.xlu0 %860
        %862 = vrot.lane.b32.xlu0 %v815, 17
        %v863 = vpop.permute.xlu0 %862
        %864 = vrot.lane.b32.xlu0 %v842, 17
        %v865 = vpop.permute.xlu0 %864
        %v866 = vlaneseq
        %v867 = vand.u32 %v866, 127
        %vm868 = vcmp.lt.s32.totalorder %v867, 17
        %v869 = vsel %vm868, %v847, %v857
        %v870 = vsel %vm868, %v849, %v859
        %v871 = vsel %vm868, %v851, %v861
        %v872 = vsel %vm868, %v853, %v863
        %v873 = vsel %vm868, %v855, %v865
        %v874 = vsel %vm868, %v857, %v847
        %v875 = vsel %vm868, %v859, %v849
        %v876 = vsel %vm868, %v861, %v851
        %v877 = vsel %vm868, %v863, %v853
        %v878 = vsel %vm868, %v865, %v855
        %v880 = vperm.slane %v845, 0
        %v881 = vperm.slane %v845, 1
        %v884 = vmul.f32 %v874, %v880
        %v885 = vmul.f32 %v869, %v881
        %v886 = vmul.f32 %v875, %v880
        %v887 = vmul.f32 %v870, %v881
        %v888 = vmul.f32 %v876, %v880
        %v889 = vmul.f32 %v871, %v881
        %v890 = vmul.f32 %v877, %v880
        %v891 = vmul.f32 %v872, %v881
        %v892 = vmul.f32 %v878, %v880
        %v893 = vmul.f32 %v873, %v881
        %894 = vst [vmem:[#allocation2] sm:$0xff] %v884
        %895 = vst [vmem:[#allocation2 + $0x8] sm:$0xff] %v885
        %896 = vst [vmem:[#allocation2 + $0x10] sm:$0xff] %v886
        %897 = vst [vmem:[#allocation2 + $0x18] sm:$0xff] %v887
        %898 = vst [vmem:[#allocation2 + $0x20] sm:$0xff] %v888
        %899 = vst [vmem:[#allocation2 + $0x28] sm:$0xff] %v889
        %900 = vst [vmem:[#allocation2 + $0x30] sm:$0xff] %v890
        %901 = vst [vmem:[#allocation2 + $0x38] sm:$0xff] %v891
        %902 = vst [vmem:[#allocation2 + $0x40] sm:$0xf] %v892
        %903 = vst [vmem:[#allocation2 + $0x48] sm:$0xf] %v893
        %s904 = scalar_lea.vmem [#allocation8], 1
        %v905 = vld [vmem:[%s904] ss:$8 sm:$0x3]
        %906 = vrot.lane.b32.xlu0 %v789, 16
        %v907 = vpop.permute.xlu0 %906
        %908 = vrot.lane.b32.xlu0 %v791, 16
        %v909 = vpop.permute.xlu0 %908
        %910 = vrot.lane.b32.xlu0 %v794, 16
        %v911 = vpop.permute.xlu0 %910
        %912 = vrot.lane.b32.xlu0 %v796, 16
        %v913 = vpop.permute.xlu0 %912
        %914 = vrot.lane.b32.xlu0 %v841, 16
        %v915 = vpop.permute.xlu0 %914
        %916 = vrot.lane.b32.xlu0 %v808, 16
        %v917 = vpop.permute.xlu0 %916
        %918 = vrot.lane.b32.xlu0 %v810, 16
        %v919 = vpop.permute.xlu0 %918
        %920 = vrot.lane.b32.xlu0 %v813, 16
        %v921 = vpop.permute.xlu0 %920
        %922 = vrot.lane.b32.xlu0 %v815, 16
        %v923 = vpop.permute.xlu0 %922
        %924 = vrot.lane.b32.xlu0 %v842, 16
        %v925 = vpop.permute.xlu0 %924
        %vm926 = vcmp.lt.s32.totalorder %v867, 16
        %v927 = vsel %vm926, %v907, %v917
        %v928 = vsel %vm926, %v909, %v919
        %v929 = vsel %vm926, %v911, %v921
        %v930 = vsel %vm926, %v913, %v923
        %v931 = vsel %vm926, %v915, %v925
        %v932 = vsel %vm926, %v917, %v907
        %v933 = vsel %vm926, %v919, %v909
        %v934 = vsel %vm926, %v921, %v911
        %v935 = vsel %vm926, %v923, %v913
        %v936 = vsel %vm926, %v925, %v915
        %v938 = vperm.slane %v905, 0
        %v939 = vperm.slane %v905, 1
        %v942 = vmul.f32 %v932, %v938
        %v943 = vmul.f32 %v927, %v939
        %v944 = vmul.f32 %v933, %v938
        %v945 = vmul.f32 %v928, %v939
        %v946 = vmul.f32 %v934, %v938
        %v947 = vmul.f32 %v929, %v939
        %v948 = vmul.f32 %v935, %v938
        %v949 = vmul.f32 %v930, %v939
        %v950 = vmul.f32 %v936, %v938
        %v951 = vmul.f32 %v931, %v939
        %vm962 = vcmask 1043456
        %v963 = vrot.slane %v942, 4
        %v964 = vrot.slane %v943, 4
        %v965 = vrot.slane %v944, 4
        %v966 = vsel %vm962, %v963, %v965
        %v967 = vrot.slane %v945, 4
        %v968 = vsel %vm962, %v964, %v967
        %v969 = vrot.slane %v946, 4
        %v970 = vsel %vm962, %v965, %v969
        %v971 = vrot.slane %v947, 4
        %v972 = vsel %vm962, %v967, %v971
        %v973 = vrot.slane %v948, 4
        %v974 = vsel %vm962, %v969, %v973
        %v975 = vrot.slane %v949, 4
        %v976 = vsel %vm962, %v971, %v975
        %v977 = vrot.slane %v950, 4
        %v978 = vsel %vm962, %v973, %v977
        %v979 = vrot.slane %v951, 4
        %v980 = vsel %vm962, %v975, %v979
        %991 = vst [vmem:[#allocation2 + $0x40] sm:$0xf0] %v963
        %992 = vst [vmem:[#allocation2 + $0x48] sm:$0xf0] %v964
        %993 = vst [vmem:[#allocation2 + $0x50] sm:$0xff] %v966
        %994 = vst [vmem:[#allocation2 + $0x58] sm:$0xff] %v968
        %995 = vst [vmem:[#allocation2 + $0x60] sm:$0xff] %v970
        %996 = vst [vmem:[#allocation2 + $0x68] sm:$0xff] %v972
        %997 = vst [vmem:[#allocation2 + $0x70] sm:$0xff] %v974
        %998 = vst [vmem:[#allocation2 + $0x78] sm:$0xff] %v976
        %999 = vst [vmem:[#allocation2 + $0x80] sm:$0xff] %v978
        %1000 = vst [vmem:[#allocation2 + $0x88] sm:$0xff] %v980
        %s1001 = scalar_lea.vmem [#allocation8], 2
        %v1002 = vld [vmem:[%s1001] ss:$8 sm:$0x3]
        %1003 = vrot.lane.b32.xlu0 %v789, 15
        %v1004 = vpop.permute.xlu0 %1003
        %1005 = vrot.lane.b32.xlu0 %v791, 15
        %v1006 = vpop.permute.xlu0 %1005
        %1007 = vrot.lane.b32.xlu0 %v794, 15
        %v1008 = vpop.permute.xlu0 %1007
        %1009 = vrot.lane.b32.xlu0 %v796, 15
        %v1010 = vpop.permute.xlu0 %1009
        %1011 = vrot.lane.b32.xlu0 %v841, 15
        %v1012 = vpop.permute.xlu0 %1011
        %1013 = vrot.lane.b32.xlu0 %v808, 15
        %v1014 = vpop.permute.xlu0 %1013
        %1015 = vrot.lane.b32.xlu0 %v810, 15
        %v1016 = vpop.permute.xlu0 %1015
        %1017 = vrot.lane.b32.xlu0 %v813, 15
        %v1018 = vpop.permute.xlu0 %1017
        %1019 = vrot.lane.b32.xlu0 %v815, 15
        %v1020 = vpop.permute.xlu0 %1019
        %1021 = vrot.lane.b32.xlu0 %v842, 15
        %v1022 = vpop.permute.xlu0 %1021
        %vm1023 = vcmp.lt.s32.totalorder %v867, 15
        %v1024 = vsel %vm1023, %v1004, %v1014
        %v1025 = vsel %vm1023, %v1006, %v1016
        %v1026 = vsel %vm1023, %v1008, %v1018
        %v1027 = vsel %vm1023, %v1010, %v1020
        %v1028 = vsel %vm1023, %v1012, %v1022
        %v1029 = vsel %vm1023, %v1014, %v1004
        %v1030 = vsel %vm1023, %v1016, %v1006
        %v1031 = vsel %vm1023, %v1018, %v1008
        %v1032 = vsel %vm1023, %v1020, %v1010
        %v1033 = vsel %vm1023, %v1022, %v1012
        %v1035 = vperm.slane %v1002, 0
        %v1036 = vperm.slane %v1002, 1
        %v1039 = vmul.f32 %v1029, %v1035
        %v1040 = vmul.f32 %v1024, %v1036
        %v1041 = vmul.f32 %v1030, %v1035
        %v1042 = vmul.f32 %v1025, %v1036
        %v1043 = vmul.f32 %v1031, %v1035
        %v1044 = vmul.f32 %v1026, %v1036
        %v1045 = vmul.f32 %v1032, %v1035
        %v1046 = vmul.f32 %v1027, %v1036
        %v1047 = vmul.f32 %v1033, %v1035
        %v1048 = vmul.f32 %v1028, %v1036
        %1049 = vst [vmem:[#allocation2 + $0x90] sm:$0xff] %v1039
        %1050 = vst [vmem:[#allocation2 + $0x98] sm:$0xff] %v1040
        %1051 = vst [vmem:[#allocation2 + $0xa0] sm:$0xff] %v1041
        %1052 = vst [vmem:[#allocation2 + $0xa8] sm:$0xff] %v1042
        %1053 = vst [vmem:[#allocation2 + $0xb0] sm:$0xff] %v1043
        %1054 = vst [vmem:[#allocation2 + $0xb8] sm:$0xff] %v1044
        %1055 = vst [vmem:[#allocation2 + $0xc0] sm:$0xff] %v1045
        %1056 = vst [vmem:[#allocation2 + $0xc8] sm:$0xff] %v1046
        %1057 = vst [vmem:[#allocation2 + $0xd0] sm:$0xf] %v1047
        %1058 = vst [vmem:[#allocation2 + $0xd8] sm:$0xf] %v1048
        %s1059 = scalar_lea.vmem [#allocation8], 3
        %v1060 = vld [vmem:[%s1059] ss:$8 sm:$0x3]
        %1061 = vrot.lane.b32.xlu0 %v789, 1
        %v1062 = vpop.permute.xlu0 %1061
        %1063 = vrot.lane.b32.xlu0 %v791, 1
        %v1064 = vpop.permute.xlu0 %1063
        %1065 = vrot.lane.b32.xlu0 %v794, 1
        %v1066 = vpop.permute.xlu0 %1065
        %1067 = vrot.lane.b32.xlu0 %v796, 1
        %v1068 = vpop.permute.xlu0 %1067
        %1069 = vrot.lane.b32.xlu0 %v841, 1
        %v1070 = vpop.permute.xlu0 %1069
        %1071 = vrot.lane.b32.xlu0 %v808, 1
        %v1072 = vpop.permute.xlu0 %1071
        %1073 = vrot.lane.b32.xlu0 %v810, 1
        %v1074 = vpop.permute.xlu0 %1073
        %1075 = vrot.lane.b32.xlu0 %v813, 1
        %v1076 = vpop.permute.xlu0 %1075
        %1077 = vrot.lane.b32.xlu0 %v815, 1
        %v1078 = vpop.permute.xlu0 %1077
        %1079 = vrot.lane.b32.xlu0 %v842, 1
        %v1080 = vpop.permute.xlu0 %1079
        %vm1081 = vcmp.lt.s32.totalorder %v867, 1
        %v1082 = vsel %vm1081, %v1062, %v1072
        %v1083 = vsel %vm1081, %v1064, %v1074
        %v1084 = vsel %vm1081, %v1066, %v1076
        %v1085 = vsel %vm1081, %v1068, %v1078
        %v1086 = vsel %vm1081, %v1070, %v1080
        %v1087 = vsel %vm1081, %v1072, %v1062
        %v1088 = vsel %vm1081, %v1074, %v1064
        %v1089 = vsel %vm1081, %v1076, %v1066
        %v1090 = vsel %vm1081, %v1078, %v1068
        %v1091 = vsel %vm1081, %v1080, %v1070
        %v1093 = vperm.slane %v1060, 0
        %v1094 = vperm.slane %v1060, 1
        %v1097 = vmul.f32 %v1087, %v1093
        %v1098 = vmul.f32 %v1082, %v1094
        %v1099 = vmul.f32 %v1088, %v1093
        %v1100 = vmul.f32 %v1083, %v1094
        %v1101 = vmul.f32 %v1089, %v1093
        %v1102 = vmul.f32 %v1084, %v1094
        %v1103 = vmul.f32 %v1090, %v1093
        %v1104 = vmul.f32 %v1085, %v1094
        %v1105 = vmul.f32 %v1091, %v1093
        %v1106 = vmul.f32 %v1086, %v1094
        %v1117 = vrot.slane %v1097, 4
        %v1118 = vrot.slane %v1098, 4
        %v1119 = vrot.slane %v1099, 4
        %v1120 = vsel %vm962, %v1117, %v1119
        %v1121 = vrot.slane %v1100, 4
        %v1122 = vsel %vm962, %v1118, %v1121
        %v1123 = vrot.slane %v1101, 4
        %v1124 = vsel %vm962, %v1119, %v1123
        %v1125 = vrot.slane %v1102, 4
        %v1126 = vsel %vm962, %v1121, %v1125
        %v1127 = vrot.slane %v1103, 4
        %v1128 = vsel %vm962, %v1123, %v1127
        %v1129 = vrot.slane %v1104, 4
        %v1130 = vsel %vm962, %v1125, %v1129
        %v1131 = vrot.slane %v1105, 4
        %v1132 = vsel %vm962, %v1127, %v1131
        %v1133 = vrot.slane %v1106, 4
        %v1134 = vsel %vm962, %v1129, %v1133
        %1145 = vst [vmem:[#allocation2 + $0xd0] sm:$0xf0] %v1117
        %1146 = vst [vmem:[#allocation2 + $0xd8] sm:$0xf0] %v1118
        %1147 = vst [vmem:[#allocation2 + $0xe0] sm:$0xff] %v1120
        %1148 = vst [vmem:[#allocation2 + $0xe8] sm:$0xff] %v1122
        %1149 = vst [vmem:[#allocation2 + $0xf0] sm:$0xff] %v1124
        %1150 = vst [vmem:[#allocation2 + $0xf8] sm:$0xff] %v1126
        %1151 = vst [vmem:[#allocation2 + $0x100] sm:$0xff] %v1128
        %1152 = vst [vmem:[#allocation2 + $0x108] sm:$0xff] %v1130
        %1153 = vst [vmem:[#allocation2 + $0x110] sm:$0xff] %v1132
        %1154 = vst [vmem:[#allocation2 + $0x118] sm:$0xff] %v1134
        %1155 = vst [vmem:[#allocation2 + $0x120] sm:$0xff] %v789
        %1156 = vst [vmem:[#allocation2 + $0x128] sm:$0xff] %v808
        %1157 = vst [vmem:[#allocation2 + $0x130] sm:$0xff] %v791
        %1158 = vst [vmem:[#allocation2 + $0x138] sm:$0xff] %v810
        %1159 = vst [vmem:[#allocation2 + $0x140] sm:$0xff] %v794
        %1160 = vst [vmem:[#allocation2 + $0x148] sm:$0xff] %v813
        %1161 = vst [vmem:[#allocation2 + $0x150] sm:$0xff] %v796
        %1162 = vst [vmem:[#allocation2 + $0x158] sm:$0xff] %v815
        %1163 = vst [vmem:[#allocation2 + $0x160] sm:$0xf] %v841
        %1164 = vst [vmem:[#allocation2 + $0x168] sm:$0xf] %v842
        %s1165 = scalar_lea.vmem [#allocation8], 5
        %v1166 = vld [vmem:[%s1165] ss:$8 sm:$0x3]
        %1167 = vrot.lane.b32.xlu0 %v789, 127
        %v1168 = vpop.permute.xlu0 %1167
        %1169 = vrot.lane.b32.xlu0 %v791, 127
        %v1170 = vpop.permute.xlu0 %1169
        %1171 = vrot.lane.b32.xlu0 %v794, 127
        %v1172 = vpop.permute.xlu0 %1171
        %1173 = vrot.lane.b32.xlu0 %v796, 127
        %v1174 = vpop.permute.xlu0 %1173
        %1175 = vrot.lane.b32.xlu0 %v841, 127
        %v1176 = vpop.permute.xlu0 %1175
        %1177 = vrot.lane.b32.xlu0 %v808, 127
        %v1178 = vpop.permute.xlu0 %1177
        %1179 = vrot.lane.b32.xlu0 %v810, 127
        %v1180 = vpop.permute.xlu0 %1179
        %1181 = vrot.lane.b32.xlu0 %v813, 127
        %v1182 = vpop.permute.xlu0 %1181
        %1183 = vrot.lane.b32.xlu0 %v815, 127
        %v1184 = vpop.permute.xlu0 %1183
        %1185 = vrot.lane.b32.xlu0 %v842, 127
        %v1186 = vpop.permute.xlu0 %1185
        %vm1187 = vcmp.lt.s32.totalorder %v867, 127
        %v1188 = vsel %vm1187, %v1168, %v1178
        %v1189 = vsel %vm1187, %v1170, %v1180
        %v1190 = vsel %vm1187, %v1172, %v1182
        %v1191 = vsel %vm1187, %v1174, %v1184
        %v1192 = vsel %vm1187, %v1176, %v1186
        %v1193 = vsel %vm1187, %v1178, %v1168
        %v1194 = vsel %vm1187, %v1180, %v1170
        %v1195 = vsel %vm1187, %v1182, %v1172
        %v1196 = vsel %vm1187, %v1184, %v1174
        %v1197 = vsel %vm1187, %v1186, %v1176
        %v1199 = vperm.slane %v1166, 0
        %v1200 = vperm.slane %v1166, 1
        %v1203 = vmul.f32 %v1188, %v1199
        %v1204 = vmul.f32 %v1193, %v1200
        %v1205 = vmul.f32 %v1189, %v1199
        %v1206 = vmul.f32 %v1194, %v1200
        %v1207 = vmul.f32 %v1190, %v1199
        %v1208 = vmul.f32 %v1195, %v1200
        %v1209 = vmul.f32 %v1191, %v1199
        %v1210 = vmul.f32 %v1196, %v1200
        %v1211 = vmul.f32 %v1192, %v1199
        %v1212 = vmul.f32 %v1197, %v1200
        %v1223 = vrot.slane %v1203, 4
        %v1224 = vrot.slane %v1204, 4
        %v1225 = vrot.slane %v1205, 4
        %v1226 = vsel %vm962, %v1223, %v1225
        %v1227 = vrot.slane %v1206, 4
        %v1228 = vsel %vm962, %v1224, %v1227
        %v1229 = vrot.slane %v1207, 4
        %v1230 = vsel %vm962, %v1225, %v1229
        %v1231 = vrot.slane %v1208, 4
        %v1232 = vsel %vm962, %v1227, %v1231
        %v1233 = vrot.slane %v1209, 4
        %v1234 = vsel %vm962, %v1229, %v1233
        %v1235 = vrot.slane %v1210, 4
        %v1236 = vsel %vm962, %v1231, %v1235
        %v1237 = vrot.slane %v1211, 4
        %v1238 = vsel %vm962, %v1233, %v1237
        %v1239 = vrot.slane %v1212, 4
        %v1240 = vsel %vm962, %v1235, %v1239
        %1251 = vst [vmem:[#allocation2 + $0x160] sm:$0xf0] %v1223
        %1252 = vst [vmem:[#allocation2 + $0x168] sm:$0xf0] %v1224
        %1253 = vst [vmem:[#allocation2 + $0x170] sm:$0xff] %v1226
        %1254 = vst [vmem:[#allocation2 + $0x178] sm:$0xff] %v1228
        %1255 = vst [vmem:[#allocation2 + $0x180] sm:$0xff] %v1230
        %1256 = vst [vmem:[#allocation2 + $0x188] sm:$0xff] %v1232
        %1257 = vst [vmem:[#allocation2 + $0x190] sm:$0xff] %v1234
        %1258 = vst [vmem:[#allocation2 + $0x198] sm:$0xff] %v1236
        %1259 = vst [vmem:[#allocation2 + $0x1a0] sm:$0xff] %v1238
        %1260 = vst [vmem:[#allocation2 + $0x1a8] sm:$0xff] %v1240
        %s1261 = scalar_lea.vmem [#allocation8], 6
        %v1262 = vld [vmem:[%s1261] ss:$8 sm:$0x3]
        %1263 = vrot.lane.b32.xlu0 %v789, 113
        %v1264 = vpop.permute.xlu0 %1263
        %1265 = vrot.lane.b32.xlu0 %v791, 113
        %v1266 = vpop.permute.xlu0 %1265
        %1267 = vrot.lane.b32.xlu0 %v794, 113
        %v1268 = vpop.permute.xlu0 %1267
        %1269 = vrot.lane.b32.xlu0 %v796, 113
        %v1270 = vpop.permute.xlu0 %1269
        %1271 = vrot.lane.b32.xlu0 %v841, 113
        %v1272 = vpop.permute.xlu0 %1271
        %1273 = vrot.lane.b32.xlu0 %v808, 113
        %v1274 = vpop.permute.xlu0 %1273
        %1275 = vrot.lane.b32.xlu0 %v810, 113
        %v1276 = vpop.permute.xlu0 %1275
        %1277 = vrot.lane.b32.xlu0 %v813, 113
        %v1278 = vpop.permute.xlu0 %1277
        %1279 = vrot.lane.b32.xlu0 %v815, 113
        %v1280 = vpop.permute.xlu0 %1279
        %1281 = vrot.lane.b32.xlu0 %v842, 113
        %v1282 = vpop.permute.xlu0 %1281
        %vm1283 = vcmp.lt.s32.totalorder %v867, 113
        %v1284 = vsel %vm1283, %v1264, %v1274
        %v1285 = vsel %vm1283, %v1266, %v1276
        %v1286 = vsel %vm1283, %v1268, %v1278
        %v1287 = vsel %vm1283, %v1270, %v1280
        %v1288 = vsel %vm1283, %v1272, %v1282
        %v1289 = vsel %vm1283, %v1274, %v1264
        %v1290 = vsel %vm1283, %v1276, %v1266
        %v1291 = vsel %vm1283, %v1278, %v1268
        %v1292 = vsel %vm1283, %v1280, %v1270
        %v1293 = vsel %vm1283, %v1282, %v1272
        %v1295 = vperm.slane %v1262, 0
        %v1296 = vperm.slane %v1262, 1
        %v1299 = vmul.f32 %v1284, %v1295
        %v1300 = vmul.f32 %v1289, %v1296
        %v1301 = vmul.f32 %v1285, %v1295
        %v1302 = vmul.f32 %v1290, %v1296
        %v1303 = vmul.f32 %v1286, %v1295
        %v1304 = vmul.f32 %v1291, %v1296
        %v1305 = vmul.f32 %v1287, %v1295
        %v1306 = vmul.f32 %v1292, %v1296
        %v1307 = vmul.f32 %v1288, %v1295
        %v1308 = vmul.f32 %v1293, %v1296
        %1309 = vst [vmem:[#allocation2 + $0x1b0] sm:$0xff] %v1299
        %1310 = vst [vmem:[#allocation2 + $0x1b8] sm:$0xff] %v1300
        %1311 = vst [vmem:[#allocation2 + $0x1c0] sm:$0xff] %v1301
        %1312 = vst [vmem:[#allocation2 + $0x1c8] sm:$0xff] %v1302
        %1313 = vst [vmem:[#allocation2 + $0x1d0] sm:$0xff] %v1303
        %1314 = vst [vmem:[#allocation2 + $0x1d8] sm:$0xff] %v1304
        %1315 = vst [vmem:[#allocation2 + $0x1e0] sm:$0xff] %v1305
        %1316 = vst [vmem:[#allocation2 + $0x1e8] sm:$0xff] %v1306
        %1317 = vst [vmem:[#allocation2 + $0x1f0] sm:$0xf] %v1307
        %1318 = vst [vmem:[#allocation2 + $0x1f8] sm:$0xf] %v1308
        %s1319 = scalar_lea.vmem [#allocation8], 7
        %v1320 = vld [vmem:[%s1319] ss:$8 sm:$0x3]
        %1321 = vrot.lane.b32.xlu0 %v789, 112
        %v1322 = vpop.permute.xlu0 %1321
        %1323 = vrot.lane.b32.xlu0 %v791, 112
        %v1324 = vpop.permute.xlu0 %1323
        %1325 = vrot.lane.b32.xlu0 %v794, 112
        %v1326 = vpop.permute.xlu0 %1325
        %1327 = vrot.lane.b32.xlu0 %v796, 112
        %v1328 = vpop.permute.xlu0 %1327
        %1329 = vrot.lane.b32.xlu0 %v841, 112
        %v1330 = vpop.permute.xlu0 %1329
        %1331 = vrot.lane.b32.xlu0 %v808, 112
        %v1332 = vpop.permute.xlu0 %1331
        %1333 = vrot.lane.b32.xlu0 %v810, 112
        %v1334 = vpop.permute.xlu0 %1333
        %1335 = vrot.lane.b32.xlu0 %v813, 112
        %v1336 = vpop.permute.xlu0 %1335
        %1337 = vrot.lane.b32.xlu0 %v815, 112
        %v1338 = vpop.permute.xlu0 %1337
        %1339 = vrot.lane.b32.xlu0 %v842, 112
        %v1340 = vpop.permute.xlu0 %1339
        %vm1341 = vcmp.lt.s32.totalorder %v867, 112
        %v1342 = vsel %vm1341, %v1322, %v1332
        %v1343 = vsel %vm1341, %v1324, %v1334
        %v1344 = vsel %vm1341, %v1326, %v1336
        %v1345 = vsel %vm1341, %v1328, %v1338
        %v1346 = vsel %vm1341, %v1330, %v1340
        %v1347 = vsel %vm1341, %v1332, %v1322
        %v1348 = vsel %vm1341, %v1334, %v1324
        %v1349 = vsel %vm1341, %v1336, %v1326
        %v1350 = vsel %vm1341, %v1338, %v1328
        %v1351 = vsel %vm1341, %v1340, %v1330
        %v1353 = vperm.slane %v1320, 0
        %v1354 = vperm.slane %v1320, 1
        %v1357 = vmul.f32 %v1342, %v1353
        %v1358 = vmul.f32 %v1347, %v1354
        %v1359 = vmul.f32 %v1343, %v1353
        %v1360 = vmul.f32 %v1348, %v1354
        %v1361 = vmul.f32 %v1344, %v1353
        %v1362 = vmul.f32 %v1349, %v1354
        %v1363 = vmul.f32 %v1345, %v1353
        %v1364 = vmul.f32 %v1350, %v1354
        %v1365 = vmul.f32 %v1346, %v1353
        %v1366 = vmul.f32 %v1351, %v1354
        %v1377 = vrot.slane %v1357, 4
        %v1378 = vrot.slane %v1358, 4
        %v1379 = vrot.slane %v1359, 4
        %v1380 = vsel %vm962, %v1377, %v1379
        %v1381 = vrot.slane %v1360, 4
        %v1382 = vsel %vm962, %v1378, %v1381
        %v1383 = vrot.slane %v1361, 4
        %v1384 = vsel %vm962, %v1379, %v1383
        %v1385 = vrot.slane %v1362, 4
        %v1386 = vsel %vm962, %v1381, %v1385
        %v1387 = vrot.slane %v1363, 4
        %v1388 = vsel %vm962, %v1383, %v1387
        %v1389 = vrot.slane %v1364, 4
        %v1390 = vsel %vm962, %v1385, %v1389
        %v1391 = vrot.slane %v1365, 4
        %v1392 = vsel %vm962, %v1387, %v1391
        %v1393 = vrot.slane %v1366, 4
        %v1394 = vsel %vm962, %v1389, %v1393
        %1405 = vst [vmem:[#allocation2 + $0x1f0] sm:$0xf0] %v1377
        %1406 = vst [vmem:[#allocation2 + $0x1f8] sm:$0xf0] %v1378
        %1407 = vst [vmem:[#allocation2 + $0x200] sm:$0xff] %v1380
        %1408 = vst [vmem:[#allocation2 + $0x208] sm:$0xff] %v1382
        %1409 = vst [vmem:[#allocation2 + $0x210] sm:$0xff] %v1384
        %1410 = vst [vmem:[#allocation2 + $0x218] sm:$0xff] %v1386
        %1411 = vst [vmem:[#allocation2 + $0x220] sm:$0xff] %v1388
        %1412 = vst [vmem:[#allocation2 + $0x228] sm:$0xff] %v1390
        %1413 = vst [vmem:[#allocation2 + $0x230] sm:$0xff] %v1392
        %1414 = vst [vmem:[#allocation2 + $0x238] sm:$0xff] %v1394
        %s1415 = scalar_lea.vmem [#allocation8], 16
        %v1416 = vld [vmem:[%s1415] ss:$8 sm:$0x3]
        %1417 = vrot.lane.b32.xlu0 %v789, 111
        %v1418 = vpop.permute.xlu0 %1417
        %1419 = vrot.lane.b32.xlu0 %v791, 111
        %v1420 = vpop.permute.xlu0 %1419
        %1421 = vrot.lane.b32.xlu0 %v794, 111
        %v1422 = vpop.permute.xlu0 %1421
        %1423 = vrot.lane.b32.xlu0 %v796, 111
        %v1424 = vpop.permute.xlu0 %1423
        %1425 = vrot.lane.b32.xlu0 %v841, 111
        %v1426 = vpop.permute.xlu0 %1425
        %1427 = vrot.lane.b32.xlu0 %v808, 111
        %v1428 = vpop.permute.xlu0 %1427
        %1429 = vrot.lane.b32.xlu0 %v810, 111
        %v1430 = vpop.permute.xlu0 %1429
        %1431 = vrot.lane.b32.xlu0 %v813, 111
        %v1432 = vpop.permute.xlu0 %1431
        %1433 = vrot.lane.b32.xlu0 %v815, 111
        %v1434 = vpop.permute.xlu0 %1433
        %1435 = vrot.lane.b32.xlu0 %v842, 111
        %v1436 = vpop.permute.xlu0 %1435
        %vm1437 = vcmp.lt.s32.totalorder %v867, 111
        %v1438 = vsel %vm1437, %v1418, %v1428
        %v1439 = vsel %vm1437, %v1420, %v1430
        %v1440 = vsel %vm1437, %v1422, %v1432
        %v1441 = vsel %vm1437, %v1424, %v1434
        %v1442 = vsel %vm1437, %v1426, %v1436
        %v1443 = vsel %vm1437, %v1428, %v1418
        %v1444 = vsel %vm1437, %v1430, %v1420
        %v1445 = vsel %vm1437, %v1432, %v1422
        %v1446 = vsel %vm1437, %v1434, %v1424
        %v1447 = vsel %vm1437, %v1436, %v1426
        %v1449 = vperm.slane %v1416, 0
        %v1450 = vperm.slane %v1416, 1
        %v1453 = vmul.f32 %v1438, %v1449
        %v1454 = vmul.f32 %v1443, %v1450
        %v1455 = vmul.f32 %v1439, %v1449
        %v1456 = vmul.f32 %v1444, %v1450
        %v1457 = vmul.f32 %v1440, %v1449
        %v1458 = vmul.f32 %v1445, %v1450
        %v1459 = vmul.f32 %v1441, %v1449
        %v1460 = vmul.f32 %v1446, %v1450
        %v1461 = vmul.f32 %v1442, %v1449
        %v1462 = vmul.f32 %v1447, %v1450
        %1463 = vst [vmem:[#allocation2 + $0x240] sm:$0xff] %v1453
        %1464 = vst [vmem:[#allocation2 + $0x248] sm:$0xff] %v1454
        %1465 = vst [vmem:[#allocation2 + $0x250] sm:$0xff] %v1455
        %1466 = vst [vmem:[#allocation2 + $0x258] sm:$0xff] %v1456
        %1467 = vst [vmem:[#allocation2 + $0x260] sm:$0xff] %v1457
        %1468 = vst [vmem:[#allocation2 + $0x268] sm:$0xff] %v1458
        %1469 = vst [vmem:[#allocation2 + $0x270] sm:$0xff] %v1459
        %1470 = vst [vmem:[#allocation2 + $0x278] sm:$0xff] %v1460
        %1471 = vst [vmem:[#allocation2 + $0x280] sm:$0xf] %v1461
        %1472 = vst [vmem:[#allocation2 + $0x288] sm:$0xf] %v1462
        %v1473 = vld [vmem:[#allocation2] sm:$0xff]
        %v1474 = vld [vmem:[#allocation2 + $0x8] sm:$0xff]
        %v1475 = vld [vmem:[#allocation2 + $0x10] sm:$0xff]
        %v1476 = vld [vmem:[#allocation2 + $0x18] sm:$0xff]
        %v1477 = vld [vmem:[#allocation2 + $0x20] sm:$0xff]
        %v1478 = vld [vmem:[#allocation2 + $0x28] sm:$0xff]
        %v1479 = vld [vmem:[#allocation2 + $0x30] sm:$0xff]
        %v1480 = vld [vmem:[#allocation2 + $0x38] sm:$0xff]
        %v1481 = vld [vmem:[#allocation2 + $0x40] sm:$0xff]
        %v1482 = vld [vmem:[#allocation2 + $0x48] sm:$0xff]
        %v1483 = vld [vmem:[#allocation2 + $0x50] sm:$0xff]
        %v1484 = vld [vmem:[#allocation2 + $0x58] sm:$0xff]
        %v1485 = vld [vmem:[#allocation2 + $0x60] sm:$0xff]
        %v1486 = vld [vmem:[#allocation2 + $0x68] sm:$0xff]
        %v1487 = vld [vmem:[#allocation2 + $0x70] sm:$0xff]
        %v1488 = vld [vmem:[#allocation2 + $0x78] sm:$0xff]
        %v1489 = vld [vmem:[#allocation2 + $0x80] sm:$0xff]
        %v1490 = vld [vmem:[#allocation2 + $0x88] sm:$0xff]
        %v1491 = vld [vmem:[#allocation2 + $0x90] sm:$0xff]
        %v1492 = vld [vmem:[#allocation2 + $0x98] sm:$0xff]
        %v1493 = vld [vmem:[#allocation2 + $0xa0] sm:$0xff]
        %v1494 = vld [vmem:[#allocation2 + $0xa8] sm:$0xff]
        %v1495 = vld [vmem:[#allocation2 + $0xb0] sm:$0xff]
        %v1496 = vld [vmem:[#allocation2 + $0xb8] sm:$0xff]
        %v1497 = vld [vmem:[#allocation2 + $0xc0] sm:$0xff]
        %v1498 = vld [vmem:[#allocation2 + $0xc8] sm:$0xff]
        %v1499 = vld [vmem:[#allocation2 + $0xd0] sm:$0xff]
        %v1500 = vld [vmem:[#allocation2 + $0xd8] sm:$0xff]
        %v1501 = vld [vmem:[#allocation2 + $0xe0] sm:$0xff]
        %v1502 = vld [vmem:[#allocation2 + $0xe8] sm:$0xff]
        %v1503 = vld [vmem:[#allocation2 + $0xf0] sm:$0xff]
        %v1504 = vld [vmem:[#allocation2 + $0xf8] sm:$0xff]
        %v1505 = vld [vmem:[#allocation2 + $0x100] sm:$0xff]
        %v1506 = vld [vmem:[#allocation2 + $0x108] sm:$0xff]
        %v1507 = vld [vmem:[#allocation2 + $0x110] sm:$0xff]
        %v1508 = vld [vmem:[#allocation2 + $0x118] sm:$0xff]
        %v1509 = vld [vmem:[#allocation2 + $0x120] sm:$0xff]
        %v1510 = vld [vmem:[#allocation2 + $0x128] sm:$0xff]
        %v1511 = vld [vmem:[#allocation2 + $0x130] sm:$0xff]
        %v1512 = vld [vmem:[#allocation2 + $0x138] sm:$0xff]
        %v1513 = vld [vmem:[#allocation2 + $0x140] sm:$0xff]
        %v1514 = vld [vmem:[#allocation2 + $0x148] sm:$0xff]
        %v1515 = vld [vmem:[#allocation2 + $0x150] sm:$0xff]
        %v1516 = vld [vmem:[#allocation2 + $0x158] sm:$0xff]
        %v1517 = vld [vmem:[#allocation2 + $0x160] sm:$0xff]
        %v1518 = vld [vmem:[#allocation2 + $0x168] sm:$0xff]
        %v1519 = vld [vmem:[#allocation2 + $0x170] sm:$0xff]
        %v1520 = vld [vmem:[#allocation2 + $0x178] sm:$0xff]
        %v1521 = vld [vmem:[#allocation2 + $0x180] sm:$0xff]
        %v1522 = vld [vmem:[#allocation2 + $0x188] sm:$0xff]
        %v1523 = vld [vmem:[#allocation2 + $0x190] sm:$0xff]
        %v1524 = vld [vmem:[#allocation2 + $0x198] sm:$0xff]
        %v1525 = vld [vmem:[#allocation2 + $0x1a0] sm:$0xff]
        %v1526 = vld [vmem:[#allocation2 + $0x1a8] sm:$0xff]
        %v1527 = vld [vmem:[#allocation2 + $0x1b0] sm:$0xff]
        %v1528 = vld [vmem:[#allocation2 + $0x1b8] sm:$0xff]
        %v1529 = vld [vmem:[#allocation2 + $0x1c0] sm:$0xff]
        %v1530 = vld [vmem:[#allocation2 + $0x1c8] sm:$0xff]
        %v1531 = vld [vmem:[#allocation2 + $0x1d0] sm:$0xff]
        %v1532 = vld [vmem:[#allocation2 + $0x1d8] sm:$0xff]
        %v1533 = vld [vmem:[#allocation2 + $0x1e0] sm:$0xff]
        %v1534 = vld [vmem:[#allocation2 + $0x1e8] sm:$0xff]
        %v1535 = vld [vmem:[#allocation2 + $0x1f0] sm:$0xff]
        %v1536 = vld [vmem:[#allocation2 + $0x1f8] sm:$0xff]
        %v1537 = vld [vmem:[#allocation2 + $0x200] sm:$0xff]
        %v1538 = vld [vmem:[#allocation2 + $0x208] sm:$0xff]
        %v1539 = vld [vmem:[#allocation2 + $0x210] sm:$0xff]
        %v1540 = vld [vmem:[#allocation2 + $0x218] sm:$0xff]
        %v1541 = vld [vmem:[#allocation2 + $0x220] sm:$0xff]
        %v1542 = vld [vmem:[#allocation2 + $0x228] sm:$0xff]
        %v1543 = vld [vmem:[#allocation2 + $0x230] sm:$0xff]
        %v1544 = vld [vmem:[#allocation2 + $0x238] sm:$0xff]
        %v1545 = vld [vmem:[#allocation2 + $0x240] sm:$0xff]
        %v1546 = vld [vmem:[#allocation2 + $0x248] sm:$0xff]
        %v1547 = vld [vmem:[#allocation2 + $0x250] sm:$0xff]
        %v1548 = vld [vmem:[#allocation2 + $0x258] sm:$0xff]
        %v1549 = vld [vmem:[#allocation2 + $0x260] sm:$0xff]
        %v1550 = vld [vmem:[#allocation2 + $0x268] sm:$0xff]
        %v1551 = vld [vmem:[#allocation2 + $0x270] sm:$0xff]
        %v1552 = vld [vmem:[#allocation2 + $0x278] sm:$0xff]
        %v1553 = vld [vmem:[#allocation2 + $0x280] sm:$0xf]
        %v1554 = vld [vmem:[#allocation2 + $0x288] sm:$0xf]
        %v1555 = vpack.c.bf16 %v1475, %v1473
        %v1556 = vpack.c.bf16 %v1476, %v1474
        %v1557 = vpack.c.bf16 %v1479, %v1477
        %v1558 = vpack.c.bf16 %v1480, %v1478
        %v1559 = vpack.c.bf16 %v1483, %v1481
        %v1560 = vpack.c.bf16 %v1484, %v1482
        %v1561 = vpack.c.bf16 %v1487, %v1485
        %v1562 = vpack.c.bf16 %v1488, %v1486
        %v1563 = vpack.c.bf16 %v1491, %v1489
        %v1564 = vpack.c.bf16 %v1492, %v1490
        %v1565 = vpack.c.bf16 %v1495, %v1493
        %v1566 = vpack.c.bf16 %v1496, %v1494
        %v1567 = vpack.c.bf16 %v1499, %v1497
        %v1568 = vpack.c.bf16 %v1500, %v1498
        %v1569 = vpack.c.bf16 %v1503, %v1501
        %v1570 = vpack.c.bf16 %v1504, %v1502
        %v1571 = vpack.c.bf16 %v1507, %v1505
        %v1572 = vpack.c.bf16 %v1508, %v1506
        %v1573 = vpack.c.bf16 %v1511, %v1509
        %v1574 = vpack.c.bf16 %v1512, %v1510
        %v1575 = vpack.c.bf16 %v1515, %v1513
        %v1576 = vpack.c.bf16 %v1516, %v1514
        %v1577 = vpack.c.bf16 %v1519, %v1517
        %v1578 = vpack.c.bf16 %v1520, %v1518
        %v1579 = vpack.c.bf16 %v1523, %v1521
        %v1580 = vpack.c.bf16 %v1524, %v1522
        %v1581 = vpack.c.bf16 %v1527, %v1525
        %v1582 = vpack.c.bf16 %v1528, %v1526
        %v1583 = vpack.c.bf16 %v1531, %v1529
        %v1584 = vpack.c.bf16 %v1532, %v1530
        %v1585 = vpack.c.bf16 %v1535, %v1533
        %v1586 = vpack.c.bf16 %v1536, %v1534
        %v1587 = vpack.c.bf16 %v1539, %v1537
        %v1588 = vpack.c.bf16 %v1540, %v1538
        %v1589 = vpack.c.bf16 %v1543, %v1541
        %v1590 = vpack.c.bf16 %v1544, %v1542
        %v1591 = vpack.c.bf16 %v1547, %v1545
        %v1592 = vpack.c.bf16 %v1548, %v1546
        %v1593 = vpack.c.bf16 %v1551, %v1549
        %v1594 = vpack.c.bf16 %v1552, %v1550
        %v1595 = vpack.c.bf16 %v1553, %v1553
        %v1596 = vpack.c.bf16 %v1554, %v1554
        %v1597 = vld [vmem:[%s7] sm:$0xff]
        %v1598 = vld [vmem:[%s7 + $0x8] sm:$0xf]
        %v1599 = vld [vmem:[%s7 + $0xc] sm:$0xff]
        %v1600 = vld [vmem:[%s7 + $0x14] sm:$0xf]
        %v1601 = vld [vmem:[%s7 + $0x18] sm:$0xff]
        %v1602 = vld [vmem:[%s7 + $0x20] sm:$0xf]
        %v1603 = vld [vmem:[%s7 + $0x24] sm:$0xff]
        %v1604 = vld [vmem:[%s7 + $0x2c] sm:$0xf]
        %v1605 = vld [vmem:[%s7 + $0x30] sm:$0x33]
        %v1606 = vld [vmem:[%s7 + $0x38] sm:$0x3]
        %v1607 = vld [vmem:[%s8] sm:$0xff]
        %v1608 = vld [vmem:[%s8 + $0x8] sm:$0xff]
        %v1609 = vld [vmem:[%s8 + $0x10] sm:$0xff]
        %v1610 = vld [vmem:[%s8 + $0x18] sm:$0xff]
        %v1611 = vld [vmem:[%s8 + $0x20] sm:$0xf]
        %1613 = vset.pattern.permute.xlu0 0
        %1614 = vperm.xlu0 %1613, %v1607
        %v1615 = vpop.permute.xlu0 %1614
        %1618 = vset.pattern.permute.xlu0 0
        %1619 = vperm.xlu0 %1618, %v1608
        %v1620 = vpop.permute.xlu0 %1619
        %1623 = vset.pattern.permute.xlu0 0
        %1624 = vperm.xlu0 %1623, %v1609
        %v1625 = vpop.permute.xlu0 %1624
        %1628 = vset.pattern.permute.xlu0 0
        %1629 = vperm.xlu0 %1628, %v1610
        %v1630 = vpop.permute.xlu0 %1629
        %1633 = vset.pattern.permute.xlu0 0
        %1634 = vperm.xlu0 %1633, %v1611
        %v1635 = vpop.permute.xlu0 %1634
        %v1647 = vunpack.c.l.b16 %v1597
        %v1648 = vunpack.c.h.b16 %v1597
        %v1649 = vunpack.c.l.b16 %v1598
        %v1650 = vunpack.c.l.b16 %v1599
        %v1651 = vunpack.c.h.b16 %v1599
        %v1652 = vunpack.c.l.b16 %v1600
        %v1653 = vunpack.c.l.b16 %v1601
        %v1654 = vunpack.c.h.b16 %v1601
        %v1655 = vunpack.c.l.b16 %v1602
        %v1656 = vunpack.c.l.b16 %v1603
        %v1657 = vunpack.c.h.b16 %v1603
        %v1658 = vunpack.c.l.b16 %v1604
        %v1659 = vunpack.c.l.b16 %v1605
        %v1660 = vunpack.c.h.b16 %v1605
        %v1661 = vunpack.c.l.b16 %v1606
        %v1662 = vpack.c.b16 %v1650, %v1647
        %v1663 = vpack.c.b16 %v1651, %v1648
        %v1664 = vpack.c.b16 %v1652, %v1649
        %v1665 = vpack.c.b16 %v1656, %v1653
        %v1666 = vpack.c.b16 %v1657, %v1654
        %v1667 = vpack.c.b16 %v1658, %v1655
        %v1668 = vpack.c.b16 %v1659, %v1659
        %v1669 = vpack.c.b16 %v1660, %v1660
        %v1670 = vpack.c.b16 %v1661, %v1661
        %vm1677 = vcmask 556032
        %v1679 = vsel %vm1677, %v1664, 0
        %v1682 = vsel %vm1677, %v1667, 0
        %v1685 = vsel %vm1677, %v1670, 0
        %vm1687 = vcmask 1041408
        %v1689 = vsel %vm1687, %v1595, 0
        %v1692 = vsel %vm1687, %v1596, 0
        %1694 = vmatpush.bf16.msra.mxu0 %v1569
        %1695 = vmatpush.bf16.msra.mxu0 %v1567
        %1696 = vmatpush.bf16.msra.mxu0 %v1565
        %1697 = vmatpush.bf16.msra.mxu0 %v1563
        %1698 = vmatpush.bf16.msra.mxu0 %v1561
        %1699 = vmatpush.bf16.msra.mxu0 %v1559
        %1700 = vmatpush.bf16.msra.mxu0 %v1557
        %1701 = vmatpush.bf16.msra.mxu0 %v1555
        %1702 = vmatmul.bf16.gmra.mxu0 %v1662
        %v1703 = vpop.f32.mrf.mxu0
        %v1704 = vadd.f32 %v1615, %v1703
        %v1705 = vpop.f32.mrf.mxu0
        %v1706 = vadd.f32 %v1620, %v1705
        %1707 = vmatmul.bf16.gmra.mxu0 %v1665
        %v1708 = vpop.f32.mrf.mxu0
        %v1709 = vadd.f32 %v1625, %v1708
        %v1710 = vpop.f32.mrf.mxu0
        %v1711 = vadd.f32 %v1630, %v1710
        %1712 = vmatmul.bf16.gmra.mxu0 %v1668
        %v1713 = vpop.f32.mrf.mxu0
        %v1714 = vadd.f32 %v1635, %v1713
        %v1715 = vpop.f32.mrf.mxu0
        %1716 = vdwg.mxu0
        %1717 = vmatpush.bf16.msra.mxu0 %v1585
        %1718 = vmatpush.bf16.msra.mxu0 %v1583
        %1719 = vmatpush.bf16.msra.mxu0 %v1581
        %1720 = vmatpush.bf16.msra.mxu0 %v1579
        %1721 = vmatpush.bf16.msra.mxu0 %v1577
        %1722 = vmatpush.bf16.msra.mxu0 %v1575
        %1723 = vmatpush.bf16.msra.mxu0 %v1573
        %1724 = vmatpush.bf16.msra.mxu0 %v1571
        %1725 = vmatmul.bf16.gmra.mxu0 %v1663
        %v1726 = vpop.f32.mrf.mxu0
        %v1727 = vadd.f32 %v1704, %v1726
        %v1728 = vpop.f32.mrf.mxu0
        %v1729 = vadd.f32 %v1706, %v1728
        %1730 = vmatmul.bf16.gmra.mxu0 %v1666
        %v1731 = vpop.f32.mrf.mxu0
        %v1732 = vadd.f32 %v1709, %v1731
        %v1733 = vpop.f32.mrf.mxu0
        %v1734 = vadd.f32 %v1711, %v1733
        %1735 = vmatmul.bf16.gmra.mxu0 %v1669
        %v1736 = vpop.f32.mrf.mxu0
        %v1737 = vadd.f32 %v1714, %v1736
        %v1738 = vpop.f32.mrf.mxu0
        %1739 = vdwg.mxu0
        %1740 = vmatpush.bf16.msra.mxu0 0
        %1741 = vmatpush.bf16.msra.mxu0 0
        %1742 = vmatpush.bf16.msra.mxu0 0
        %1743 = vmatpush.bf16.msra.mxu0 %v1689
        %1744 = vmatpush.bf16.msra.mxu0 %v1593
        %1745 = vmatpush.bf16.msra.mxu0 %v1591
        %1746 = vmatpush.bf16.msra.mxu0 %v1589
        %1747 = vmatpush.bf16.msra.mxu0 %v1587
        %1748 = vmatmul.bf16.gmra.mxu0 %v1679
        %v1749 = vpop.f32.mrf.mxu0
        %v1750 = vadd.f32 %v1727, %v1749
        %v1751 = vpop.f32.mrf.mxu0
        %v1752 = vadd.f32 %v1729, %v1751
        %1753 = vmatmul.bf16.gmra.mxu0 %v1682
        %v1754 = vpop.f32.mrf.mxu0
        %v1755 = vadd.f32 %v1732, %v1754
        %v1756 = vpop.f32.mrf.mxu0
        %v1757 = vadd.f32 %v1734, %v1756
        %1758 = vmatmul.bf16.gmra.mxu0 %v1685
        %v1759 = vpop.f32.mrf.mxu0
        %v1760 = vadd.f32 %v1737, %v1759
        %v1761 = vpop.f32.mrf.mxu0
        %1762 = vdwg.mxu0
        %1763 = vmatpush.bf16.msra.mxu0 %v1570
        %1764 = vmatpush.bf16.msra.mxu0 %v1568
        %1765 = vmatpush.bf16.msra.mxu0 %v1566
        %1766 = vmatpush.bf16.msra.mxu0 %v1564
        %1767 = vmatpush.bf16.msra.mxu0 %v1562
        %1768 = vmatpush.bf16.msra.mxu0 %v1560
        %1769 = vmatpush.bf16.msra.mxu0 %v1558
        %1770 = vmatpush.bf16.msra.mxu0 %v1556
        %1771 = vmatmul.bf16.gmra.mxu0 %v1662
        %v1772 = vpop.f32.mrf.mxu0
        %v1773 = vadd.f32 %v1615, %v1772
        %v1774 = vpop.f32.mrf.mxu0
        %v1775 = vadd.f32 %v1620, %v1774
        %1776 = vmatmul.bf16.gmra.mxu0 %v1665
        %v1777 = vpop.f32.mrf.mxu0
        %v1778 = vadd.f32 %v1625, %v1777
        %v1779 = vpop.f32.mrf.mxu0
        %v1780 = vadd.f32 %v1630, %v1779
        %1781 = vmatmul.bf16.gmra.mxu0 %v1668
        %v1782 = vpop.f32.mrf.mxu0
        %v1783 = vadd.f32 %v1635, %v1782
        %v1784 = vpop.f32.mrf.mxu0
        %1785 = vdwg.mxu0
        %1786 = vmatpush.bf16.msra.mxu0 %v1586
        %1787 = vmatpush.bf16.msra.mxu0 %v1584
        %1788 = vmatpush.bf16.msra.mxu0 %v1582
        %1789 = vmatpush.bf16.msra.mxu0 %v1580
        %1790 = vmatpush.bf16.msra.mxu0 %v1578
        %1791 = vmatpush.bf16.msra.mxu0 %v1576
        %1792 = vmatpush.bf16.msra.mxu0 %v1574
        %1793 = vmatpush.bf16.msra.mxu0 %v1572
        %1794 = vmatmul.bf16.gmra.mxu0 %v1663
        %v1795 = vpop.f32.mrf.mxu0
        %v1796 = vadd.f32 %v1773, %v1795
        %v1797 = vpop.f32.mrf.mxu0
        %v1798 = vadd.f32 %v1775, %v1797
        %1799 = vmatmul.bf16.gmra.mxu0 %v1666
        %v1800 = vpop.f32.mrf.mxu0
        %v1801 = vadd.f32 %v1778, %v1800
        %v1802 = vpop.f32.mrf.mxu0
        %v1803 = vadd.f32 %v1780, %v1802
        %1804 = vmatmul.bf16.gmra.mxu0 %v1669
        %v1805 = vpop.f32.mrf.mxu0
        %v1806 = vadd.f32 %v1783, %v1805
        %v1807 = vpop.f32.mrf.mxu0
        %1808 = vdwg.mxu0
        %1809 = vmatpush.bf16.msra.mxu0 0
        %1810 = vmatpush.bf16.msra.mxu0 0
        %1811 = vmatpush.bf16.msra.mxu0 0
        %1812 = vmatpush.bf16.msra.mxu0 %v1692
        %1813 = vmatpush.bf16.msra.mxu0 %v1594
        %1814 = vmatpush.bf16.msra.mxu0 %v1592
        %1815 = vmatpush.bf16.msra.mxu0 %v1590
        %1816 = vmatpush.bf16.msra.mxu0 %v1588
        %1817 = vmatmul.bf16.gmra.mxu0 %v1679
        %v1818 = vpop.f32.mrf.mxu0
        %v1819 = vadd.f32 %v1796, %v1818
        %v1820 = vpop.f32.mrf.mxu0
        %v1821 = vadd.f32 %v1798, %v1820
        %1822 = vmatmul.bf16.gmra.mxu0 %v1682
        %v1823 = vpop.f32.mrf.mxu0
        %v1824 = vadd.f32 %v1801, %v1823
        %v1825 = vpop.f32.mrf.mxu0
        %v1826 = vadd.f32 %v1803, %v1825
        %1827 = vmatmul.bf16.gmra.mxu0 %v1685
        %v1828 = vpop.f32.mrf.mxu0
        %v1829 = vadd.f32 %v1806, %v1828
        %v1830 = vpop.f32.mrf.mxu0
        %1831 = vdwg.mxu0
        %v1832 = vmax.f32 %v1750, 0.0
        %v1833 = vmax.f32 %v1819, 0.0
        %v1834 = vmax.f32 %v1752, 0.0
        %v1835 = vmax.f32 %v1821, 0.0
        %v1836 = vmax.f32 %v1755, 0.0
        %v1837 = vmax.f32 %v1824, 0.0
        %v1838 = vmax.f32 %v1757, 0.0
        %v1839 = vmax.f32 %v1826, 0.0
        %v1840 = vmax.f32 %v1760, 0.0
        %v1841 = vmax.f32 %v1829, 0.0
        %v1842 = vld [vmem:[#allocation8] ss:$8 sm:$0x3]
        %1843 = vrot.lane.b32.xlu0 %v1832, 17
        %v1844 = vpop.permute.xlu0 %1843
        %1845 = vrot.lane.b32.xlu0 %v1834, 17
        %v1846 = vpop.permute.xlu0 %1845
        %1847 = vrot.lane.b32.xlu0 %v1836, 17
        %v1848 = vpop.permute.xlu0 %1847
        %1849 = vrot.lane.b32.xlu0 %v1838, 17
        %v1850 = vpop.permute.xlu0 %1849
        %1851 = vrot.lane.b32.xlu0 %v1840, 17
        %v1852 = vpop.permute.xlu0 %1851
        %1853 = vrot.lane.b32.xlu0 %v1833, 17
        %v1854 = vpop.permute.xlu0 %1853
        %1855 = vrot.lane.b32.xlu0 %v1835, 17
        %v1856 = vpop.permute.xlu0 %1855
        %1857 = vrot.lane.b32.xlu0 %v1837, 17
        %v1858 = vpop.permute.xlu0 %1857
        %1859 = vrot.lane.b32.xlu0 %v1839, 17
        %v1860 = vpop.permute.xlu0 %1859
        %1861 = vrot.lane.b32.xlu0 %v1841, 17
        %v1862 = vpop.permute.xlu0 %1861
        %v1863 = vsel %vm868, %v1844, %v1854
        %v1864 = vsel %vm868, %v1846, %v1856
        %v1865 = vsel %vm868, %v1848, %v1858
        %v1866 = vsel %vm868, %v1850, %v1860
        %v1867 = vsel %vm868, %v1852, %v1862
        %v1868 = vsel %vm868, %v1854, %v1844
        %v1869 = vsel %vm868, %v1856, %v1846
        %v1870 = vsel %vm868, %v1858, %v1848
        %v1871 = vsel %vm868, %v1860, %v1850
        %v1872 = vsel %vm868, %v1862, %v1852
        %v1874 = vperm.slane %v1842, 0
        %v1875 = vperm.slane %v1842, 1
        %v1878 = vmul.f32 %v1868, %v1874
        %v1879 = vmul.f32 %v1863, %v1875
        %v1880 = vmul.f32 %v1869, %v1874
        %v1881 = vmul.f32 %v1864, %v1875
        %v1882 = vmul.f32 %v1870, %v1874
        %v1883 = vmul.f32 %v1865, %v1875
        %v1884 = vmul.f32 %v1871, %v1874
        %v1885 = vmul.f32 %v1866, %v1875
        %v1886 = vmul.f32 %v1872, %v1874
        %v1887 = vmul.f32 %v1867, %v1875
        %1888 = vst [vmem:[#allocation2] sm:$0xff] %v1878
        %1889 = vst [vmem:[#allocation2 + $0x8] sm:$0xff] %v1879
        %1890 = vst [vmem:[#allocation2 + $0x10] sm:$0xff] %v1880
        %1891 = vst [vmem:[#allocation2 + $0x18] sm:$0xff] %v1881
        %1892 = vst [vmem:[#allocation2 + $0x20] sm:$0xff] %v1882
        %1893 = vst [vmem:[#allocation2 + $0x28] sm:$0xff] %v1883
        %1894 = vst [vmem:[#allocation2 + $0x30] sm:$0xff] %v1884
        %1895 = vst [vmem:[#allocation2 + $0x38] sm:$0xff] %v1885
        %1896 = vst [vmem:[#allocation2 + $0x40] sm:$0xf] %v1886
        %1897 = vst [vmem:[#allocation2 + $0x48] sm:$0xf] %v1887
        %v1898 = vld [vmem:[%s904] ss:$8 sm:$0x3]
        %1899 = vrot.lane.b32.xlu0 %v1832, 16
        %v1900 = vpop.permute.xlu0 %1899
        %1901 = vrot.lane.b32.xlu0 %v1834, 16
        %v1902 = vpop.permute.xlu0 %1901
        %1903 = vrot.lane.b32.xlu0 %v1836, 16
        %v1904 = vpop.permute.xlu0 %1903
        %1905 = vrot.lane.b32.xlu0 %v1838, 16
        %v1906 = vpop.permute.xlu0 %1905
        %1907 = vrot.lane.b32.xlu0 %v1840, 16
        %v1908 = vpop.permute.xlu0 %1907
        %1909 = vrot.lane.b32.xlu0 %v1833, 16
        %v1910 = vpop.permute.xlu0 %1909
        %1911 = vrot.lane.b32.xlu0 %v1835, 16
        %v1912 = vpop.permute.xlu0 %1911
        %1913 = vrot.lane.b32.xlu0 %v1837, 16
        %v1914 = vpop.permute.xlu0 %1913
        %1915 = vrot.lane.b32.xlu0 %v1839, 16
        %v1916 = vpop.permute.xlu0 %1915
        %1917 = vrot.lane.b32.xlu0 %v1841, 16
        %v1918 = vpop.permute.xlu0 %1917
        %v1919 = vsel %vm926, %v1900, %v1910
        %v1920 = vsel %vm926, %v1902, %v1912
        %v1921 = vsel %vm926, %v1904, %v1914
        %v1922 = vsel %vm926, %v1906, %v1916
        %v1923 = vsel %vm926, %v1908, %v1918
        %v1924 = vsel %vm926, %v1910, %v1900
        %v1925 = vsel %vm926, %v1912, %v1902
        %v1926 = vsel %vm926, %v1914, %v1904
        %v1927 = vsel %vm926, %v1916, %v1906
        %v1928 = vsel %vm926, %v1918, %v1908
        %v1930 = vperm.slane %v1898, 0
        %v1931 = vperm.slane %v1898, 1
        %v1934 = vmul.f32 %v1924, %v1930
        %v1935 = vmul.f32 %v1919, %v1931
        %v1936 = vmul.f32 %v1925, %v1930
        %v1937 = vmul.f32 %v1920, %v1931
        %v1938 = vmul.f32 %v1926, %v1930
        %v1939 = vmul.f32 %v1921, %v1931
        %v1940 = vmul.f32 %v1927, %v1930
        %v1941 = vmul.f32 %v1922, %v1931
        %v1942 = vmul.f32 %v1928, %v1930
        %v1943 = vmul.f32 %v1923, %v1931
        %v1954 = vrot.slane %v1934, 4
        %v1955 = vrot.slane %v1935, 4
        %v1956 = vrot.slane %v1936, 4
        %v1957 = vsel %vm962, %v1954, %v1956
        %v1958 = vrot.slane %v1937, 4
        %v1959 = vsel %vm962, %v1955, %v1958
        %v1960 = vrot.slane %v1938, 4
        %v1961 = vsel %vm962, %v1956, %v1960
        %v1962 = vrot.slane %v1939, 4
        %v1963 = vsel %vm962, %v1958, %v1962
        %v1964 = vrot.slane %v1940, 4
        %v1965 = vsel %vm962, %v1960, %v1964
        %v1966 = vrot.slane %v1941, 4
        %v1967 = vsel %vm962, %v1962, %v1966
        %v1968 = vrot.slane %v1942, 4
        %v1969 = vsel %vm962, %v1964, %v1968
        %v1970 = vrot.slane %v1943, 4
        %v1971 = vsel %vm962, %v1966, %v1970
        %1982 = vst [vmem:[#allocation2 + $0x40] sm:$0xf0] %v1954
        %1983 = vst [vmem:[#allocation2 + $0x48] sm:$0xf0] %v1955
        %1984 = vst [vmem:[#allocation2 + $0x50] sm:$0xff] %v1957
        %1985 = vst [vmem:[#allocation2 + $0x58] sm:$0xff] %v1959
        %1986 = vst [vmem:[#allocation2 + $0x60] sm:$0xff] %v1961
        %1987 = vst [vmem:[#allocation2 + $0x68] sm:$0xff] %v1963
        %1988 = vst [vmem:[#allocation2 + $0x70] sm:$0xff] %v1965
        %1989 = vst [vmem:[#allocation2 + $0x78] sm:$0xff] %v1967
        %1990 = vst [vmem:[#allocation2 + $0x80] sm:$0xff] %v1969
        %1991 = vst [vmem:[#allocation2 + $0x88] sm:$0xff] %v1971
        %v1992 = vld [vmem:[%s1001] ss:$8 sm:$0x3]
        %1993 = vrot.lane.b32.xlu0 %v1832, 15
        %v1994 = vpop.permute.xlu0 %1993
        %1995 = vrot.lane.b32.xlu0 %v1834, 15
        %v1996 = vpop.permute.xlu0 %1995
        %1997 = vrot.lane.b32.xlu0 %v1836, 15
        %v1998 = vpop.permute.xlu0 %1997
        %1999 = vrot.lane.b32.xlu0 %v1838, 15
        %v2000 = vpop.permute.xlu0 %1999
        %2001 = vrot.lane.b32.xlu0 %v1840, 15
        %v2002 = vpop.permute.xlu0 %2001
        %2003 = vrot.lane.b32.xlu0 %v1833, 15
        %v2004 = vpop.permute.xlu0 %2003
        %2005 = vrot.lane.b32.xlu0 %v1835, 15
        %v2006 = vpop.permute.xlu0 %2005
        %2007 = vrot.lane.b32.xlu0 %v1837, 15
        %v2008 = vpop.permute.xlu0 %2007
        %2009 = vrot.lane.b32.xlu0 %v1839, 15
        %v2010 = vpop.permute.xlu0 %2009
        %2011 = vrot.lane.b32.xlu0 %v1841, 15
        %v2012 = vpop.permute.xlu0 %2011
        %v2013 = vsel %vm1023, %v1994, %v2004
        %v2014 = vsel %vm1023, %v1996, %v2006
        %v2015 = vsel %vm1023, %v1998, %v2008
        %v2016 = vsel %vm1023, %v2000, %v2010
        %v2017 = vsel %vm1023, %v2002, %v2012
        %v2018 = vsel %vm1023, %v2004, %v1994
        %v2019 = vsel %vm1023, %v2006, %v1996
        %v2020 = vsel %vm1023, %v2008, %v1998
        %v2021 = vsel %vm1023, %v2010, %v2000
        %v2022 = vsel %vm1023, %v2012, %v2002
        %v2024 = vperm.slane %v1992, 0
        %v2025 = vperm.slane %v1992, 1
        %v2028 = vmul.f32 %v2018, %v2024
        %v2029 = vmul.f32 %v2013, %v2025
        %v2030 = vmul.f32 %v2019, %v2024
        %v2031 = vmul.f32 %v2014, %v2025
        %v2032 = vmul.f32 %v2020, %v2024
        %v2033 = vmul.f32 %v2015, %v2025
        %v2034 = vmul.f32 %v2021, %v2024
        %v2035 = vmul.f32 %v2016, %v2025
        %v2036 = vmul.f32 %v2022, %v2024
        %v2037 = vmul.f32 %v2017, %v2025
        %2038 = vst [vmem:[#allocation2 + $0x90] sm:$0xff] %v2028
        %2039 = vst [vmem:[#allocation2 + $0x98] sm:$0xff] %v2029
        %2040 = vst [vmem:[#allocation2 + $0xa0] sm:$0xff] %v2030
        %2041 = vst [vmem:[#allocation2 + $0xa8] sm:$0xff] %v2031
        %2042 = vst [vmem:[#allocation2 + $0xb0] sm:$0xff] %v2032
        %2043 = vst [vmem:[#allocation2 + $0xb8] sm:$0xff] %v2033
        %2044 = vst [vmem:[#allocation2 + $0xc0] sm:$0xff] %v2034
        %2045 = vst [vmem:[#allocation2 + $0xc8] sm:$0xff] %v2035
        %2046 = vst [vmem:[#allocation2 + $0xd0] sm:$0xf] %v2036
        %2047 = vst [vmem:[#allocation2 + $0xd8] sm:$0xf] %v2037
        %v2048 = vld [vmem:[%s1059] ss:$8 sm:$0x3]
        %2049 = vrot.lane.b32.xlu0 %v1832, 1
        %v2050 = vpop.permute.xlu0 %2049
        %2051 = vrot.lane.b32.xlu0 %v1834, 1
        %v2052 = vpop.permute.xlu0 %2051
        %2053 = vrot.lane.b32.xlu0 %v1836, 1
        %v2054 = vpop.permute.xlu0 %2053
        %2055 = vrot.lane.b32.xlu0 %v1838, 1
        %v2056 = vpop.permute.xlu0 %2055
        %2057 = vrot.lane.b32.xlu0 %v1840, 1
        %v2058 = vpop.permute.xlu0 %2057
        %2059 = vrot.lane.b32.xlu0 %v1833, 1
        %v2060 = vpop.permute.xlu0 %2059
        %2061 = vrot.lane.b32.xlu0 %v1835, 1
        %v2062 = vpop.permute.xlu0 %2061
        %2063 = vrot.lane.b32.xlu0 %v1837, 1
        %v2064 = vpop.permute.xlu0 %2063
        %2065 = vrot.lane.b32.xlu0 %v1839, 1
        %v2066 = vpop.permute.xlu0 %2065
        %2067 = vrot.lane.b32.xlu0 %v1841, 1
        %v2068 = vpop.permute.xlu0 %2067
        %v2069 = vsel %vm1081, %v2050, %v2060
        %v2070 = vsel %vm1081, %v2052, %v2062
        %v2071 = vsel %vm1081, %v2054, %v2064
        %v2072 = vsel %vm1081, %v2056, %v2066
        %v2073 = vsel %vm1081, %v2058, %v2068
        %v2074 = vsel %vm1081, %v2060, %v2050
        %v2075 = vsel %vm1081, %v2062, %v2052
        %v2076 = vsel %vm1081, %v2064, %v2054
        %v2077 = vsel %vm1081, %v2066, %v2056
        %v2078 = vsel %vm1081, %v2068, %v2058
        %v2080 = vperm.slane %v2048, 0
        %v2081 = vperm.slane %v2048, 1
        %v2084 = vmul.f32 %v2074, %v2080
        %v2085 = vmul.f32 %v2069, %v2081
        %v2086 = vmul.f32 %v2075, %v2080
        %v2087 = vmul.f32 %v2070, %v2081
        %v2088 = vmul.f32 %v2076, %v2080
        %v2089 = vmul.f32 %v2071, %v2081
        %v2090 = vmul.f32 %v2077, %v2080
        %v2091 = vmul.f32 %v2072, %v2081
        %v2092 = vmul.f32 %v2078, %v2080
        %v2093 = vmul.f32 %v2073, %v2081
        %v2104 = vrot.slane %v2084, 4
        %v2105 = vrot.slane %v2085, 4
        %v2106 = vrot.slane %v2086, 4
        %v2107 = vsel %vm962, %v2104, %v2106
        %v2108 = vrot.slane %v2087, 4
        %v2109 = vsel %vm962, %v2105, %v2108
        %v2110 = vrot.slane %v2088, 4
        %v2111 = vsel %vm962, %v2106, %v2110
        %v2112 = vrot.slane %v2089, 4
        %v2113 = vsel %vm962, %v2108, %v2112
        %v2114 = vrot.slane %v2090, 4
        %v2115 = vsel %vm962, %v2110, %v2114
        %v2116 = vrot.slane %v2091, 4
        %v2117 = vsel %vm962, %v2112, %v2116
        %v2118 = vrot.slane %v2092, 4
        %v2119 = vsel %vm962, %v2114, %v2118
        %v2120 = vrot.slane %v2093, 4
        %v2121 = vsel %vm962, %v2116, %v2120
        %2132 = vst [vmem:[#allocation2 + $0xd0] sm:$0xf0] %v2104
        %2133 = vst [vmem:[#allocation2 + $0xd8] sm:$0xf0] %v2105
        %2134 = vst [vmem:[#allocation2 + $0xe0] sm:$0xff] %v2107
        %2135 = vst [vmem:[#allocation2 + $0xe8] sm:$0xff] %v2109
        %2136 = vst [vmem:[#allocation2 + $0xf0] sm:$0xff] %v2111
        %2137 = vst [vmem:[#allocation2 + $0xf8] sm:$0xff] %v2113
        %2138 = vst [vmem:[#allocation2 + $0x100] sm:$0xff] %v2115
        %2139 = vst [vmem:[#allocation2 + $0x108] sm:$0xff] %v2117
        %2140 = vst [vmem:[#allocation2 + $0x110] sm:$0xff] %v2119
        %2141 = vst [vmem:[#allocation2 + $0x118] sm:$0xff] %v2121
        %2142 = vst [vmem:[#allocation2 + $0x120] sm:$0xff] %v1832
        %2143 = vst [vmem:[#allocation2 + $0x128] sm:$0xff] %v1833
        %2144 = vst [vmem:[#allocation2 + $0x130] sm:$0xff] %v1834
        %2145 = vst [vmem:[#allocation2 + $0x138] sm:$0xff] %v1835
        %2146 = vst [vmem:[#allocation2 + $0x140] sm:$0xff] %v1836
        %2147 = vst [vmem:[#allocation2 + $0x148] sm:$0xff] %v1837
        %2148 = vst [vmem:[#allocation2 + $0x150] sm:$0xff] %v1838
        %2149 = vst [vmem:[#allocation2 + $0x158] sm:$0xff] %v1839
        %2150 = vst [vmem:[#allocation2 + $0x160] sm:$0xf] %v1840
        %2151 = vst [vmem:[#allocation2 + $0x168] sm:$0xf] %v1841
        %v2152 = vld [vmem:[%s1165] ss:$8 sm:$0x3]
        %2153 = vrot.lane.b32.xlu0 %v1832, 127
        %v2154 = vpop.permute.xlu0 %2153
        %2155 = vrot.lane.b32.xlu0 %v1834, 127
        %v2156 = vpop.permute.xlu0 %2155
        %2157 = vrot.lane.b32.xlu0 %v1836, 127
        %v2158 = vpop.permute.xlu0 %2157
        %2159 = vrot.lane.b32.xlu0 %v1838, 127
        %v2160 = vpop.permute.xlu0 %2159
        %2161 = vrot.lane.b32.xlu0 %v1840, 127
        %v2162 = vpop.permute.xlu0 %2161
        %2163 = vrot.lane.b32.xlu0 %v1833, 127
        %v2164 = vpop.permute.xlu0 %2163
        %2165 = vrot.lane.b32.xlu0 %v1835, 127
        %v2166 = vpop.permute.xlu0 %2165
        %2167 = vrot.lane.b32.xlu0 %v1837, 127
        %v2168 = vpop.permute.xlu0 %2167
        %2169 = vrot.lane.b32.xlu0 %v1839, 127
        %v2170 = vpop.permute.xlu0 %2169
        %2171 = vrot.lane.b32.xlu0 %v1841, 127
        %v2172 = vpop.permute.xlu0 %2171
        %v2173 = vsel %vm1187, %v2154, %v2164
        %v2174 = vsel %vm1187, %v2156, %v2166
        %v2175 = vsel %vm1187, %v2158, %v2168
        %v2176 = vsel %vm1187, %v2160, %v2170
        %v2177 = vsel %vm1187, %v2162, %v2172
        %v2178 = vsel %vm1187, %v2164, %v2154
        %v2179 = vsel %vm1187, %v2166, %v2156
        %v2180 = vsel %vm1187, %v2168, %v2158
        %v2181 = vsel %vm1187, %v2170, %v2160
        %v2182 = vsel %vm1187, %v2172, %v2162
        %v2184 = vperm.slane %v2152, 0
        %v2185 = vperm.slane %v2152, 1
        %v2188 = vmul.f32 %v2173, %v2184
        %v2189 = vmul.f32 %v2178, %v2185
        %v2190 = vmul.f32 %v2174, %v2184
        %v2191 = vmul.f32 %v2179, %v2185
        %v2192 = vmul.f32 %v2175, %v2184
        %v2193 = vmul.f32 %v2180, %v2185
        %v2194 = vmul.f32 %v2176, %v2184
        %v2195 = vmul.f32 %v2181, %v2185
        %v2196 = vmul.f32 %v2177, %v2184
        %v2197 = vmul.f32 %v2182, %v2185
        %v2208 = vrot.slane %v2188, 4
        %v2209 = vrot.slane %v2189, 4
        %v2210 = vrot.slane %v2190, 4
        %v2211 = vsel %vm962, %v2208, %v2210
        %v2212 = vrot.slane %v2191, 4
        %v2213 = vsel %vm962, %v2209, %v2212
        %v2214 = vrot.slane %v2192, 4
        %v2215 = vsel %vm962, %v2210, %v2214
        %v2216 = vrot.slane %v2193, 4
        %v2217 = vsel %vm962, %v2212, %v2216
        %v2218 = vrot.slane %v2194, 4
        %v2219 = vsel %vm962, %v2214, %v2218
        %v2220 = vrot.slane %v2195, 4
        %v2221 = vsel %vm962, %v2216, %v2220
        %v2222 = vrot.slane %v2196, 4
        %v2223 = vsel %vm962, %v2218, %v2222
        %v2224 = vrot.slane %v2197, 4
        %v2225 = vsel %vm962, %v2220, %v2224
        %2236 = vst [vmem:[#allocation2 + $0x160] sm:$0xf0] %v2208
        %2237 = vst [vmem:[#allocation2 + $0x168] sm:$0xf0] %v2209
        %2238 = vst [vmem:[#allocation2 + $0x170] sm:$0xff] %v2211
        %2239 = vst [vmem:[#allocation2 + $0x178] sm:$0xff] %v2213
        %2240 = vst [vmem:[#allocation2 + $0x180] sm:$0xff] %v2215
        %2241 = vst [vmem:[#allocation2 + $0x188] sm:$0xff] %v2217
        %2242 = vst [vmem:[#allocation2 + $0x190] sm:$0xff] %v2219
        %2243 = vst [vmem:[#allocation2 + $0x198] sm:$0xff] %v2221
        %2244 = vst [vmem:[#allocation2 + $0x1a0] sm:$0xff] %v2223
        %2245 = vst [vmem:[#allocation2 + $0x1a8] sm:$0xff] %v2225
        %v2246 = vld [vmem:[%s1261] ss:$8 sm:$0x3]
        %2247 = vrot.lane.b32.xlu0 %v1832, 113
        %v2248 = vpop.permute.xlu0 %2247
        %2249 = vrot.lane.b32.xlu0 %v1834, 113
        %v2250 = vpop.permute.xlu0 %2249
        %2251 = vrot.lane.b32.xlu0 %v1836, 113
        %v2252 = vpop.permute.xlu0 %2251
        %2253 = vrot.lane.b32.xlu0 %v1838, 113
        %v2254 = vpop.permute.xlu0 %2253
        %2255 = vrot.lane.b32.xlu0 %v1840, 113
        %v2256 = vpop.permute.xlu0 %2255
        %2257 = vrot.lane.b32.xlu0 %v1833, 113
        %v2258 = vpop.permute.xlu0 %2257
        %2259 = vrot.lane.b32.xlu0 %v1835, 113
        %v2260 = vpop.permute.xlu0 %2259
        %2261 = vrot.lane.b32.xlu0 %v1837, 113
        %v2262 = vpop.permute.xlu0 %2261
        %2263 = vrot.lane.b32.xlu0 %v1839, 113
        %v2264 = vpop.permute.xlu0 %2263
        %2265 = vrot.lane.b32.xlu0 %v1841, 113
        %v2266 = vpop.permute.xlu0 %2265
        %v2267 = vsel %vm1283, %v2248, %v2258
        %v2268 = vsel %vm1283, %v2250, %v2260
        %v2269 = vsel %vm1283, %v2252, %v2262
        %v2270 = vsel %vm1283, %v2254, %v2264
        %v2271 = vsel %vm1283, %v2256, %v2266
        %v2272 = vsel %vm1283, %v2258, %v2248
        %v2273 = vsel %vm1283, %v2260, %v2250
        %v2274 = vsel %vm1283, %v2262, %v2252
        %v2275 = vsel %vm1283, %v2264, %v2254
        %v2276 = vsel %vm1283, %v2266, %v2256
        %v2278 = vperm.slane %v2246, 0
        %v2279 = vperm.slane %v2246, 1
        %v2282 = vmul.f32 %v2267, %v2278
        %v2283 = vmul.f32 %v2272, %v2279
        %v2284 = vmul.f32 %v2268, %v2278
        %v2285 = vmul.f32 %v2273, %v2279
        %v2286 = vmul.f32 %v2269, %v2278
        %v2287 = vmul.f32 %v2274, %v2279
        %v2288 = vmul.f32 %v2270, %v2278
        %v2289 = vmul.f32 %v2275, %v2279
        %v2290 = vmul.f32 %v2271, %v2278
        %v2291 = vmul.f32 %v2276, %v2279
        %2292 = vst [vmem:[#allocation2 + $0x1b0] sm:$0xff] %v2282
        %2293 = vst [vmem:[#allocation2 + $0x1b8] sm:$0xff] %v2283
        %2294 = vst [vmem:[#allocation2 + $0x1c0] sm:$0xff] %v2284
        %2295 = vst [vmem:[#allocation2 + $0x1c8] sm:$0xff] %v2285
        %2296 = vst [vmem:[#allocation2 + $0x1d0] sm:$0xff] %v2286
        %2297 = vst [vmem:[#allocation2 + $0x1d8] sm:$0xff] %v2287
        %2298 = vst [vmem:[#allocation2 + $0x1e0] sm:$0xff] %v2288
        %2299 = vst [vmem:[#allocation2 + $0x1e8] sm:$0xff] %v2289
        %2300 = vst [vmem:[#allocation2 + $0x1f0] sm:$0xf] %v2290
        %2301 = vst [vmem:[#allocation2 + $0x1f8] sm:$0xf] %v2291
        %v2302 = vld [vmem:[%s1319] ss:$8 sm:$0x3]
        %2303 = vrot.lane.b32.xlu0 %v1832, 112
        %v2304 = vpop.permute.xlu0 %2303
        %2305 = vrot.lane.b32.xlu0 %v1834, 112
        %v2306 = vpop.permute.xlu0 %2305
        %2307 = vrot.lane.b32.xlu0 %v1836, 112
        %v2308 = vpop.permute.xlu0 %2307
        %2309 = vrot.lane.b32.xlu0 %v1838, 112
        %v2310 = vpop.permute.xlu0 %2309
        %2311 = vrot.lane.b32.xlu0 %v1840, 112
        %v2312 = vpop.permute.xlu0 %2311
        %2313 = vrot.lane.b32.xlu0 %v1833, 112
        %v2314 = vpop.permute.xlu0 %2313
        %2315 = vrot.lane.b32.xlu0 %v1835, 112
        %v2316 = vpop.permute.xlu0 %2315
        %2317 = vrot.lane.b32.xlu0 %v1837, 112
        %v2318 = vpop.permute.xlu0 %2317
        %2319 = vrot.lane.b32.xlu0 %v1839, 112
        %v2320 = vpop.permute.xlu0 %2319
        %2321 = vrot.lane.b32.xlu0 %v1841, 112
        %v2322 = vpop.permute.xlu0 %2321
        %v2323 = vsel %vm1341, %v2304, %v2314
        %v2324 = vsel %vm1341, %v2306, %v2316
        %v2325 = vsel %vm1341, %v2308, %v2318
        %v2326 = vsel %vm1341, %v2310, %v2320
        %v2327 = vsel %vm1341, %v2312, %v2322
        %v2328 = vsel %vm1341, %v2314, %v2304
        %v2329 = vsel %vm1341, %v2316, %v2306
        %v2330 = vsel %vm1341, %v2318, %v2308
        %v2331 = vsel %vm1341, %v2320, %v2310
        %v2332 = vsel %vm1341, %v2322, %v2312
        %v2334 = vperm.slane %v2302, 0
        %v2335 = vperm.slane %v2302, 1
        %v2338 = vmul.f32 %v2323, %v2334
        %v2339 = vmul.f32 %v2328, %v2335
        %v2340 = vmul.f32 %v2324, %v2334
        %v2341 = vmul.f32 %v2329, %v2335
        %v2342 = vmul.f32 %v2325, %v2334
        %v2343 = vmul.f32 %v2330, %v2335
        %v2344 = vmul.f32 %v2326, %v2334
        %v2345 = vmul.f32 %v2331, %v2335
        %v2346 = vmul.f32 %v2327, %v2334
        %v2347 = vmul.f32 %v2332, %v2335
        %v2358 = vrot.slane %v2338, 4
        %v2359 = vrot.slane %v2339, 4
        %v2360 = vrot.slane %v2340, 4
        %v2361 = vsel %vm962, %v2358, %v2360
        %v2362 = vrot.slane %v2341, 4
        %v2363 = vsel %vm962, %v2359, %v2362
        %v2364 = vrot.slane %v2342, 4
        %v2365 = vsel %vm962, %v2360, %v2364
        %v2366 = vrot.slane %v2343, 4
        %v2367 = vsel %vm962, %v2362, %v2366
        %v2368 = vrot.slane %v2344, 4
        %v2369 = vsel %vm962, %v2364, %v2368
        %v2370 = vrot.slane %v2345, 4
        %v2371 = vsel %vm962, %v2366, %v2370
        %v2372 = vrot.slane %v2346, 4
        %v2373 = vsel %vm962, %v2368, %v2372
        %v2374 = vrot.slane %v2347, 4
        %v2375 = vsel %vm962, %v2370, %v2374
        %2386 = vst [vmem:[#allocation2 + $0x1f0] sm:$0xf0] %v2358
        %2387 = vst [vmem:[#allocation2 + $0x1f8] sm:$0xf0] %v2359
        %2388 = vst [vmem:[#allocation2 + $0x200] sm:$0xff] %v2361
        %2389 = vst [vmem:[#allocation2 + $0x208] sm:$0xff] %v2363
        %2390 = vst [vmem:[#allocation2 + $0x210] sm:$0xff] %v2365
        %2391 = vst [vmem:[#allocation2 + $0x218] sm:$0xff] %v2367
        %2392 = vst [vmem:[#allocation2 + $0x220] sm:$0xff] %v2369
        %2393 = vst [vmem:[#allocation2 + $0x228] sm:$0xff] %v2371
        %2394 = vst [vmem:[#allocation2 + $0x230] sm:$0xff] %v2373
        %2395 = vst [vmem:[#allocation2 + $0x238] sm:$0xff] %v2375
        %v2396 = vld [vmem:[%s1415] ss:$8 sm:$0x3]
        %2397 = vrot.lane.b32.xlu0 %v1832, 111
        %v2398 = vpop.permute.xlu0 %2397
        %2399 = vrot.lane.b32.xlu0 %v1834, 111
        %v2400 = vpop.permute.xlu0 %2399
        %2401 = vrot.lane.b32.xlu0 %v1836, 111
        %v2402 = vpop.permute.xlu0 %2401
        %2403 = vrot.lane.b32.xlu0 %v1838, 111
        %v2404 = vpop.permute.xlu0 %2403
        %2405 = vrot.lane.b32.xlu0 %v1840, 111
        %v2406 = vpop.permute.xlu0 %2405
        %2407 = vrot.lane.b32.xlu0 %v1833, 111
        %v2408 = vpop.permute.xlu0 %2407
        %2409 = vrot.lane.b32.xlu0 %v1835, 111
        %v2410 = vpop.permute.xlu0 %2409
        %2411 = vrot.lane.b32.xlu0 %v1837, 111
        %v2412 = vpop.permute.xlu0 %2411
        %2413 = vrot.lane.b32.xlu0 %v1839, 111
        %v2414 = vpop.permute.xlu0 %2413
        %2415 = vrot.lane.b32.xlu0 %v1841, 111
        %v2416 = vpop.permute.xlu0 %2415
        %v2417 = vsel %vm1437, %v2398, %v2408
        %v2418 = vsel %vm1437, %v2400, %v2410
        %v2419 = vsel %vm1437, %v2402, %v2412
        %v2420 = vsel %vm1437, %v2404, %v2414
        %v2421 = vsel %vm1437, %v2406, %v2416
        %v2422 = vsel %vm1437, %v2408, %v2398
        %v2423 = vsel %vm1437, %v2410, %v2400
        %v2424 = vsel %vm1437, %v2412, %v2402
        %v2425 = vsel %vm1437, %v2414, %v2404
        %v2426 = vsel %vm1437, %v2416, %v2406
        %v2428 = vperm.slane %v2396, 0
        %v2429 = vperm.slane %v2396, 1
        %v2432 = vmul.f32 %v2417, %v2428
        %v2433 = vmul.f32 %v2422, %v2429
        %v2434 = vmul.f32 %v2418, %v2428
        %v2435 = vmul.f32 %v2423, %v2429
        %v2436 = vmul.f32 %v2419, %v2428
        %v2437 = vmul.f32 %v2424, %v2429
        %v2438 = vmul.f32 %v2420, %v2428
        %v2439 = vmul.f32 %v2425, %v2429
        %v2440 = vmul.f32 %v2421, %v2428
        %v2441 = vmul.f32 %v2426, %v2429
        %2442 = vst [vmem:[#allocation2 + $0x240] sm:$0xff] %v2432
        %2443 = vst [vmem:[#allocation2 + $0x248] sm:$0xff] %v2433
        %2444 = vst [vmem:[#allocation2 + $0x250] sm:$0xff] %v2434
        %2445 = vst [vmem:[#allocation2 + $0x258] sm:$0xff] %v2435
        %2446 = vst [vmem:[#allocation2 + $0x260] sm:$0xff] %v2436
        %2447 = vst [vmem:[#allocation2 + $0x268] sm:$0xff] %v2437
        %2448 = vst [vmem:[#allocation2 + $0x270] sm:$0xff] %v2438
        %2449 = vst [vmem:[#allocation2 + $0x278] sm:$0xff] %v2439
        %2450 = vst [vmem:[#allocation2 + $0x280] sm:$0xf] %v2440
        %2451 = vst [vmem:[#allocation2 + $0x288] sm:$0xf] %v2441
        %v2452 = vld [vmem:[#allocation2] sm:$0xff]
        %v2453 = vld [vmem:[#allocation2 + $0x8] sm:$0xff]
        %v2454 = vld [vmem:[#allocation2 + $0x10] sm:$0xff]
        %v2455 = vld [vmem:[#allocation2 + $0x18] sm:$0xff]
        %v2456 = vld [vmem:[#allocation2 + $0x20] sm:$0xff]
        %v2457 = vld [vmem:[#allocation2 + $0x28] sm:$0xff]
        %v2458 = vld [vmem:[#allocation2 + $0x30] sm:$0xff]
        %v2459 = vld [vmem:[#allocation2 + $0x38] sm:$0xff]
        %v2460 = vld [vmem:[#allocation2 + $0x40] sm:$0xff]
        %v2461 = vld [vmem:[#allocation2 + $0x48] sm:$0xff]
        %v2462 = vld [vmem:[#allocation2 + $0x50] sm:$0xff]
        %v2463 = vld [vmem:[#allocation2 + $0x58] sm:$0xff]
        %v2464 = vld [vmem:[#allocation2 + $0x60] sm:$0xff]
        %v2465 = vld [vmem:[#allocation2 + $0x68] sm:$0xff]
        %v2466 = vld [vmem:[#allocation2 + $0x70] sm:$0xff]
        %v2467 = vld [vmem:[#allocation2 + $0x78] sm:$0xff]
        %v2468 = vld [vmem:[#allocation2 + $0x80] sm:$0xff]
        %v2469 = vld [vmem:[#allocation2 + $0x88] sm:$0xff]
        %v2470 = vld [vmem:[#allocation2 + $0x90] sm:$0xff]
        %v2471 = vld [vmem:[#allocation2 + $0x98] sm:$0xff]
        %v2472 = vld [vmem:[#allocation2 + $0xa0] sm:$0xff]
        %v2473 = vld [vmem:[#allocation2 + $0xa8] sm:$0xff]
        %v2474 = vld [vmem:[#allocation2 + $0xb0] sm:$0xff]
        %v2475 = vld [vmem:[#allocation2 + $0xb8] sm:$0xff]
        %v2476 = vld [vmem:[#allocation2 + $0xc0] sm:$0xff]
        %v2477 = vld [vmem:[#allocation2 + $0xc8] sm:$0xff]
        %v2478 = vld [vmem:[#allocation2 + $0xd0] sm:$0xff]
        %v2479 = vld [vmem:[#allocation2 + $0xd8] sm:$0xff]
        %v2480 = vld [vmem:[#allocation2 + $0xe0] sm:$0xff]
        %v2481 = vld [vmem:[#allocation2 + $0xe8] sm:$0xff]
        %v2482 = vld [vmem:[#allocation2 + $0xf0] sm:$0xff]
        %v2483 = vld [vmem:[#allocation2 + $0xf8] sm:$0xff]
        %v2484 = vld [vmem:[#allocation2 + $0x100] sm:$0xff]
        %v2485 = vld [vmem:[#allocation2 + $0x108] sm:$0xff]
        %v2486 = vld [vmem:[#allocation2 + $0x110] sm:$0xff]
        %v2487 = vld [vmem:[#allocation2 + $0x118] sm:$0xff]
        %v2488 = vld [vmem:[#allocation2 + $0x120] sm:$0xff]
        %v2489 = vld [vmem:[#allocation2 + $0x128] sm:$0xff]
        %v2490 = vld [vmem:[#allocation2 + $0x130] sm:$0xff]
        %v2491 = vld [vmem:[#allocation2 + $0x138] sm:$0xff]
        %v2492 = vld [vmem:[#allocation2 + $0x140] sm:$0xff]
        %v2493 = vld [vmem:[#allocation2 + $0x148] sm:$0xff]
        %v2494 = vld [vmem:[#allocation2 + $0x150] sm:$0xff]
        %v2495 = vld [vmem:[#allocation2 + $0x158] sm:$0xff]
        %v2496 = vld [vmem:[#allocation2 + $0x160] sm:$0xff]
        %v2497 = vld [vmem:[#allocation2 + $0x168] sm:$0xff]
        %v2498 = vld [vmem:[#allocation2 + $0x170] sm:$0xff]
        %v2499 = vld [vmem:[#allocation2 + $0x178] sm:$0xff]
        %v2500 = vld [vmem:[#allocation2 + $0x180] sm:$0xff]
        %v2501 = vld [vmem:[#allocation2 + $0x188] sm:$0xff]
        %v2502 = vld [vmem:[#allocation2 + $0x190] sm:$0xff]
        %v2503 = vld [vmem:[#allocation2 + $0x198] sm:$0xff]
        %v2504 = vld [vmem:[#allocation2 + $0x1a0] sm:$0xff]
        %v2505 = vld [vmem:[#allocation2 + $0x1a8] sm:$0xff]
        %v2506 = vld [vmem:[#allocation2 + $0x1b0] sm:$0xff]
        %v2507 = vld [vmem:[#allocation2 + $0x1b8] sm:$0xff]
        %v2508 = vld [vmem:[#allocation2 + $0x1c0] sm:$0xff]
        %v2509 = vld [vmem:[#allocation2 + $0x1c8] sm:$0xff]
        %v2510 = vld [vmem:[#allocation2 + $0x1d0] sm:$0xff]
        %v2511 = vld [vmem:[#allocation2 + $0x1d8] sm:$0xff]
        %v2512 = vld [vmem:[#allocation2 + $0x1e0] sm:$0xff]
        %v2513 = vld [vmem:[#allocation2 + $0x1e8] sm:$0xff]
        %v2514 = vld [vmem:[#allocation2 + $0x1f0] sm:$0xff]
        %v2515 = vld [vmem:[#allocation2 + $0x1f8] sm:$0xff]
        %v2516 = vld [vmem:[#allocation2 + $0x200] sm:$0xff]
        %v2517 = vld [vmem:[#allocation2 + $0x208] sm:$0xff]
        %v2518 = vld [vmem:[#allocation2 + $0x210] sm:$0xff]
        %v2519 = vld [vmem:[#allocation2 + $0x218] sm:$0xff]
        %v2520 = vld [vmem:[#allocation2 + $0x220] sm:$0xff]
        %v2521 = vld [vmem:[#allocation2 + $0x228] sm:$0xff]
        %v2522 = vld [vmem:[#allocation2 + $0x230] sm:$0xff]
        %v2523 = vld [vmem:[#allocation2 + $0x238] sm:$0xff]
        %v2524 = vld [vmem:[#allocation2 + $0x240] sm:$0xff]
        %v2525 = vld [vmem:[#allocation2 + $0x248] sm:$0xff]
        %v2526 = vld [vmem:[#allocation2 + $0x250] sm:$0xff]
        %v2527 = vld [vmem:[#allocation2 + $0x258] sm:$0xff]
        %v2528 = vld [vmem:[#allocation2 + $0x260] sm:$0xff]
        %v2529 = vld [vmem:[#allocation2 + $0x268] sm:$0xff]
        %v2530 = vld [vmem:[#allocation2 + $0x270] sm:$0xff]
        %v2531 = vld [vmem:[#allocation2 + $0x278] sm:$0xff]
        %v2532 = vld [vmem:[#allocation2 + $0x280] sm:$0xf]
        %v2533 = vld [vmem:[#allocation2 + $0x288] sm:$0xf]
        %v2534 = vpack.c.bf16 %v2454, %v2452
        %v2535 = vpack.c.bf16 %v2455, %v2453
        %v2536 = vpack.c.bf16 %v2458, %v2456
        %v2537 = vpack.c.bf16 %v2459, %v2457
        %v2538 = vpack.c.bf16 %v2462, %v2460
        %v2539 = vpack.c.bf16 %v2463, %v2461
        %v2540 = vpack.c.bf16 %v2466, %v2464
        %v2541 = vpack.c.bf16 %v2467, %v2465
        %v2542 = vpack.c.bf16 %v2470, %v2468
        %v2543 = vpack.c.bf16 %v2471, %v2469
        %v2544 = vpack.c.bf16 %v2474, %v2472
        %v2545 = vpack.c.bf16 %v2475, %v2473
        %v2546 = vpack.c.bf16 %v2478, %v2476
        %v2547 = vpack.c.bf16 %v2479, %v2477
        %v2548 = vpack.c.bf16 %v2482, %v2480
        %v2549 = vpack.c.bf16 %v2483, %v2481
        %v2550 = vpack.c.bf16 %v2486, %v2484
        %v2551 = vpack.c.bf16 %v2487, %v2485
        %v2552 = vpack.c.bf16 %v2490, %v2488
        %v2553 = vpack.c.bf16 %v2491, %v2489
        %v2554 = vpack.c.bf16 %v2494, %v2492
        %v2555 = vpack.c.bf16 %v2495, %v2493
        %v2556 = vpack.c.bf16 %v2498, %v2496
        %v2557 = vpack.c.bf16 %v2499, %v2497
        %v2558 = vpack.c.bf16 %v2502, %v2500
        %v2559 = vpack.c.bf16 %v2503, %v2501
        %v2560 = vpack.c.bf16 %v2506, %v2504
        %v2561 = vpack.c.bf16 %v2507, %v2505
        %v2562 = vpack.c.bf16 %v2510, %v2508
        %v2563 = vpack.c.bf16 %v2511, %v2509
        %v2564 = vpack.c.bf16 %v2514, %v2512
        %v2565 = vpack.c.bf16 %v2515, %v2513
        %v2566 = vpack.c.bf16 %v2518, %v2516
        %v2567 = vpack.c.bf16 %v2519, %v2517
        %v2568 = vpack.c.bf16 %v2522, %v2520
        %v2569 = vpack.c.bf16 %v2523, %v2521
        %v2570 = vpack.c.bf16 %v2526, %v2524
        %v2571 = vpack.c.bf16 %v2527, %v2525
        %v2572 = vpack.c.bf16 %v2530, %v2528
        %v2573 = vpack.c.bf16 %v2531, %v2529
        %v2574 = vpack.c.bf16 %v2532, %v2532
        %v2575 = vpack.c.bf16 %v2533, %v2533
        %v2576 = vld [vmem:[%s9] sm:$0xff]
        %v2577 = vld [vmem:[%s9 + $0x8] sm:$0xf]
        %v2578 = vld [vmem:[%s9 + $0xc] sm:$0xff]
        %v2579 = vld [vmem:[%s9 + $0x14] sm:$0xf]
        %v2580 = vld [vmem:[%s9 + $0x18] sm:$0xff]
        %v2581 = vld [vmem:[%s9 + $0x20] sm:$0xf]
        %v2582 = vld [vmem:[%s9 + $0x24] sm:$0xff]
        %v2583 = vld [vmem:[%s9 + $0x2c] sm:$0xf]
        %v2584 = vld [vmem:[%s9 + $0x30] sm:$0x33]
        %v2585 = vld [vmem:[%s9 + $0x38] sm:$0x3]
        %v2586 = vld [vmem:[%s10] sm:$0xff]
        %v2587 = vld [vmem:[%s10 + $0x8] sm:$0xff]
        %v2588 = vld [vmem:[%s10 + $0x10] sm:$0xff]
        %v2589 = vld [vmem:[%s10 + $0x18] sm:$0xff]
        %v2590 = vld [vmem:[%s10 + $0x20] sm:$0xf]
        %2592 = vset.pattern.permute.xlu0 0
        %2593 = vperm.xlu0 %2592, %v2586
        %v2594 = vpop.permute.xlu0 %2593
        %2597 = vset.pattern.permute.xlu0 0
        %2598 = vperm.xlu0 %2597, %v2587
        %v2599 = vpop.permute.xlu0 %2598
        %2602 = vset.pattern.permute.xlu0 0
        %2603 = vperm.xlu0 %2602, %v2588
        %v2604 = vpop.permute.xlu0 %2603
        %2607 = vset.pattern.permute.xlu0 0
        %2608 = vperm.xlu0 %2607, %v2589
        %v2609 = vpop.permute.xlu0 %2608
        %2612 = vset.pattern.permute.xlu0 0
        %2613 = vperm.xlu0 %2612, %v2590
        %v2614 = vpop.permute.xlu0 %2613
        %v2626 = vunpack.c.l.b16 %v2576
        %v2627 = vunpack.c.h.b16 %v2576
        %v2628 = vunpack.c.l.b16 %v2577
        %v2629 = vunpack.c.l.b16 %v2578
        %v2630 = vunpack.c.h.b16 %v2578
        %v2631 = vunpack.c.l.b16 %v2579
        %v2632 = vunpack.c.l.b16 %v2580
        %v2633 = vunpack.c.h.b16 %v2580
        %v2634 = vunpack.c.l.b16 %v2581
        %v2635 = vunpack.c.l.b16 %v2582
        %v2636 = vunpack.c.h.b16 %v2582
        %v2637 = vunpack.c.l.b16 %v2583
        %v2638 = vunpack.c.l.b16 %v2584
        %v2639 = vunpack.c.h.b16 %v2584
        %v2640 = vunpack.c.l.b16 %v2585
        %v2641 = vpack.c.b16 %v2629, %v2626
        %v2642 = vpack.c.b16 %v2630, %v2627
        %v2643 = vpack.c.b16 %v2631, %v2628
        %v2644 = vpack.c.b16 %v2635, %v2632
        %v2645 = vpack.c.b16 %v2636, %v2633
        %v2646 = vpack.c.b16 %v2637, %v2634
        %v2647 = vpack.c.b16 %v2638, %v2638
        %v2648 = vpack.c.b16 %v2639, %v2639
        %v2649 = vpack.c.b16 %v2640, %v2640
        %v2657 = vsel %vm1677, %v2643, 0
        %v2660 = vsel %vm1677, %v2646, 0
        %v2663 = vsel %vm1677, %v2649, 0
        %v2666 = vsel %vm1687, %v2574, 0
        %v2669 = vsel %vm1687, %v2575, 0
        %2671 = vmatpush.bf16.msra.mxu0 %v2548
        %2672 = vmatpush.bf16.msra.mxu0 %v2546
        %2673 = vmatpush.bf16.msra.mxu0 %v2544
        %2674 = vmatpush.bf16.msra.mxu0 %v2542
        %2675 = vmatpush.bf16.msra.mxu0 %v2540
        %2676 = vmatpush.bf16.msra.mxu0 %v2538
        %2677 = vmatpush.bf16.msra.mxu0 %v2536
        %2678 = vmatpush.bf16.msra.mxu0 %v2534
        %2679 = vmatmul.bf16.gmra.mxu0 %v2641
        %v2680 = vpop.f32.mrf.mxu0
        %v2681 = vadd.f32 %v2594, %v2680
        %v2682 = vpop.f32.mrf.mxu0
        %v2683 = vadd.f32 %v2599, %v2682
        %2684 = vmatmul.bf16.gmra.mxu0 %v2644
        %v2685 = vpop.f32.mrf.mxu0
        %v2686 = vadd.f32 %v2604, %v2685
        %v2687 = vpop.f32.mrf.mxu0
        %v2688 = vadd.f32 %v2609, %v2687
        %2689 = vmatmul.bf16.gmra.mxu0 %v2647
        %v2690 = vpop.f32.mrf.mxu0
        %v2691 = vadd.f32 %v2614, %v2690
        %v2692 = vpop.f32.mrf.mxu0
        %2693 = vdwg.mxu0
        %2694 = vmatpush.bf16.msra.mxu0 %v2564
        %2695 = vmatpush.bf16.msra.mxu0 %v2562
        %2696 = vmatpush.bf16.msra.mxu0 %v2560
        %2697 = vmatpush.bf16.msra.mxu0 %v2558
        %2698 = vmatpush.bf16.msra.mxu0 %v2556
        %2699 = vmatpush.bf16.msra.mxu0 %v2554
        %2700 = vmatpush.bf16.msra.mxu0 %v2552
        %2701 = vmatpush.bf16.msra.mxu0 %v2550
        %2702 = vmatmul.bf16.gmra.mxu0 %v2642
        %v2703 = vpop.f32.mrf.mxu0
        %v2704 = vadd.f32 %v2681, %v2703
        %v2705 = vpop.f32.mrf.mxu0
        %v2706 = vadd.f32 %v2683, %v2705
        %2707 = vmatmul.bf16.gmra.mxu0 %v2645
        %v2708 = vpop.f32.mrf.mxu0
        %v2709 = vadd.f32 %v2686, %v2708
        %v2710 = vpop.f32.mrf.mxu0
        %v2711 = vadd.f32 %v2688, %v2710
        %2712 = vmatmul.bf16.gmra.mxu0 %v2648
        %v2713 = vpop.f32.mrf.mxu0
        %v2714 = vadd.f32 %v2691, %v2713
        %v2715 = vpop.f32.mrf.mxu0
        %2716 = vdwg.mxu0
        %2717 = vmatpush.bf16.msra.mxu0 0
        %2718 = vmatpush.bf16.msra.mxu0 0
        %2719 = vmatpush.bf16.msra.mxu0 0
        %2720 = vmatpush.bf16.msra.mxu0 %v2666
        %2721 = vmatpush.bf16.msra.mxu0 %v2572
        %2722 = vmatpush.bf16.msra.mxu0 %v2570
        %2723 = vmatpush.bf16.msra.mxu0 %v2568
        %2724 = vmatpush.bf16.msra.mxu0 %v2566
        %2725 = vmatmul.bf16.gmra.mxu0 %v2657
        %v2726 = vpop.f32.mrf.mxu0
        %v2727 = vadd.f32 %v2704, %v2726
        %v2728 = vpop.f32.mrf.mxu0
        %v2729 = vadd.f32 %v2706, %v2728
        %2730 = vmatmul.bf16.gmra.mxu0 %v2660
        %v2731 = vpop.f32.mrf.mxu0
        %v2732 = vadd.f32 %v2709, %v2731
        %v2733 = vpop.f32.mrf.mxu0
        %v2734 = vadd.f32 %v2711, %v2733
        %2735 = vmatmul.bf16.gmra.mxu0 %v2663
        %v2736 = vpop.f32.mrf.mxu0
        %v2737 = vadd.f32 %v2714, %v2736
        %v2738 = vpop.f32.mrf.mxu0
        %2739 = vdwg.mxu0
        %2740 = vmatpush.bf16.msra.mxu0 %v2549
        %2741 = vmatpush.bf16.msra.mxu0 %v2547
        %2742 = vmatpush.bf16.msra.mxu0 %v2545
        %2743 = vmatpush.bf16.msra.mxu0 %v2543
        %2744 = vmatpush.bf16.msra.mxu0 %v2541
        %2745 = vmatpush.bf16.msra.mxu0 %v2539
        %2746 = vmatpush.bf16.msra.mxu0 %v2537
        %2747 = vmatpush.bf16.msra.mxu0 %v2535
        %2748 = vmatmul.bf16.gmra.mxu0 %v2641
        %v2749 = vpop.f32.mrf.mxu0
        %v2750 = vadd.f32 %v2594, %v2749
        %v2751 = vpop.f32.mrf.mxu0
        %v2752 = vadd.f32 %v2599, %v2751
        %2753 = vmatmul.bf16.gmra.mxu0 %v2644
        %v2754 = vpop.f32.mrf.mxu0
        %v2755 = vadd.f32 %v2604, %v2754
        %v2756 = vpop.f32.mrf.mxu0
        %v2757 = vadd.f32 %v2609, %v2756
        %2758 = vmatmul.bf16.gmra.mxu0 %v2647
        %v2759 = vpop.f32.mrf.mxu0
        %v2760 = vadd.f32 %v2614, %v2759
        %v2761 = vpop.f32.mrf.mxu0
        %2762 = vdwg.mxu0
        %2763 = vmatpush.bf16.msra.mxu0 %v2565
        %2764 = vmatpush.bf16.msra.mxu0 %v2563
        %2765 = vmatpush.bf16.msra.mxu0 %v2561
        %2766 = vmatpush.bf16.msra.mxu0 %v2559
        %2767 = vmatpush.bf16.msra.mxu0 %v2557
        %2768 = vmatpush.bf16.msra.mxu0 %v2555
        %2769 = vmatpush.bf16.msra.mxu0 %v2553
        %2770 = vmatpush.bf16.msra.mxu0 %v2551
        %2771 = vmatmul.bf16.gmra.mxu0 %v2642
        %v2772 = vpop.f32.mrf.mxu0
        %v2773 = vadd.f32 %v2750, %v2772
        %v2774 = vpop.f32.mrf.mxu0
        %v2775 = vadd.f32 %v2752, %v2774
        %2776 = vmatmul.bf16.gmra.mxu0 %v2645
        %v2777 = vpop.f32.mrf.mxu0
        %v2778 = vadd.f32 %v2755, %v2777
        %v2779 = vpop.f32.mrf.mxu0
        %v2780 = vadd.f32 %v2757, %v2779
        %2781 = vmatmul.bf16.gmra.mxu0 %v2648
        %v2782 = vpop.f32.mrf.mxu0
        %v2783 = vadd.f32 %v2760, %v2782
        %v2784 = vpop.f32.mrf.mxu0
        %2785 = vdwg.mxu0
        %2786 = vmatpush.bf16.msra.mxu0 0
        %2787 = vmatpush.bf16.msra.mxu0 0
        %2788 = vmatpush.bf16.msra.mxu0 0
        %2789 = vmatpush.bf16.msra.mxu0 %v2669
        %2790 = vmatpush.bf16.msra.mxu0 %v2573
        %2791 = vmatpush.bf16.msra.mxu0 %v2571
        %2792 = vmatpush.bf16.msra.mxu0 %v2569
        %2793 = vmatpush.bf16.msra.mxu0 %v2567
        %2794 = vmatmul.bf16.gmra.mxu0 %v2657
        %v2795 = vpop.f32.mrf.mxu0
        %v2796 = vadd.f32 %v2773, %v2795
        %v2797 = vpop.f32.mrf.mxu0
        %v2798 = vadd.f32 %v2775, %v2797
        %2799 = vmatmul.bf16.gmra.mxu0 %v2660
        %v2800 = vpop.f32.mrf.mxu0
        %v2801 = vadd.f32 %v2778, %v2800
        %v2802 = vpop.f32.mrf.mxu0
        %v2803 = vadd.f32 %v2780, %v2802
        %2804 = vmatmul.bf16.gmra.mxu0 %v2663
        %v2805 = vpop.f32.mrf.mxu0
        %v2806 = vadd.f32 %v2783, %v2805
        %v2807 = vpop.f32.mrf.mxu0
        %2808 = vdwg.mxu0
        %v2809 = vmax.f32 %v2727, 0.0
        %v2810 = vmax.f32 %v2796, 0.0
        %v2811 = vmax.f32 %v2729, 0.0
        %v2812 = vmax.f32 %v2798, 0.0
        %v2813 = vmax.f32 %v2732, 0.0
        %v2814 = vmax.f32 %v2801, 0.0
        %v2815 = vmax.f32 %v2734, 0.0
        %v2816 = vmax.f32 %v2803, 0.0
        %v2817 = vmax.f32 %v2737, 0.0
        %v2818 = vmax.f32 %v2806, 0.0
        %v2819 = vld [vmem:[#allocation8] ss:$8 sm:$0x3]
        %2820 = vrot.lane.b32.xlu0 %v2809, 17
        %v2821 = vpop.permute.xlu0 %2820
        %2822 = vrot.lane.b32.xlu0 %v2811, 17
        %v2823 = vpop.permute.xlu0 %2822
        %2824 = vrot.lane.b32.xlu0 %v2813, 17
        %v2825 = vpop.permute.xlu0 %2824
        %2826 = vrot.lane.b32.xlu0 %v2815, 17
        %v2827 = vpop.permute.xlu0 %2826
        %2828 = vrot.lane.b32.xlu0 %v2817, 17
        %v2829 = vpop.permute.xlu0 %2828
        %2830 = vrot.lane.b32.xlu0 %v2810, 17
        %v2831 = vpop.permute.xlu0 %2830
        %2832 = vrot.lane.b32.xlu0 %v2812, 17
        %v2833 = vpop.permute.xlu0 %2832
        %2834 = vrot.lane.b32.xlu0 %v2814, 17
        %v2835 = vpop.permute.xlu0 %2834
        %2836 = vrot.lane.b32.xlu0 %v2816, 17
        %v2837 = vpop.permute.xlu0 %2836
        %2838 = vrot.lane.b32.xlu0 %v2818, 17
        %v2839 = vpop.permute.xlu0 %2838
        %v2840 = vsel %vm868, %v2821, %v2831
        %v2841 = vsel %vm868, %v2823, %v2833
        %v2842 = vsel %vm868, %v2825, %v2835
        %v2843 = vsel %vm868, %v2827, %v2837
        %v2844 = vsel %vm868, %v2829, %v2839
        %v2845 = vsel %vm868, %v2831, %v2821
        %v2846 = vsel %vm868, %v2833, %v2823
        %v2847 = vsel %vm868, %v2835, %v2825
        %v2848 = vsel %vm868, %v2837, %v2827
        %v2849 = vsel %vm868, %v2839, %v2829
        %v2851 = vperm.slane %v2819, 0
        %v2852 = vperm.slane %v2819, 1
        %v2855 = vmul.f32 %v2845, %v2851
        %v2856 = vmul.f32 %v2840, %v2852
        %v2857 = vmul.f32 %v2846, %v2851
        %v2858 = vmul.f32 %v2841, %v2852
        %v2859 = vmul.f32 %v2847, %v2851
        %v2860 = vmul.f32 %v2842, %v2852
        %v2861 = vmul.f32 %v2848, %v2851
        %v2862 = vmul.f32 %v2843, %v2852
        %v2863 = vmul.f32 %v2849, %v2851
        %v2864 = vmul.f32 %v2844, %v2852
        %2865 = vst [vmem:[#allocation2] sm:$0xff] %v2855
        %2866 = vst [vmem:[#allocation2 + $0x8] sm:$0xff] %v2856
        %2867 = vst [vmem:[#allocation2 + $0x10] sm:$0xff] %v2857
        %2868 = vst [vmem:[#allocation2 + $0x18] sm:$0xff] %v2858
        %2869 = vst [vmem:[#allocation2 + $0x20] sm:$0xff] %v2859
        %2870 = vst [vmem:[#allocation2 + $0x28] sm:$0xff] %v2860
        %2871 = vst [vmem:[#allocation2 + $0x30] sm:$0xff] %v2861
        %2872 = vst [vmem:[#allocation2 + $0x38] sm:$0xff] %v2862
        %2873 = vst [vmem:[#allocation2 + $0x40] sm:$0xf] %v2863
        %2874 = vst [vmem:[#allocation2 + $0x48] sm:$0xf] %v2864
        %v2875 = vld [vmem:[%s904] ss:$8 sm:$0x3]
        %2876 = vrot.lane.b32.xlu0 %v2809, 16
        %v2877 = vpop.permute.xlu0 %2876
        %2878 = vrot.lane.b32.xlu0 %v2811, 16
        %v2879 = vpop.permute.xlu0 %2878
        %2880 = vrot.lane.b32.xlu0 %v2813, 16
        %v2881 = vpop.permute.xlu0 %2880
        %2882 = vrot.lane.b32.xlu0 %v2815, 16
        %v2883 = vpop.permute.xlu0 %2882
        %2884 = vrot.lane.b32.xlu0 %v2817, 16
        %v2885 = vpop.permute.xlu0 %2884
        %2886 = vrot.lane.b32.xlu0 %v2810, 16
        %v2887 = vpop.permute.xlu0 %2886
        %2888 = vrot.lane.b32.xlu0 %v2812, 16
        %v2889 = vpop.permute.xlu0 %2888
        %2890 = vrot.lane.b32.xlu0 %v2814, 16
        %v2891 = vpop.permute.xlu0 %2890
        %2892 = vrot.lane.b32.xlu0 %v2816, 16
        %v2893 = vpop.permute.xlu0 %2892
        %2894 = vrot.lane.b32.xlu0 %v2818, 16
        %v2895 = vpop.permute.xlu0 %2894
        %v2896 = vsel %vm926, %v2877, %v2887
        %v2897 = vsel %vm926, %v2879, %v2889
        %v2898 = vsel %vm926, %v2881, %v2891
        %v2899 = vsel %vm926, %v2883, %v2893
        %v2900 = vsel %vm926, %v2885, %v2895
        %v2901 = vsel %vm926, %v2887, %v2877
        %v2902 = vsel %vm926, %v2889, %v2879
        %v2903 = vsel %vm926, %v2891, %v2881
        %v2904 = vsel %vm926, %v2893, %v2883
        %v2905 = vsel %vm926, %v2895, %v2885
        %v2907 = vperm.slane %v2875, 0
        %v2908 = vperm.slane %v2875, 1
        %v2911 = vmul.f32 %v2901, %v2907
        %v2912 = vmul.f32 %v2896, %v2908
        %v2913 = vmul.f32 %v2902, %v2907
        %v2914 = vmul.f32 %v2897, %v2908
        %v2915 = vmul.f32 %v2903, %v2907
        %v2916 = vmul.f32 %v2898, %v2908
        %v2917 = vmul.f32 %v2904, %v2907
        %v2918 = vmul.f32 %v2899, %v2908
        %v2919 = vmul.f32 %v2905, %v2907
        %v2920 = vmul.f32 %v2900, %v2908
        %v2931 = vrot.slane %v2911, 4
        %v2932 = vrot.slane %v2912, 4
        %v2933 = vrot.slane %v2913, 4
        %v2934 = vsel %vm962, %v2931, %v2933
        %v2935 = vrot.slane %v2914, 4
        %v2936 = vsel %vm962, %v2932, %v2935
        %v2937 = vrot.slane %v2915, 4
        %v2938 = vsel %vm962, %v2933, %v2937
        %v2939 = vrot.slane %v2916, 4
        %v2940 = vsel %vm962, %v2935, %v2939
        %v2941 = vrot.slane %v2917, 4
        %v2942 = vsel %vm962, %v2937, %v2941
        %v2943 = vrot.slane %v2918, 4
        %v2944 = vsel %vm962, %v2939, %v2943
        %v2945 = vrot.slane %v2919, 4
        %v2946 = vsel %vm962, %v2941, %v2945
        %v2947 = vrot.slane %v2920, 4
        %v2948 = vsel %vm962, %v2943, %v2947
        %2959 = vst [vmem:[#allocation2 + $0x40] sm:$0xf0] %v2931
        %2960 = vst [vmem:[#allocation2 + $0x48] sm:$0xf0] %v2932
        %2961 = vst [vmem:[#allocation2 + $0x50] sm:$0xff] %v2934
        %2962 = vst [vmem:[#allocation2 + $0x58] sm:$0xff] %v2936
        %2963 = vst [vmem:[#allocation2 + $0x60] sm:$0xff] %v2938
        %2964 = vst [vmem:[#allocation2 + $0x68] sm:$0xff] %v2940
        %2965 = vst [vmem:[#allocation2 + $0x70] sm:$0xff] %v2942
        %2966 = vst [vmem:[#allocation2 + $0x78] sm:$0xff] %v2944
        %2967 = vst [vmem:[#allocation2 + $0x80] sm:$0xff] %v2946
        %2968 = vst [vmem:[#allocation2 + $0x88] sm:$0xff] %v2948
        %v2969 = vld [vmem:[%s1001] ss:$8 sm:$0x3]
        %2970 = vrot.lane.b32.xlu0 %v2809, 15
        %v2971 = vpop.permute.xlu0 %2970
        %2972 = vrot.lane.b32.xlu0 %v2811, 15
        %v2973 = vpop.permute.xlu0 %2972
        %2974 = vrot.lane.b32.xlu0 %v2813, 15
        %v2975 = vpop.permute.xlu0 %2974
        %2976 = vrot.lane.b32.xlu0 %v2815, 15
        %v2977 = vpop.permute.xlu0 %2976
        %2978 = vrot.lane.b32.xlu0 %v2817, 15
        %v2979 = vpop.permute.xlu0 %2978
        %2980 = vrot.lane.b32.xlu0 %v2810, 15
        %v2981 = vpop.permute.xlu0 %2980
        %2982 = vrot.lane.b32.xlu0 %v2812, 15
        %v2983 = vpop.permute.xlu0 %2982
        %2984 = vrot.lane.b32.xlu0 %v2814, 15
        %v2985 = vpop.permute.xlu0 %2984
        %2986 = vrot.lane.b32.xlu0 %v2816, 15
        %v2987 = vpop.permute.xlu0 %2986
        %2988 = vrot.lane.b32.xlu0 %v2818, 15
        %v2989 = vpop.permute.xlu0 %2988
        %v2990 = vsel %vm1023, %v2971, %v2981
        %v2991 = vsel %vm1023, %v2973, %v2983
        %v2992 = vsel %vm1023, %v2975, %v2985
        %v2993 = vsel %vm1023, %v2977, %v2987
        %v2994 = vsel %vm1023, %v2979, %v2989
        %v2995 = vsel %vm1023, %v2981, %v2971
        %v2996 = vsel %vm1023, %v2983, %v2973
        %v2997 = vsel %vm1023, %v2985, %v2975
        %v2998 = vsel %vm1023, %v2987, %v2977
        %v2999 = vsel %vm1023, %v2989, %v2979
        %v3001 = vperm.slane %v2969, 0
        %v3002 = vperm.slane %v2969, 1
        %v3005 = vmul.f32 %v2995, %v3001
        %v3006 = vmul.f32 %v2990, %v3002
        %v3007 = vmul.f32 %v2996, %v3001
        %v3008 = vmul.f32 %v2991, %v3002
        %v3009 = vmul.f32 %v2997, %v3001
        %v3010 = vmul.f32 %v2992, %v3002
        %v3011 = vmul.f32 %v2998, %v3001
        %v3012 = vmul.f32 %v2993, %v3002
        %v3013 = vmul.f32 %v2999, %v3001
        %v3014 = vmul.f32 %v2994, %v3002
        %3015 = vst [vmem:[#allocation2 + $0x90] sm:$0xff] %v3005
        %3016 = vst [vmem:[#allocation2 + $0x98] sm:$0xff] %v3006
        %3017 = vst [vmem:[#allocation2 + $0xa0] sm:$0xff] %v3007
        %3018 = vst [vmem:[#allocation2 + $0xa8] sm:$0xff] %v3008
        %3019 = vst [vmem:[#allocation2 + $0xb0] sm:$0xff] %v3009
        %3020 = vst [vmem:[#allocation2 + $0xb8] sm:$0xff] %v3010
        %3021 = vst [vmem:[#allocation2 + $0xc0] sm:$0xff] %v3011
        %3022 = vst [vmem:[#allocation2 + $0xc8] sm:$0xff] %v3012
        %3023 = vst [vmem:[#allocation2 + $0xd0] sm:$0xf] %v3013
        %3024 = vst [vmem:[#allocation2 + $0xd8] sm:$0xf] %v3014
        %v3025 = vld [vmem:[%s1059] ss:$8 sm:$0x3]
        %3026 = vrot.lane.b32.xlu0 %v2809, 1
        %v3027 = vpop.permute.xlu0 %3026
        %3028 = vrot.lane.b32.xlu0 %v2811, 1
        %v3029 = vpop.permute.xlu0 %3028
        %3030 = vrot.lane.b32.xlu0 %v2813, 1
        %v3031 = vpop.permute.xlu0 %3030
        %3032 = vrot.lane.b32.xlu0 %v2815, 1
        %v3033 = vpop.permute.xlu0 %3032
        %3034 = vrot.lane.b32.xlu0 %v2817, 1
        %v3035 = vpop.permute.xlu0 %3034
        %3036 = vrot.lane.b32.xlu0 %v2810, 1
        %v3037 = vpop.permute.xlu0 %3036
        %3038 = vrot.lane.b32.xlu0 %v2812, 1
        %v3039 = vpop.permute.xlu0 %3038
        %3040 = vrot.lane.b32.xlu0 %v2814, 1
        %v3041 = vpop.permute.xlu0 %3040
        %3042 = vrot.lane.b32.xlu0 %v2816, 1
        %v3043 = vpop.permute.xlu0 %3042
        %3044 = vrot.lane.b32.xlu0 %v2818, 1
        %v3045 = vpop.permute.xlu0 %3044
        %v3046 = vsel %vm1081, %v3027, %v3037
        %v3047 = vsel %vm1081, %v3029, %v3039
        %v3048 = vsel %vm1081, %v3031, %v3041
        %v3049 = vsel %vm1081, %v3033, %v3043
        %v3050 = vsel %vm1081, %v3035, %v3045
        %v3051 = vsel %vm1081, %v3037, %v3027
        %v3052 = vsel %vm1081, %v3039, %v3029
        %v3053 = vsel %vm1081, %v3041, %v3031
        %v3054 = vsel %vm1081, %v3043, %v3033
        %v3055 = vsel %vm1081, %v3045, %v3035
        %v3057 = vperm.slane %v3025, 0
        %v3058 = vperm.slane %v3025, 1
        %v3061 = vmul.f32 %v3051, %v3057
        %v3062 = vmul.f32 %v3046, %v3058
        %v3063 = vmul.f32 %v3052, %v3057
        %v3064 = vmul.f32 %v3047, %v3058
        %v3065 = vmul.f32 %v3053, %v3057
        %v3066 = vmul.f32 %v3048, %v3058
        %v3067 = vmul.f32 %v3054, %v3057
        %v3068 = vmul.f32 %v3049, %v3058
        %v3069 = vmul.f32 %v3055, %v3057
        %v3070 = vmul.f32 %v3050, %v3058
        %v3081 = vrot.slane %v3061, 4
        %v3082 = vrot.slane %v3062, 4
        %v3083 = vrot.slane %v3063, 4
        %v3084 = vsel %vm962, %v3081, %v3083
        %v3085 = vrot.slane %v3064, 4
        %v3086 = vsel %vm962, %v3082, %v3085
        %v3087 = vrot.slane %v3065, 4
        %v3088 = vsel %vm962, %v3083, %v3087
        %v3089 = vrot.slane %v3066, 4
        %v3090 = vsel %vm962, %v3085, %v3089
        %v3091 = vrot.slane %v3067, 4
        %v3092 = vsel %vm962, %v3087, %v3091
        %v3093 = vrot.slane %v3068, 4
        %v3094 = vsel %vm962, %v3089, %v3093
        %v3095 = vrot.slane %v3069, 4
        %v3096 = vsel %vm962, %v3091, %v3095
        %v3097 = vrot.slane %v3070, 4
        %v3098 = vsel %vm962, %v3093, %v3097
        %3109 = vst [vmem:[#allocation2 + $0xd0] sm:$0xf0] %v3081
        %3110 = vst [vmem:[#allocation2 + $0xd8] sm:$0xf0] %v3082
        %3111 = vst [vmem:[#allocation2 + $0xe0] sm:$0xff] %v3084
        %3112 = vst [vmem:[#allocation2 + $0xe8] sm:$0xff] %v3086
        %3113 = vst [vmem:[#allocation2 + $0xf0] sm:$0xff] %v3088
        %3114 = vst [vmem:[#allocation2 + $0xf8] sm:$0xff] %v3090
        %3115 = vst [vmem:[#allocation2 + $0x100] sm:$0xff] %v3092
        %3116 = vst [vmem:[#allocation2 + $0x108] sm:$0xff] %v3094
        %3117 = vst [vmem:[#allocation2 + $0x110] sm:$0xff] %v3096
        %3118 = vst [vmem:[#allocation2 + $0x118] sm:$0xff] %v3098
        %3119 = vst [vmem:[#allocation2 + $0x120] sm:$0xff] %v2809
        %3120 = vst [vmem:[#allocation2 + $0x128] sm:$0xff] %v2810
        %3121 = vst [vmem:[#allocation2 + $0x130] sm:$0xff] %v2811
        %3122 = vst [vmem:[#allocation2 + $0x138] sm:$0xff] %v2812
        %3123 = vst [vmem:[#allocation2 + $0x140] sm:$0xff] %v2813
        %3124 = vst [vmem:[#allocation2 + $0x148] sm:$0xff] %v2814
        %3125 = vst [vmem:[#allocation2 + $0x150] sm:$0xff] %v2815
        %3126 = vst [vmem:[#allocation2 + $0x158] sm:$0xff] %v2816
        %3127 = vst [vmem:[#allocation2 + $0x160] sm:$0xf] %v2817
        %3128 = vst [vmem:[#allocation2 + $0x168] sm:$0xf] %v2818
        %v3129 = vld [vmem:[%s1165] ss:$8 sm:$0x3]
        %3130 = vrot.lane.b32.xlu0 %v2809, 127
        %v3131 = vpop.permute.xlu0 %3130
        %3132 = vrot.lane.b32.xlu0 %v2811, 127
        %v3133 = vpop.permute.xlu0 %3132
        %3134 = vrot.lane.b32.xlu0 %v2813, 127
        %v3135 = vpop.permute.xlu0 %3134
        %3136 = vrot.lane.b32.xlu0 %v2815, 127
        %v3137 = vpop.permute.xlu0 %3136
        %3138 = vrot.lane.b32.xlu0 %v2817, 127
        %v3139 = vpop.permute.xlu0 %3138
        %3140 = vrot.lane.b32.xlu0 %v2810, 127
        %v3141 = vpop.permute.xlu0 %3140
        %3142 = vrot.lane.b32.xlu0 %v2812, 127
        %v3143 = vpop.permute.xlu0 %3142
        %3144 = vrot.lane.b32.xlu0 %v2814, 127
        %v3145 = vpop.permute.xlu0 %3144
        %3146 = vrot.lane.b32.xlu0 %v2816, 127
        %v3147 = vpop.permute.xlu0 %3146
        %3148 = vrot.lane.b32.xlu0 %v2818, 127
        %v3149 = vpop.permute.xlu0 %3148
        %v3150 = vsel %vm1187, %v3131, %v3141
        %v3151 = vsel %vm1187, %v3133, %v3143
        %v3152 = vsel %vm1187, %v3135, %v3145
        %v3153 = vsel %vm1187, %v3137, %v3147
        %v3154 = vsel %vm1187, %v3139, %v3149
        %v3155 = vsel %vm1187, %v3141, %v3131
        %v3156 = vsel %vm1187, %v3143, %v3133
        %v3157 = vsel %vm1187, %v3145, %v3135
        %v3158 = vsel %vm1187, %v3147, %v3137
        %v3159 = vsel %vm1187, %v3149, %v3139
        %v3161 = vperm.slane %v3129, 0
        %v3162 = vperm.slane %v3129, 1
        %v3165 = vmul.f32 %v3150, %v3161
        %v3166 = vmul.f32 %v3155, %v3162
        %v3167 = vmul.f32 %v3151, %v3161
        %v3168 = vmul.f32 %v3156, %v3162
        %v3169 = vmul.f32 %v3152, %v3161
        %v3170 = vmul.f32 %v3157, %v3162
        %v3171 = vmul.f32 %v3153, %v3161
        %v3172 = vmul.f32 %v3158, %v3162
        %v3173 = vmul.f32 %v3154, %v3161
        %v3174 = vmul.f32 %v3159, %v3162
        %v3185 = vrot.slane %v3165, 4
        %v3186 = vrot.slane %v3166, 4
        %v3187 = vrot.slane %v3167, 4
        %v3188 = vsel %vm962, %v3185, %v3187
        %v3189 = vrot.slane %v3168, 4
        %v3190 = vsel %vm962, %v3186, %v3189
        %v3191 = vrot.slane %v3169, 4
        %v3192 = vsel %vm962, %v3187, %v3191
        %v3193 = vrot.slane %v3170, 4
        %v3194 = vsel %vm962, %v3189, %v3193
        %v3195 = vrot.slane %v3171, 4
        %v3196 = vsel %vm962, %v3191, %v3195
        %v3197 = vrot.slane %v3172, 4
        %v3198 = vsel %vm962, %v3193, %v3197
        %v3199 = vrot.slane %v3173, 4
        %v3200 = vsel %vm962, %v3195, %v3199
        %v3201 = vrot.slane %v3174, 4
        %v3202 = vsel %vm962, %v3197, %v3201
        %3213 = vst [vmem:[#allocation2 + $0x160] sm:$0xf0] %v3185
        %3214 = vst [vmem:[#allocation2 + $0x168] sm:$0xf0] %v3186
        %3215 = vst [vmem:[#allocation2 + $0x170] sm:$0xff] %v3188
        %3216 = vst [vmem:[#allocation2 + $0x178] sm:$0xff] %v3190
        %3217 = vst [vmem:[#allocation2 + $0x180] sm:$0xff] %v3192
        %3218 = vst [vmem:[#allocation2 + $0x188] sm:$0xff] %v3194
        %3219 = vst [vmem:[#allocation2 + $0x190] sm:$0xff] %v3196
        %3220 = vst [vmem:[#allocation2 + $0x198] sm:$0xff] %v3198
        %3221 = vst [vmem:[#allocation2 + $0x1a0] sm:$0xff] %v3200
        %3222 = vst [vmem:[#allocation2 + $0x1a8] sm:$0xff] %v3202
        %v3223 = vld [vmem:[%s1261] ss:$8 sm:$0x3]
        %3224 = vrot.lane.b32.xlu0 %v2809, 113
        %v3225 = vpop.permute.xlu0 %3224
        %3226 = vrot.lane.b32.xlu0 %v2811, 113
        %v3227 = vpop.permute.xlu0 %3226
        %3228 = vrot.lane.b32.xlu0 %v2813, 113
        %v3229 = vpop.permute.xlu0 %3228
        %3230 = vrot.lane.b32.xlu0 %v2815, 113
        %v3231 = vpop.permute.xlu0 %3230
        %3232 = vrot.lane.b32.xlu0 %v2817, 113
        %v3233 = vpop.permute.xlu0 %3232
        %3234 = vrot.lane.b32.xlu0 %v2810, 113
        %v3235 = vpop.permute.xlu0 %3234
        %3236 = vrot.lane.b32.xlu0 %v2812, 113
        %v3237 = vpop.permute.xlu0 %3236
        %3238 = vrot.lane.b32.xlu0 %v2814, 113
        %v3239 = vpop.permute.xlu0 %3238
        %3240 = vrot.lane.b32.xlu0 %v2816, 113
        %v3241 = vpop.permute.xlu0 %3240
        %3242 = vrot.lane.b32.xlu0 %v2818, 113
        %v3243 = vpop.permute.xlu0 %3242
        %v3244 = vsel %vm1283, %v3225, %v3235
        %v3245 = vsel %vm1283, %v3227, %v3237
        %v3246 = vsel %vm1283, %v3229, %v3239
        %v3247 = vsel %vm1283, %v3231, %v3241
        %v3248 = vsel %vm1283, %v3233, %v3243
        %v3249 = vsel %vm1283, %v3235, %v3225
        %v3250 = vsel %vm1283, %v3237, %v3227
        %v3251 = vsel %vm1283, %v3239, %v3229
        %v3252 = vsel %vm1283, %v3241, %v3231
        %v3253 = vsel %vm1283, %v3243, %v3233
        %v3255 = vperm.slane %v3223, 0
        %v3256 = vperm.slane %v3223, 1
        %v3259 = vmul.f32 %v3244, %v3255
        %v3260 = vmul.f32 %v3249, %v3256
        %v3261 = vmul.f32 %v3245, %v3255
        %v3262 = vmul.f32 %v3250, %v3256
        %v3263 = vmul.f32 %v3246, %v3255
        %v3264 = vmul.f32 %v3251, %v3256
        %v3265 = vmul.f32 %v3247, %v3255
        %v3266 = vmul.f32 %v3252, %v3256
        %v3267 = vmul.f32 %v3248, %v3255
        %v3268 = vmul.f32 %v3253, %v3256
        %3269 = vst [vmem:[#allocation2 + $0x1b0] sm:$0xff] %v3259
        %3270 = vst [vmem:[#allocation2 + $0x1b8] sm:$0xff] %v3260
        %3271 = vst [vmem:[#allocation2 + $0x1c0] sm:$0xff] %v3261
        %3272 = vst [vmem:[#allocation2 + $0x1c8] sm:$0xff] %v3262
        %3273 = vst [vmem:[#allocation2 + $0x1d0] sm:$0xff] %v3263
        %3274 = vst [vmem:[#allocation2 + $0x1d8] sm:$0xff] %v3264
        %3275 = vst [vmem:[#allocation2 + $0x1e0] sm:$0xff] %v3265
        %3276 = vst [vmem:[#allocation2 + $0x1e8] sm:$0xff] %v3266
        %3277 = vst [vmem:[#allocation2 + $0x1f0] sm:$0xf] %v3267
        %3278 = vst [vmem:[#allocation2 + $0x1f8] sm:$0xf] %v3268
        %v3279 = vld [vmem:[%s1319] ss:$8 sm:$0x3]
        %3280 = vrot.lane.b32.xlu0 %v2809, 112
        %v3281 = vpop.permute.xlu0 %3280
        %3282 = vrot.lane.b32.xlu0 %v2811, 112
        %v3283 = vpop.permute.xlu0 %3282
        %3284 = vrot.lane.b32.xlu0 %v2813, 112
        %v3285 = vpop.permute.xlu0 %3284
        %3286 = vrot.lane.b32.xlu0 %v2815, 112
        %v3287 = vpop.permute.xlu0 %3286
        %3288 = vrot.lane.b32.xlu0 %v2817, 112
        %v3289 = vpop.permute.xlu0 %3288
        %3290 = vrot.lane.b32.xlu0 %v2810, 112
        %v3291 = vpop.permute.xlu0 %3290
        %3292 = vrot.lane.b32.xlu0 %v2812, 112
        %v3293 = vpop.permute.xlu0 %3292
        %3294 = vrot.lane.b32.xlu0 %v2814, 112
        %v3295 = vpop.permute.xlu0 %3294
        %3296 = vrot.lane.b32.xlu0 %v2816, 112
        %v3297 = vpop.permute.xlu0 %3296
        %3298 = vrot.lane.b32.xlu0 %v2818, 112
        %v3299 = vpop.permute.xlu0 %3298
        %v3300 = vsel %vm1341, %v3281, %v3291
        %v3301 = vsel %vm1341, %v3283, %v3293
        %v3302 = vsel %vm1341, %v3285, %v3295
        %v3303 = vsel %vm1341, %v3287, %v3297
        %v3304 = vsel %vm1341, %v3289, %v3299
        %v3305 = vsel %vm1341, %v3291, %v3281
        %v3306 = vsel %vm1341, %v3293, %v3283
        %v3307 = vsel %vm1341, %v3295, %v3285
        %v3308 = vsel %vm1341, %v3297, %v3287
        %v3309 = vsel %vm1341, %v3299, %v3289
        %v3311 = vperm.slane %v3279, 0
        %v3312 = vperm.slane %v3279, 1
        %v3315 = vmul.f32 %v3300, %v3311
        %v3316 = vmul.f32 %v3305, %v3312
        %v3317 = vmul.f32 %v3301, %v3311
        %v3318 = vmul.f32 %v3306, %v3312
        %v3319 = vmul.f32 %v3302, %v3311
        %v3320 = vmul.f32 %v3307, %v3312
        %v3321 = vmul.f32 %v3303, %v3311
        %v3322 = vmul.f32 %v3308, %v3312
        %v3323 = vmul.f32 %v3304, %v3311
        %v3324 = vmul.f32 %v3309, %v3312
        %v3335 = vrot.slane %v3315, 4
        %v3336 = vrot.slane %v3316, 4
        %v3337 = vrot.slane %v3317, 4
        %v3338 = vsel %vm962, %v3335, %v3337
        %v3339 = vrot.slane %v3318, 4
        %v3340 = vsel %vm962, %v3336, %v3339
        %v3341 = vrot.slane %v3319, 4
        %v3342 = vsel %vm962, %v3337, %v3341
        %v3343 = vrot.slane %v3320, 4
        %v3344 = vsel %vm962, %v3339, %v3343
        %v3345 = vrot.slane %v3321, 4
        %v3346 = vsel %vm962, %v3341, %v3345
        %v3347 = vrot.slane %v3322, 4
        %v3348 = vsel %vm962, %v3343, %v3347
        %v3349 = vrot.slane %v3323, 4
        %v3350 = vsel %vm962, %v3345, %v3349
        %v3351 = vrot.slane %v3324, 4
        %v3352 = vsel %vm962, %v3347, %v3351
        %3363 = vst [vmem:[#allocation2 + $0x1f0] sm:$0xf0] %v3335
        %3364 = vst [vmem:[#allocation2 + $0x1f8] sm:$0xf0] %v3336
        %3365 = vst [vmem:[#allocation2 + $0x200] sm:$0xff] %v3338
        %3366 = vst [vmem:[#allocation2 + $0x208] sm:$0xff] %v3340
        %3367 = vst [vmem:[#allocation2 + $0x210] sm:$0xff] %v3342
        %3368 = vst [vmem:[#allocation2 + $0x218] sm:$0xff] %v3344
        %3369 = vst [vmem:[#allocation2 + $0x220] sm:$0xff] %v3346
        %3370 = vst [vmem:[#allocation2 + $0x228] sm:$0xff] %v3348
        %3371 = vst [vmem:[#allocation2 + $0x230] sm:$0xff] %v3350
        %3372 = vst [vmem:[#allocation2 + $0x238] sm:$0xff] %v3352
        %v3373 = vld [vmem:[%s1415] ss:$8 sm:$0x3]
        %3374 = vrot.lane.b32.xlu0 %v2809, 111
        %v3375 = vpop.permute.xlu0 %3374
        %3376 = vrot.lane.b32.xlu0 %v2811, 111
        %v3377 = vpop.permute.xlu0 %3376
        %3378 = vrot.lane.b32.xlu0 %v2813, 111
        %v3379 = vpop.permute.xlu0 %3378
        %3380 = vrot.lane.b32.xlu0 %v2815, 111
        %v3381 = vpop.permute.xlu0 %3380
        %3382 = vrot.lane.b32.xlu0 %v2817, 111
        %v3383 = vpop.permute.xlu0 %3382
        %3384 = vrot.lane.b32.xlu0 %v2810, 111
        %v3385 = vpop.permute.xlu0 %3384
        %3386 = vrot.lane.b32.xlu0 %v2812, 111
        %v3387 = vpop.permute.xlu0 %3386
        %3388 = vrot.lane.b32.xlu0 %v2814, 111
        %v3389 = vpop.permute.xlu0 %3388
        %3390 = vrot.lane.b32.xlu0 %v2816, 111
        %v3391 = vpop.permute.xlu0 %3390
        %3392 = vrot.lane.b32.xlu0 %v2818, 111
        %v3393 = vpop.permute.xlu0 %3392
        %v3394 = vsel %vm1437, %v3375, %v3385
        %v3395 = vsel %vm1437, %v3377, %v3387
        %v3396 = vsel %vm1437, %v3379, %v3389
        %v3397 = vsel %vm1437, %v3381, %v3391
        %v3398 = vsel %vm1437, %v3383, %v3393
        %v3399 = vsel %vm1437, %v3385, %v3375
        %v3400 = vsel %vm1437, %v3387, %v3377
        %v3401 = vsel %vm1437, %v3389, %v3379
        %v3402 = vsel %vm1437, %v3391, %v3381
        %v3403 = vsel %vm1437, %v3393, %v3383
        %v3405 = vperm.slane %v3373, 0
        %v3406 = vperm.slane %v3373, 1
        %v3409 = vmul.f32 %v3394, %v3405
        %v3410 = vmul.f32 %v3399, %v3406
        %v3411 = vmul.f32 %v3395, %v3405
        %v3412 = vmul.f32 %v3400, %v3406
        %v3413 = vmul.f32 %v3396, %v3405
        %v3414 = vmul.f32 %v3401, %v3406
        %v3415 = vmul.f32 %v3397, %v3405
        %v3416 = vmul.f32 %v3402, %v3406
        %v3417 = vmul.f32 %v3398, %v3405
        %v3418 = vmul.f32 %v3403, %v3406
        %3419 = vst [vmem:[#allocation2 + $0x240] sm:$0xff] %v3409
        %3420 = vst [vmem:[#allocation2 + $0x248] sm:$0xff] %v3410
        %3421 = vst [vmem:[#allocation2 + $0x250] sm:$0xff] %v3411
        %3422 = vst [vmem:[#allocation2 + $0x258] sm:$0xff] %v3412
        %3423 = vst [vmem:[#allocation2 + $0x260] sm:$0xff] %v3413
        %3424 = vst [vmem:[#allocation2 + $0x268] sm:$0xff] %v3414
        %3425 = vst [vmem:[#allocation2 + $0x270] sm:$0xff] %v3415
        %3426 = vst [vmem:[#allocation2 + $0x278] sm:$0xff] %v3416
        %3427 = vst [vmem:[#allocation2 + $0x280] sm:$0xf] %v3417
        %3428 = vst [vmem:[#allocation2 + $0x288] sm:$0xf] %v3418
        %v3429 = vld [vmem:[#allocation2] sm:$0xff]
        %v3430 = vld [vmem:[#allocation2 + $0x8] sm:$0xff]
        %v3431 = vld [vmem:[#allocation2 + $0x10] sm:$0xff]
        %v3432 = vld [vmem:[#allocation2 + $0x18] sm:$0xff]
        %v3433 = vld [vmem:[#allocation2 + $0x20] sm:$0xff]
        %v3434 = vld [vmem:[#allocation2 + $0x28] sm:$0xff]
        %v3435 = vld [vmem:[#allocation2 + $0x30] sm:$0xff]
        %v3436 = vld [vmem:[#allocation2 + $0x38] sm:$0xff]
        %v3437 = vld [vmem:[#allocation2 + $0x40] sm:$0xff]
        %v3438 = vld [vmem:[#allocation2 + $0x48] sm:$0xff]
        %v3439 = vld [vmem:[#allocation2 + $0x50] sm:$0xff]
        %v3440 = vld [vmem:[#allocation2 + $0x58] sm:$0xff]
        %v3441 = vld [vmem:[#allocation2 + $0x60] sm:$0xff]
        %v3442 = vld [vmem:[#allocation2 + $0x68] sm:$0xff]
        %v3443 = vld [vmem:[#allocation2 + $0x70] sm:$0xff]
        %v3444 = vld [vmem:[#allocation2 + $0x78] sm:$0xff]
        %v3445 = vld [vmem:[#allocation2 + $0x80] sm:$0xff]
        %v3446 = vld [vmem:[#allocation2 + $0x88] sm:$0xff]
        %v3447 = vld [vmem:[#allocation2 + $0x90] sm:$0xff]
        %v3448 = vld [vmem:[#allocation2 + $0x98] sm:$0xff]
        %v3449 = vld [vmem:[#allocation2 + $0xa0] sm:$0xff]
        %v3450 = vld [vmem:[#allocation2 + $0xa8] sm:$0xff]
        %v3451 = vld [vmem:[#allocation2 + $0xb0] sm:$0xff]
        %v3452 = vld [vmem:[#allocation2 + $0xb8] sm:$0xff]
        %v3453 = vld [vmem:[#allocation2 + $0xc0] sm:$0xff]
        %v3454 = vld [vmem:[#allocation2 + $0xc8] sm:$0xff]
        %v3455 = vld [vmem:[#allocation2 + $0xd0] sm:$0xff]
        %v3456 = vld [vmem:[#allocation2 + $0xd8] sm:$0xff]
        %v3457 = vld [vmem:[#allocation2 + $0xe0] sm:$0xff]
        %v3458 = vld [vmem:[#allocation2 + $0xe8] sm:$0xff]
        %v3459 = vld [vmem:[#allocation2 + $0xf0] sm:$0xff]
        %v3460 = vld [vmem:[#allocation2 + $0xf8] sm:$0xff]
        %v3461 = vld [vmem:[#allocation2 + $0x100] sm:$0xff]
        %v3462 = vld [vmem:[#allocation2 + $0x108] sm:$0xff]
        %v3463 = vld [vmem:[#allocation2 + $0x110] sm:$0xff]
        %v3464 = vld [vmem:[#allocation2 + $0x118] sm:$0xff]
        %v3465 = vld [vmem:[#allocation2 + $0x120] sm:$0xff]
        %v3466 = vld [vmem:[#allocation2 + $0x128] sm:$0xff]
        %v3467 = vld [vmem:[#allocation2 + $0x130] sm:$0xff]
        %v3468 = vld [vmem:[#allocation2 + $0x138] sm:$0xff]
        %v3469 = vld [vmem:[#allocation2 + $0x140] sm:$0xff]
        %v3470 = vld [vmem:[#allocation2 + $0x148] sm:$0xff]
        %v3471 = vld [vmem:[#allocation2 + $0x150] sm:$0xff]
        %v3472 = vld [vmem:[#allocation2 + $0x158] sm:$0xff]
        %v3473 = vld [vmem:[#allocation2 + $0x160] sm:$0xff]
        %v3474 = vld [vmem:[#allocation2 + $0x168] sm:$0xff]
        %v3475 = vld [vmem:[#allocation2 + $0x170] sm:$0xff]
        %v3476 = vld [vmem:[#allocation2 + $0x178] sm:$0xff]
        %v3477 = vld [vmem:[#allocation2 + $0x180] sm:$0xff]
        %v3478 = vld [vmem:[#allocation2 + $0x188] sm:$0xff]
        %v3479 = vld [vmem:[#allocation2 + $0x190] sm:$0xff]
        %v3480 = vld [vmem:[#allocation2 + $0x198] sm:$0xff]
        %v3481 = vld [vmem:[#allocation2 + $0x1a0] sm:$0xff]
        %v3482 = vld [vmem:[#allocation2 + $0x1a8] sm:$0xff]
        %v3483 = vld [vmem:[#allocation2 + $0x1b0] sm:$0xff]
        %v3484 = vld [vmem:[#allocation2 + $0x1b8] sm:$0xff]
        %v3485 = vld [vmem:[#allocation2 + $0x1c0] sm:$0xff]
        %v3486 = vld [vmem:[#allocation2 + $0x1c8] sm:$0xff]
        %v3487 = vld [vmem:[#allocation2 + $0x1d0] sm:$0xff]
        %v3488 = vld [vmem:[#allocation2 + $0x1d8] sm:$0xff]
        %v3489 = vld [vmem:[#allocation2 + $0x1e0] sm:$0xff]
        %v3490 = vld [vmem:[#allocation2 + $0x1e8] sm:$0xff]
        %v3491 = vld [vmem:[#allocation2 + $0x1f0] sm:$0xff]
        %v3492 = vld [vmem:[#allocation2 + $0x1f8] sm:$0xff]
        %v3493 = vld [vmem:[#allocation2 + $0x200] sm:$0xff]
        %v3494 = vld [vmem:[#allocation2 + $0x208] sm:$0xff]
        %v3495 = vld [vmem:[#allocation2 + $0x210] sm:$0xff]
        %v3496 = vld [vmem:[#allocation2 + $0x218] sm:$0xff]
        %v3497 = vld [vmem:[#allocation2 + $0x220] sm:$0xff]
        %v3498 = vld [vmem:[#allocation2 + $0x228] sm:$0xff]
        %v3499 = vld [vmem:[#allocation2 + $0x230] sm:$0xff]
        %v3500 = vld [vmem:[#allocation2 + $0x238] sm:$0xff]
        %v3501 = vld [vmem:[#allocation2 + $0x240] sm:$0xff]
        %v3502 = vld [vmem:[#allocation2 + $0x248] sm:$0xff]
        %v3503 = vld [vmem:[#allocation2 + $0x250] sm:$0xff]
        %v3504 = vld [vmem:[#allocation2 + $0x258] sm:$0xff]
        %v3505 = vld [vmem:[#allocation2 + $0x260] sm:$0xff]
        %v3506 = vld [vmem:[#allocation2 + $0x268] sm:$0xff]
        %v3507 = vld [vmem:[#allocation2 + $0x270] sm:$0xff]
        %v3508 = vld [vmem:[#allocation2 + $0x278] sm:$0xff]
        %v3509 = vld [vmem:[#allocation2 + $0x280] sm:$0xf]
        %v3510 = vld [vmem:[#allocation2 + $0x288] sm:$0xf]
        %v3511 = vpack.c.bf16 %v3431, %v3429
        %v3512 = vpack.c.bf16 %v3432, %v3430
        %v3513 = vpack.c.bf16 %v3435, %v3433
        %v3514 = vpack.c.bf16 %v3436, %v3434
        %v3515 = vpack.c.bf16 %v3439, %v3437
        %v3516 = vpack.c.bf16 %v3440, %v3438
        %v3517 = vpack.c.bf16 %v3443, %v3441
        %v3518 = vpack.c.bf16 %v3444, %v3442
        %v3519 = vpack.c.bf16 %v3447, %v3445
        %v3520 = vpack.c.bf16 %v3448, %v3446
        %v3521 = vpack.c.bf16 %v3451, %v3449
        %v3522 = vpack.c.bf16 %v3452, %v3450
        %v3523 = vpack.c.bf16 %v3455, %v3453
        %v3524 = vpack.c.bf16 %v3456, %v3454
        %v3525 = vpack.c.bf16 %v3459, %v3457
        %v3526 = vpack.c.bf16 %v3460, %v3458
        %v3527 = vpack.c.bf16 %v3463, %v3461
        %v3528 = vpack.c.bf16 %v3464, %v3462
        %v3529 = vpack.c.bf16 %v3467, %v3465
        %v3530 = vpack.c.bf16 %v3468, %v3466
        %v3531 = vpack.c.bf16 %v3471, %v3469
        %v3532 = vpack.c.bf16 %v3472, %v3470
        %v3533 = vpack.c.bf16 %v3475, %v3473
        %v3534 = vpack.c.bf16 %v3476, %v3474
        %v3535 = vpack.c.bf16 %v3479, %v3477
        %v3536 = vpack.c.bf16 %v3480, %v3478
        %v3537 = vpack.c.bf16 %v3483, %v3481
        %v3538 = vpack.c.bf16 %v3484, %v3482
        %v3539 = vpack.c.bf16 %v3487, %v3485
        %v3540 = vpack.c.bf16 %v3488, %v3486
        %v3541 = vpack.c.bf16 %v3491, %v3489
        %v3542 = vpack.c.bf16 %v3492, %v3490
        %v3543 = vpack.c.bf16 %v3495, %v3493
        %v3544 = vpack.c.bf16 %v3496, %v3494
        %v3545 = vpack.c.bf16 %v3499, %v3497
        %v3546 = vpack.c.bf16 %v3500, %v3498
        %v3547 = vpack.c.bf16 %v3503, %v3501
        %v3548 = vpack.c.bf16 %v3504, %v3502
        %v3549 = vpack.c.bf16 %v3507, %v3505
        %v3550 = vpack.c.bf16 %v3508, %v3506
        %v3551 = vpack.c.bf16 %v3509, %v3509
        %v3552 = vpack.c.bf16 %v3510, %v3510
        %v3553 = vld [vmem:[%s11] sm:$0xff]
        %v3554 = vld [vmem:[%s11 + $0x8] sm:$0xf]
        %v3555 = vld [vmem:[%s11 + $0xc] sm:$0xff]
        %v3556 = vld [vmem:[%s11 + $0x14] sm:$0xf]
        %v3557 = vld [vmem:[%s11 + $0x18] sm:$0xff]
        %v3558 = vld [vmem:[%s11 + $0x20] sm:$0xf]
        %v3559 = vld [vmem:[%s11 + $0x24] sm:$0xff]
        %v3560 = vld [vmem:[%s11 + $0x2c] sm:$0xf]
        %v3561 = vld [vmem:[%s12] sm:$0xff]
        %v3562 = vld [vmem:[%s12 + $0x8] sm:$0xff]
        %v3563 = vld [vmem:[%s12 + $0x10] sm:$0xff]
        %v3564 = vld [vmem:[%s12 + $0x18] sm:$0xff]
        %3566 = vset.pattern.permute.xlu0 0
        %3567 = vperm.xlu0 %3566, %v3561
        %v3568 = vpop.permute.xlu0 %3567
        %3571 = vset.pattern.permute.xlu0 0
        %3572 = vperm.xlu0 %3571, %v3562
        %v3573 = vpop.permute.xlu0 %3572
        %3576 = vset.pattern.permute.xlu0 0
        %3577 = vperm.xlu0 %3576, %v3563
        %v3578 = vpop.permute.xlu0 %3577
        %3581 = vset.pattern.permute.xlu0 0
        %3582 = vperm.xlu0 %3581, %v3564
        %v3583 = vpop.permute.xlu0 %3582
        %v3593 = vunpack.c.l.b16 %v3553
        %v3594 = vunpack.c.h.b16 %v3553
        %v3595 = vunpack.c.l.b16 %v3554
        %v3596 = vunpack.c.l.b16 %v3555
        %v3597 = vunpack.c.h.b16 %v3555
        %v3598 = vunpack.c.l.b16 %v3556
        %v3599 = vunpack.c.l.b16 %v3557
        %v3600 = vunpack.c.h.b16 %v3557
        %v3601 = vunpack.c.l.b16 %v3558
        %v3602 = vunpack.c.l.b16 %v3559
        %v3603 = vunpack.c.h.b16 %v3559
        %v3604 = vunpack.c.l.b16 %v3560
        %v3605 = vpack.c.b16 %v3596, %v3593
        %v3606 = vpack.c.b16 %v3597, %v3594
        %v3607 = vpack.c.b16 %v3598, %v3595
        %v3608 = vpack.c.b16 %v3602, %v3599
        %v3609 = vpack.c.b16 %v3603, %v3600
        %v3610 = vpack.c.b16 %v3604, %v3601
        %v3616 = vsel %vm1677, %v3607, 0
        %v3619 = vsel %vm1677, %v3610, 0
        %v3622 = vsel %vm1687, %v3551, 0
        %v3625 = vsel %vm1687, %v3552, 0
        %3627 = vmatpush.bf16.msra.mxu0 %v3525
        %3628 = vmatpush.bf16.msra.mxu0 %v3523
        %3629 = vmatpush.bf16.msra.mxu0 %v3521
        %3630 = vmatpush.bf16.msra.mxu0 %v3519
        %3631 = vmatpush.bf16.msra.mxu0 %v3517
        %3632 = vmatpush.bf16.msra.mxu0 %v3515
        %3633 = vmatpush.bf16.msra.mxu0 %v3513
        %3634 = vmatpush.bf16.msra.mxu0 %v3511
        %3635 = vmatmul.bf16.gmra.mxu0 %v3605
        %v3636 = vpop.f32.mrf.mxu0
        %v3637 = vadd.f32 %v3568, %v3636
        %v3638 = vpop.f32.mrf.mxu0
        %v3639 = vadd.f32 %v3573, %v3638
        %3640 = vmatmul.bf16.gmra.mxu0 %v3608
        %v3641 = vpop.f32.mrf.mxu0
        %v3642 = vadd.f32 %v3578, %v3641
        %v3643 = vpop.f32.mrf.mxu0
        %v3644 = vadd.f32 %v3583, %v3643
        %3645 = vdwg.mxu0
        %3646 = vmatpush.bf16.msra.mxu0 %v3541
        %3647 = vmatpush.bf16.msra.mxu0 %v3539
        %3648 = vmatpush.bf16.msra.mxu0 %v3537
        %3649 = vmatpush.bf16.msra.mxu0 %v3535
        %3650 = vmatpush.bf16.msra.mxu0 %v3533
        %3651 = vmatpush.bf16.msra.mxu0 %v3531
        %3652 = vmatpush.bf16.msra.mxu0 %v3529
        %3653 = vmatpush.bf16.msra.mxu0 %v3527
        %3654 = vmatmul.bf16.gmra.mxu0 %v3606
        %v3655 = vpop.f32.mrf.mxu0
        %v3656 = vadd.f32 %v3637, %v3655
        %v3657 = vpop.f32.mrf.mxu0
        %v3658 = vadd.f32 %v3639, %v3657
        %3659 = vmatmul.bf16.gmra.mxu0 %v3609
        %v3660 = vpop.f32.mrf.mxu0
        %v3661 = vadd.f32 %v3642, %v3660
        %v3662 = vpop.f32.mrf.mxu0
        %v3663 = vadd.f32 %v3644, %v3662
        %3664 = vdwg.mxu0
        %3665 = vmatpush.bf16.msra.mxu0 0
        %3666 = vmatpush.bf16.msra.mxu0 0
        %3667 = vmatpush.bf16.msra.mxu0 0
        %3668 = vmatpush.bf16.msra.mxu0 %v3622
        %3669 = vmatpush.bf16.msra.mxu0 %v3549
        %3670 = vmatpush.bf16.msra.mxu0 %v3547
        %3671 = vmatpush.bf16.msra.mxu0 %v3545
        %3672 = vmatpush.bf16.msra.mxu0 %v3543
        %3673 = vmatmul.bf16.gmra.mxu0 %v3616
        %v3674 = vpop.f32.mrf.mxu0
        %v3675 = vadd.f32 %v3656, %v3674
        %v3676 = vpop.f32.mrf.mxu0
        %v3677 = vadd.f32 %v3658, %v3676
        %3678 = vmatmul.bf16.gmra.mxu0 %v3619
        %v3679 = vpop.f32.mrf.mxu0
        %v3680 = vadd.f32 %v3661, %v3679
        %v3681 = vpop.f32.mrf.mxu0
        %v3682 = vadd.f32 %v3663, %v3681
        %3683 = vdwg.mxu0
        %3684 = vmatpush.bf16.msra.mxu0 %v3526
        %3685 = vmatpush.bf16.msra.mxu0 %v3524
        %3686 = vmatpush.bf16.msra.mxu0 %v3522
        %3687 = vmatpush.bf16.msra.mxu0 %v3520
        %3688 = vmatpush.bf16.msra.mxu0 %v3518
        %3689 = vmatpush.bf16.msra.mxu0 %v3516
        %3690 = vmatpush.bf16.msra.mxu0 %v3514
        %3691 = vmatpush.bf16.msra.mxu0 %v3512
        %3692 = vmatmul.bf16.gmra.mxu0 %v3605
        %v3693 = vpop.f32.mrf.mxu0
        %v3694 = vadd.f32 %v3568, %v3693
        %v3695 = vpop.f32.mrf.mxu0
        %v3696 = vadd.f32 %v3573, %v3695
        %3697 = vmatmul.bf16.gmra.mxu0 %v3608
        %v3698 = vpop.f32.mrf.mxu0
        %v3699 = vadd.f32 %v3578, %v3698
        %v3700 = vpop.f32.mrf.mxu0
        %v3701 = vadd.f32 %v3583, %v3700
        %3702 = vdwg.mxu0
        %3703 = vmatpush.bf16.msra.mxu0 %v3542
        %3704 = vmatpush.bf16.msra.mxu0 %v3540
        %3705 = vmatpush.bf16.msra.mxu0 %v3538
        %3706 = vmatpush.bf16.msra.mxu0 %v3536
        %3707 = vmatpush.bf16.msra.mxu0 %v3534
        %3708 = vmatpush.bf16.msra.mxu0 %v3532
        %3709 = vmatpush.bf16.msra.mxu0 %v3530
        %3710 = vmatpush.bf16.msra.mxu0 %v3528
        %3711 = vmatmul.bf16.gmra.mxu0 %v3606
        %v3712 = vpop.f32.mrf.mxu0
        %v3713 = vadd.f32 %v3694, %v3712
        %v3714 = vpop.f32.mrf.mxu0
        %v3715 = vadd.f32 %v3696, %v3714
        %3716 = vmatmul.bf16.gmra.mxu0 %v3609
        %v3717 = vpop.f32.mrf.mxu0
        %v3718 = vadd.f32 %v3699, %v3717
        %v3719 = vpop.f32.mrf.mxu0
        %v3720 = vadd.f32 %v3701, %v3719
        %3721 = vdwg.mxu0
        %3722 = vmatpush.bf16.msra.mxu0 0
        %3723 = vmatpush.bf16.msra.mxu0 0
        %3724 = vmatpush.bf16.msra.mxu0 0
        %3725 = vmatpush.bf16.msra.mxu0 %v3625
        %3726 = vmatpush.bf16.msra.mxu0 %v3550
        %3727 = vmatpush.bf16.msra.mxu0 %v3548
        %3728 = vmatpush.bf16.msra.mxu0 %v3546
        %3729 = vmatpush.bf16.msra.mxu0 %v3544
        %3730 = vmatmul.bf16.gmra.mxu0 %v3616
        %v3731 = vpop.f32.mrf.mxu0
        %v3732 = vadd.f32 %v3713, %v3731
        %v3733 = vpop.f32.mrf.mxu0
        %v3734 = vadd.f32 %v3715, %v3733
        %3735 = vmatmul.bf16.gmra.mxu0 %v3619
        %v3736 = vpop.f32.mrf.mxu0
        %v3737 = vadd.f32 %v3718, %v3736
        %v3738 = vpop.f32.mrf.mxu0
        %v3739 = vadd.f32 %v3720, %v3738
        %3740 = vdwg.mxu0
        %v3741 = vmax.f32 %v3675, 0.0
        %v3742 = vmax.f32 %v3732, 0.0
        %v3743 = vmax.f32 %v3677, 0.0
        %v3744 = vmax.f32 %v3734, 0.0
        %v3745 = vmax.f32 %v3680, 0.0
        %v3746 = vmax.f32 %v3737, 0.0
        %v3747 = vmax.f32 %v3682, 0.0
        %v3748 = vmax.f32 %v3739, 0.0
        %3749 = vst [vmem:[%s577] sm:$0xff] %v3741
        %3750 = vst [vmem:[%s577 + $0x8] sm:$0xff] %v3742
        %3751 = vst [vmem:[%s577 + $0x10] sm:$0xff] %v3743
        %3752 = vst [vmem:[%s577 + $0x18] sm:$0xff] %v3744
        %3753 = vst [vmem:[%s577 + $0x20] sm:$0xff] %v3745
        %3754 = vst [vmem:[%s577 + $0x28] sm:$0xff] %v3746
        %3755 = vst [vmem:[%s577 + $0x30] sm:$0xff] %v3747
        %3756 = vst [vmem:[%s577 + $0x38] sm:$0xff] %v3748
        %s3757 = sand.u32 %s327, 1
        %s3758 = scalar_lea.sflag [#allocation5], %s3757
        %s3759 = sand.u32 %s327, 1
        %s3760 = smul.addr %s3759, 64
        %s3761 = scalar_lea.vmem [#allocation12], %s3760
        %p3762 = scmp.lt.s32.totalorder %s36, 1
        %s3763 = scalar_select %p3762, %s36, 1
        %s3764 = smul.addr %s3763, 4
        %s3765 = smul.addr %s3764, 8
        %s3766 = scalar_lea.vmem %s14, %s3765
        // Predicated region
        $region93: #{tpu_custom_call.1} parent=71 // pred_check
          %p3767 = pneg %p337
        $region94: #{tpu_custom_call.1} parent=71 // pred_check_branch
          %3769 = sbr.rel (%p3767) target = $region96
        $region95: #{tpu_custom_call.1} parent=71 // pred_region
          %3771 = vsyncadd %s3758, 0
          %s3772 = smul.addr %s36, 8
          %s3773 = smul.addr %s3772, 8
          %s3774 = scalar_lea.hbm %s13, %s3773
          %s3775 = sshll.u32 %s3761, 4
          %s3776 = int_to_ptr.vmem [resolvable:$true] %s3775
          %s3777 = sshll.u32 %s3774, 4
          %s3778 = int_to_ptr.hbm [resolvable:$true] %s3777
          %3783 = dma.vmem_to_hbm [thread:$0]  %s3776, 1024, %s3778, %s3758, 256, 256, 16
        $region96: #{tpu_custom_call.1} parent=71 // pred_fallthru
          _
        // Predicated region
        $region97: #{tpu_custom_call.1} parent=71 // pred_check
          %p3784 = pneg %p363
        $region98: #{tpu_custom_call.1} parent=71 // pred_check_branch
          %3786 = sbr.rel (%p3784) target = $region100
        $region99: #{tpu_custom_call.1} parent=71 // pred_region
          _
        $region100: #{tpu_custom_call.1} parent=71 // pred_fallthru
          _
      $region72: #{tpu_custom_call.1} parent=5 // pred_fallthru
        _
      %p3787 = scmp.le.s32.totalorder 2, %s31
      // Predicated region
      $region101: #{tpu_custom_call.1} parent=5 // pred_check
        %p3788 = pneg %p3787
      $region102: #{tpu_custom_call.1} parent=5 // pred_check_branch
        %3790 = sbr.rel (%p3788) target = $region104
      $region103: #{tpu_custom_call.1} parent=5 // pred_region
        %s3791 = ssub.s32 %s31, 2
        // Predicated region
        $region105: #{tpu_custom_call.1} parent=103 // pred_check
          %p3792 = pneg %p343
        $region106: #{tpu_custom_call.1} parent=103 // pred_check_branch
          %3794 = sbr.rel (%p3792) target = $region108
        $region107: #{tpu_custom_call.1} parent=103 // pred_region
          %s3795 = sand.u32 %s328, 1
          %s3796 = scalar_lea.sflag [#allocation5], %s3795
          %s3797 = sand.u32 %s328, 1
          %s3798 = smul.addr %s3797, 64
          %s3799 = scalar_lea.vmem [#allocation12], %s3798
          %3801 = dma.done %s3796, 1024
        $region108: #{tpu_custom_call.1} parent=103 // pred_fallthru
          _
        // Predicated region
        $region109: #{tpu_custom_call.1} parent=103 // pred_check
          %p3802 = pneg %p369
        $region110: #{tpu_custom_call.1} parent=103 // pred_check_branch
          %3804 = sbr.rel (%p3802) target = $region112
        $region111: #{tpu_custom_call.1} parent=103 // pred_region
          %p3805 = scmp.lt.s32.totalorder %s37, 1
          %s3806 = scalar_select %p3805, %s37, 1
          %s3807 = smul.addr %s3806, 4
          %s3808 = smul.addr %s3807, 8
          %s3809 = scalar_lea.vmem %s14, %s3808
        $region112: #{tpu_custom_call.1} parent=103 // pred_fallthru
          _
      $region104: #{tpu_custom_call.1} parent=5 // pred_fallthru
        _
    $region6: #{tpu_custom_call.1} parent=1 // loop_footer
      %s35 = sadd.s32 1, %s31
    $region7: #{tpu_custom_call.1} parent=1 // loop_footer_branch
      %30 = sbr.rel target = $region3
    $region8: #{tpu_custom_call.1} parent=1 // loop_exit
      _
    %3810 = vsyncpa [#allocation4], 1
    %s3811 = scalar_lea.sflag [#allocation4], 1
    %3812 = vsyncpa %s3811, 1
    %3813 = vsyncpa [#allocation7], 1
    %s3814 = scalar_lea.sflag [#allocation7], 1
    %3815 = vsyncpa %s3814, 1
    %3816 = vsyncpa [#allocation10], 1
    %3817 = vsyncpa [#allocation5], 1
    %s3818 = scalar_lea.sflag [#allocation5], 1
    %3819 = vsyncpa %s3818, 1

</llo_original>
